<compile_context>
chip_gen: v7x
topology: tpu7x:2x2x1
jax: 0.10.0
libtpu: 0.0.40
codegen_flags: <defaults>
</compile_context>

<pallas_src>
import functools
import math

import jax
import jax.numpy as jnp
from jax import lax
from jax.experimental import pallas as pl
from jax.experimental.pallas import tpu as pltpu

_BN_EPS = 1e-5


def _round_up(x, m):
    return (x + m - 1) // m * m


# ----------------------------- Pallas kernels ------------------------------
# Whole-K matmul block: out = maybe_relu(A @ W + bias [+ residual]).
# A, W, residual are bf16; dot accumulates in f32; bf16 is written back.

def _matmul_bias_kernel(a_ref, b_ref, c_ref, o_ref, *, relu):
    y = jnp.dot(a_ref[...], b_ref[...], preferred_element_type=jnp.float32)
    y = y + c_ref[...]
    if relu:
        y = jnp.maximum(y, 0.0)
    o_ref[...] = y.astype(o_ref.dtype)


def _matmul_bias_res_kernel(a_ref, b_ref, c_ref, r_ref, o_ref, *, relu):
    y = jnp.dot(a_ref[...], b_ref[...], preferred_element_type=jnp.float32)
    y = y + c_ref[...] + r_ref[...].astype(jnp.float32)
    if relu:
        y = jnp.maximum(y, 0.0)
    o_ref[...] = y.astype(o_ref.dtype)


# --------------------------- fused matmul wrapper ---------------------------

def fused_matmul(a, w_pad, bias_pad, n_out, *, relu=False, residual=None):
    """a: (M, Kp) bf16 (already K-padded); w_pad: (Kp, Np) bf16 with BN scale
    folded in; bias_pad: (1, Np) f32.  Returns (M, n_out) bf16."""
    M, Kp = a.shape
    Kp2, Np = w_pad.shape
    assert Kp == Kp2

    if M < 16:
        # Pallas dispatch overhead would dominate this tiny MXU work.
        y = jnp.dot(a, w_pad, preferred_element_type=jnp.float32) + bias_pad
        y = y[:, :n_out]
        if residual is not None:
            y = y + residual.astype(jnp.float32)
        if relu:
            y = jnp.maximum(y, 0.0)
        return y.astype(jnp.bfloat16)

    tn = 256 if Np % 256 == 0 else 128

    Mp = _round_up(M, 16)                    # bf16 sublane packing
    tm = min(256, Mp)
    if Mp % tm:
        Mp = _round_up(Mp, tm)
    if Mp // tm == 1 and Mp >= 32:
        # Give the M axis >= 2 blocks so both v7x TensorCores get work;
        # harmless on single-TC v5e/v6e.
        Mp = _round_up(M, 32)
        tm = Mp // 2

    a_p = a if Mp == M else jnp.pad(a, ((0, Mp - M), (0, 0)))

    in_specs = [
        pl.BlockSpec((tm, Kp), lambda i, j: (i, 0)),   # whole-K block
        pl.BlockSpec((Kp, tn), lambda i, j: (0, j)),
        pl.BlockSpec((1, tn), lambda i, j: (0, j)),
    ]
    args = [a_p, w_pad, bias_pad]

    if residual is not None:
        r_p = jnp.pad(residual.astype(jnp.bfloat16),
                      ((0, Mp - M), (0, Np - n_out)))
        in_specs.append(pl.BlockSpec((tm, tn), lambda i, j: (i, j)))
        args.append(r_p)
        kern = functools.partial(_matmul_bias_res_kernel, relu=relu)
    else:
        kern = functools.partial(_matmul_bias_kernel, relu=relu)

    out = pl.pallas_call(
        kern,
        out_shape=jax.ShapeDtypeStruct((Mp, Np), jnp.bfloat16),
        grid_spec=pltpu.PrefetchScalarGridSpec(
            num_scalar_prefetch=0,
            grid=(Mp // tm, Np // tn),
            in_specs=in_specs,
            out_specs=pl.BlockSpec((tm, tn), lambda i, j: (i, j)),
        ),
        compiler_params=pltpu.CompilerParams(
            dimension_semantics=("parallel", "parallel"),
            vmem_limit_bytes=32 * 1024 * 1024),
    )(*args)
    return out[:M, :n_out]


# ------------------------------- conv helpers ------------------------------

def _im2col(x_nhwc, kh, kw, stride, padding, k_pad):
    """Patch matrix (M, k_pad) in bf16; K padding folded into the concat."""
    B, H, W, C = x_nhwc.shape
    xp = jnp.pad(x_nhwc, ((0, 0), (padding, padding), (padding, padding), (0, 0)))
    OH = (H + 2 * padding - kh) // stride + 1
    OW = (W + 2 * padding - kw) // stride + 1
    cols = []
    for i in range(kh):
        for j in range(kw):
            hi = i + stride * (OH - 1) + 1
            wj = j + stride * (OW - 1) + 1
            cols.append(xp[:, i:hi:stride, j:wj:stride, :])
    K = kh * kw * C
    if k_pad > K:
        cols.append(jnp.zeros((B, OH, OW, k_pad - K), x_nhwc.dtype))
    patches = jnp.concatenate(cols, axis=-1)          # (B, OH, OW, k_pad)
    return patches.reshape(B * OH * OW, k_pad), OH, OW


def conv_bn(x_nhwc, cp, *, cout, kh, kw, stride, padding, relu, residual=None):
    """PyTorch Conv2d (no bias) + BatchNorm [+residual] [+ReLU], fully fused."""
    B = x_nhwc.shape[0]
    Kp = cp["w"].shape[0]
    patches, OH, OW = _im2col(x_nhwc.astype(jnp.bfloat16),
                              kh, kw, stride, padding, Kp)
    res2d = None
    if residual is not None:
        res2d = residual.reshape(B * OH * OW, cout)
    y = fused_matmul(patches, cp["w"], cp["b"], cout, relu=relu, residual=res2d)
    return y.reshape(B, OH, OW, cout)


# ------------------------------ parameters ---------------------------------

def kaiming_conv(key, cout, cin, kh, kw):
    fan_out = cout * kh * kw
    std = math.sqrt(2.0 / fan_out)
    return jax.random.normal(key, (cout, cin, kh, kw), jnp.float32) * std


def _pack_conv_bn(key, cout, cin, kh, kw):
    """Pre-pack conv weight to (Kp, Np) bf16 with eval-mode BN scale folded in."""
    w = kaiming_conv(key, cout, cin, kh, kw)
    K = kh * kw * cin
    wmat = jnp.transpose(w, (2, 3, 1, 0)).reshape(K, cout)   # (kh,kw,cin,cout)
    # eval-mode BN: scale = gamma / sqrt(var + eps) with gamma=1, var=1 (scalar
    # here; per-channel in general) -> fold into the weights.
    scale = 1.0 / math.sqrt(1.0 + _BN_EPS)
    bias = jnp.zeros((1, cout), jnp.float32)                  # beta - mean*scale
    Kp = _round_up(K, 128)
    Np = _round_up(cout, 128)
    w_pad = jnp.pad(wmat * scale, ((0, Kp - K), (0, Np - cout))).astype(jnp.bfloat16)
    bias_pad = jnp.pad(bias, ((0, 0), (0, Np - cout)))
    return {"w": w_pad, "b": bias_pad}


def make_params(key, layers=(1, 1, 1, 1), num_classes=10):
    ki = iter(jax.random.split(key, 64))
    P = {"conv1": _pack_conv_bn(next(ki), 64, 3, 7, 7)}
    inplanes = 64
    planes_list = (64, 128, 256, 512)
    strides = (1, 2, 2, 2)
    P["layers"] = []
    for li in range(4):
        planes, first_stride = planes_list[li], strides[li]
        blocks = []
        for bi in range(layers[li]):
            s = first_stride if bi == 0 else 1
            bp = {
                "conv1": _pack_conv_bn(next(ki), planes, inplanes, 3, 3),
                "conv2": _pack_conv_bn(next(ki), planes, planes, 3, 3),
            }
            if s != 1 or inplanes != planes:
                bp["ds"] = _pack_conv_bn(next(ki), planes, inplanes, 1, 1)
            blocks.append(bp)
            inplanes = planes
        P["layers"].append(blocks)
    fan_in = 512
    bound = 1.0 / math.sqrt(fan_in)
    fc_w = jax.random.uniform(next(ki), (num_classes, fan_in),
                              jnp.float32, -bound, bound)
    P["fc_w_t"] = fc_w.T                                 # pre-transposed
    P["fc_b"] = jax.random.uniform(next(ki), (num_classes,),
                                   jnp.float32, -bound, bound)
    return P


# ------------------------------ Info_Dropout -------------------------------

def info_dropout_stem(x_old_nchw, x_nhwc, key):
    # Info_Dropout(3, 64, kernel_size=7, stride=2, padding=3, if_pool=True,
    #              pool_kernel_size=3, pool_stride=2, pool_padding=1)
    radius, ps = 3, 9
    padding, k, stride = 3, 7, 2
    drop_rate, temperature, band_width = 1.5, 0.03, 1.0
    B, C, H, W = x_old_nchw.shape
    key_i, key_j, key_m = jax.random.split(key, 3)
    sampled_i = jax.random.randint(key_i, (ps,), -radius, radius + 1)
    sampled_j = jax.random.randint(key_j, (ps,), -radius, radius + 1)
    pad = padding + radius
    # ConstantPad2d((pad, pad+1, pad, pad+1))
    xp = jnp.pad(x_old_nchw, ((0, 0), (0, 0), (pad, pad + 1), (pad, pad + 1)))
    Hd, Wd = H + 2 * padding, W + 2 * padding
    center = lax.dynamic_slice(xp, (0, 0, radius, radius), (B, C, Hd, Wd))
    # TODO(synk): the 9 shifted squared-distance maps + 7x7 window sum could be
    # fused into one scalar-prefetch Pallas kernel; kept in XLA here because
    # every tensor involved is tiny at this resolution.
    dists = []
    for t in range(ps):
        shifted = lax.dynamic_slice(
            xp, (0, 0, radius + sampled_i[t], radius + sampled_j[t]),
            (B, C, Hd, Wd))
        d = center - shifted
        dists.append(jnp.sum(d * d, axis=1))              # sum over channels
    distance = jnp.stack(dists, axis=1)                    # (B, ps, Hd, Wd)
    # all-ones depthwise kxk conv, stride, VALID == per-tap windowed sum
    distance = lax.reduce_window(distance, jnp.float32(0.0), lax.add,
                                 (1, 1, k, k), (1, 1, stride, stride), "VALID")
    distance = jnp.exp(-distance / jnp.mean(distance) / 2.0 / band_width ** 2)
    # prob is a pure channel broadcast -> keep it at (B, 1, h, w) until sampling
    s = jnp.sum(distance, axis=1, keepdims=True)           # all-ones 1x1 conv
    prob = (s / ps) ** (1.0 / temperature)
    # if_pool: prob = -maxpool(-prob, k=3, s=2, p=1)  ==  min-pool (pad -> +inf)
    prob = lax.reduce_window(prob, jnp.float32(jnp.inf), lax.min,
                             (1, 1, 3, 3), (1, 1, 2, 2),
                             ((0, 0), (0, 0), (1, 1), (1, 1)))
    prob = prob + 1e-8
    prob = prob / jnp.sum(prob, axis=(-2, -1), keepdims=True)

    Bx, Hx, Wx, Cx = x_nhwc.shape
    hw = Hx * Wx
    n_samp = int(drop_rate * hw)
    # multinomial with replacement; channels share prob but draw independently
    logits = jnp.log(prob.reshape(B, 1, hw) + 1e-8)
    choice = jax.random.categorical(key_m, logits, shape=(n_samp, Bx, Cx))
    choice = jnp.transpose(choice, (1, 2, 0))               # (B, Cx, n_samp)
    # scatter-free mask: a position is dropped iff any sample selected it
    hit = jnp.any(choice[..., None] == jnp.arange(hw)[None, None, None, :],
                  axis=2)                                    # (B, Cx, hw)
    mask = jnp.where(hit, 0.0, 1.0).astype(x_nhwc.dtype)
    mask_nhwc = mask.reshape(Bx, Cx, Hx, Wx).transpose(0, 2, 3, 1)
    # tiny (~16 KB) multiply: let XLA fuse it instead of a dedicated pallas_call
    return x_nhwc * mask_nhwc


# ------------------------------ forward pass --------------------------------

def basic_block(x_nhwc, bp, stride, planes):
    if "ds" in bp:
        identity = conv_bn(x_nhwc, bp["ds"], cout=planes, kh=1, kw=1,
                           stride=stride, padding=0, relu=False)
    else:
        identity = x_nhwc
    out = conv_bn(x_nhwc, bp["conv1"], cout=planes, kh=3, kw=3,
                  stride=stride, padding=1, relu=True)
    # conv2 + BN + residual add + ReLU fused into one matmul epilogue
    out = conv_bn(out, bp["conv2"], cout=planes, kh=3, kw=3,
                  stride=1, padding=1, relu=True, residual=identity)
    return out


def resnet_forward(params, x_nchw, rng_key):
    x_old = x_nchw                                           # x_old = x.clone()
    x = jnp.transpose(x_nchw, (0, 2, 3, 1))                  # -> NHWC
    x = conv_bn(x, params["conv1"], cout=64, kh=7, kw=7,
                stride=2, padding=3, relu=True)              # bf16 activations
    # MaxPool2d(kernel=3, stride=2, padding=1)
    x = lax.reduce_window(x, jnp.array(-jnp.inf, x.dtype), lax.max,
                          (1, 3, 3, 1), (1, 2, 2, 1),
                          ((0, 0), (1, 1), (1, 1), (0, 0)))
    # dropout_layers = 0.5 > 0 -> stem Info_Dropout applied; block-level off.
    x = info_dropout_stem(x_old, x, rng_key)
    planes_list = (64, 128, 256, 512)
    strides = (1, 2, 2, 2)
    for li, layer_blocks in enumerate(params["layers"]):
        for bi, bp in enumerate(layer_blocks):
            s = strides[li] if bi == 0 else 1
            x = basic_block(x, bp, s, planes_list[li])
    feat = jnp.mean(x.astype(jnp.float32), axis=(1, 2))      # avgpool + flatten
    # FC head: M=batch (tiny) -> plain dot; Pallas dispatch would dominate.
    logits = jnp.dot(feat, params["fc_w_t"]) + params["fc_b"]
    return logits


if __name__ == "__main__":
    key = jax.random.PRNGKey(0)
    k_param, k_in, k_drop = jax.random.split(key, 3)
    params = make_params(k_param, layers=(1, 1, 1, 1), num_classes=10)
    x = jax.random.normal(k_in, (2, 3, 32, 32), jnp.float32)   # NCHW like PyTorch
    fwd = jax.jit(resnet_forward)
    out = fwd(params, x, k_drop)
    out = jax.block_until_ready(out)
    assert out.shape == (2, 10)
    print("KERNEL_OK")
</pallas_src>

<mosaic_0001>
module attributes {stable_mosaic.version = 11 : i64} {
  func.func @_matmul_bias_kernel(%arg0: i32, %arg1: i32, %arg2: memref<256x256xbf16, #tpu.memory_space<vmem>>, %arg3: memref<256x128xbf16, #tpu.memory_space<vmem>>, %arg4: memref<1x128xf32, #tpu.memory_space<vmem>>, %arg5: memref<256x128xbf16, #tpu.memory_space<vmem>>) attributes {dimension_semantics = [#tpu.dimension_semantics<parallel>, #tpu.dimension_semantics<parallel>], iteration_bounds = array<i64: 2, 1>, scalar_prefetch = 0 : i64, scratch_operands = 0 : i64, tpu.core_type = #tpu.core_type<tc>, window_params = [{transform_indices = @transform_0, window_bounds = array<i64: 256, 256>}, {transform_indices = @transform_1, window_bounds = array<i64: 256, 128>}, {transform_indices = @transform_2, window_bounds = array<i64: 1, 128>}, {transform_indices = @transform_3, window_bounds = array<i64: 256, 128>}]} {
    %c0 = arith.constant 0 : index
    %c0_0 = arith.constant 0 : index
    %0 = vector.load %arg2[%c0, %c0_0] : memref<256x256xbf16, #tpu.memory_space<vmem>>, vector<256x256xbf16>
    %c0_1 = arith.constant 0 : index
    %c0_2 = arith.constant 0 : index
    %1 = vector.load %arg3[%c0_1, %c0_2] : memref<256x128xbf16, #tpu.memory_space<vmem>>, vector<256x128xbf16>
    %cst = arith.constant dense<0.000000e+00> : vector<256x128xf32>
    %2 = tpu.matmul %0, %1, %cst {dimension_numbers = #tpu.dot_dimension_numbers<[1], [0], [0], [1], [0, 0, 1, 1], [], []>} : vector<256x256xbf16>, vector<256x128xbf16>, vector<256x128xf32> -> vector<256x128xf32>
    %c0_3 = arith.constant 0 : index
    %c0_4 = arith.constant 0 : index
    %3 = vector.load %arg4[%c0_3, %c0_4] : memref<1x128xf32, #tpu.memory_space<vmem>>, vector<1x128xf32>
    %4 = vector.broadcast %3 : vector<1x128xf32> to vector<256x128xf32>
    %5 = arith.addf %2, %4 : vector<256x128xf32>
    %cst_5 = arith.constant 0.000000e+00 : f32
    %6 = vector.broadcast %cst_5 : f32 to vector<256x128xf32>
    %7 = arith.maximumf %5, %6 : vector<256x128xf32>
    %8 = arith.truncf %7 : vector<256x128xf32> to vector<256x128xbf16>
    %c0_6 = arith.constant 0 : index
    %c0_7 = arith.constant 0 : index
    %9 = vector.load %arg5[%c0_6, %c0_7] : memref<256x128xbf16, #tpu.memory_space<vmem>>, vector<256x128xbf16>
    tpu.vector_store %arg5[%c0_6, %c0_7], %8 {strides = array<i32>} : memref<256x128xbf16, #tpu.memory_space<vmem>>, vector<256x128xbf16>,
    return
  }
  func.func @transform_0(%arg0: i32, %arg1: i32) -> (i32, i32) {
    %c0_i32 = arith.constant 0 : i32
    %c0_i32_0 = arith.constant 0 : i32
    return %arg0, %c0_i32 : i32, i32
  }
  func.func @transform_1(%arg0: i32, %arg1: i32) -> (i32, i32) {
    %c0_i32 = arith.constant 0 : i32
    %c0_i32_0 = arith.constant 0 : i32
    return %c0_i32, %arg1 : i32, i32
  }
  func.func @transform_2(%arg0: i32, %arg1: i32) -> (i32, i32) {
    %c0_i32 = arith.constant 0 : i32
    %c0_i32_0 = arith.constant 0 : i32
    return %c0_i32, %arg1 : i32, i32
  }
  func.func @transform_3(%arg0: i32, %arg1: i32) -> (i32, i32) {
    %c0_i32 = arith.constant 0 : i32
    return %arg0, %arg1 : i32, i32
  }
}

module attributes {stable_mosaic.version = 11 : i64} {
  func.func @_matmul_bias_kernel(%arg0: i32, %arg1: i32, %arg2: memref<64x640xbf16, #tpu.memory_space<vmem>>, %arg3: memref<640x128xbf16, #tpu.memory_space<vmem>>, %arg4: memref<1x128xf32, #tpu.memory_space<vmem>>, %arg5: memref<64x128xbf16, #tpu.memory_space<vmem>>) attributes {dimension_semantics = [#tpu.dimension_semantics<parallel>, #tpu.dimension_semantics<parallel>], iteration_bounds = array<i64: 2, 1>, scalar_prefetch = 0 : i64, scratch_operands = 0 : i64, tpu.core_type = #tpu.core_type<tc>, window_params = [{transform_indices = @transform_0, window_bounds = array<i64: 64, 640>}, {transform_indices = @transform_1, window_bounds = array<i64: 640, 128>}, {transform_indices = @transform_2, window_bounds = array<i64: 1, 128>}, {transform_indices = @transform_3, window_bounds = array<i64: 64, 128>}]} {
    %c0 = arith.constant 0 : index
    %c0_0 = arith.constant 0 : index
    %0 = vector.load %arg2[%c0, %c0_0] : memref<64x640xbf16, #tpu.memory_space<vmem>>, vector<64x640xbf16>
    %c0_1 = arith.constant 0 : index
    %c0_2 = arith.constant 0 : index
    %1 = vector.load %arg3[%c0_1, %c0_2] : memref<640x128xbf16, #tpu.memory_space<vmem>>, vector<640x128xbf16>
    %cst = arith.constant dense<0.000000e+00> : vector<64x128xf32>
    %2 = tpu.matmul %0, %1, %cst {dimension_numbers = #tpu.dot_dimension_numbers<[1], [0], [0], [1], [0, 0, 1, 1], [], []>} : vector<64x640xbf16>, vector<640x128xbf16>, vector<64x128xf32> -> vector<64x128xf32>
    %c0_3 = arith.constant 0 : index
    %c0_4 = arith.constant 0 : index
    %3 = vector.load %arg4[%c0_3, %c0_4] : memref<1x128xf32, #tpu.memory_space<vmem>>, vector<1x128xf32>
    %4 = vector.broadcast %3 : vector<1x128xf32> to vector<64x128xf32>
    %5 = arith.addf %2, %4 : vector<64x128xf32>
    %cst_5 = arith.constant 0.000000e+00 : f32
    %6 = vector.broadcast %cst_5 : f32 to vector<64x128xf32>
    %7 = arith.maximumf %5, %6 : vector<64x128xf32>
    %8 = arith.truncf %7 : vector<64x128xf32> to vector<64x128xbf16>
    %c0_6 = arith.constant 0 : index
    %c0_7 = arith.constant 0 : index
    %9 = vector.load %arg5[%c0_6, %c0_7] : memref<64x128xbf16, #tpu.memory_space<vmem>>, vector<64x128xbf16>
    tpu.vector_store %arg5[%c0_6, %c0_7], %8 {strides = array<i32>} : memref<64x128xbf16, #tpu.memory_space<vmem>>, vector<64x128xbf16>,
    return
  }
  func.func @transform_0(%arg0: i32, %arg1: i32) -> (i32, i32) {
    %c0_i32 = arith.constant 0 : i32
    %c0_i32_0 = arith.constant 0 : i32
    return %arg0, %c0_i32 : i32, i32
  }
  func.func @transform_1(%arg0: i32, %arg1: i32) -> (i32, i32) {
    %c0_i32 = arith.constant 0 : i32
    %c0_i32_0 = arith.constant 0 : i32
    return %c0_i32, %arg1 : i32, i32
  }
  func.func @transform_2(%arg0: i32, %arg1: i32) -> (i32, i32) {
    %c0_i32 = arith.constant 0 : i32
    %c0_i32_0 = arith.constant 0 : i32
    return %c0_i32, %arg1 : i32, i32
  }
  func.func @transform_3(%arg0: i32, %arg1: i32) -> (i32, i32) {
    %c0_i32 = arith.constant 0 : i32
    return %arg0, %arg1 : i32, i32
  }
}

module attributes {stable_mosaic.version = 11 : i64} {
  func.func @_matmul_bias_res_kernel(%arg0: i32, %arg1: i32, %arg2: memref<64x640xbf16, #tpu.memory_space<vmem>>, %arg3: memref<640x128xbf16, #tpu.memory_space<vmem>>, %arg4: memref<1x128xf32, #tpu.memory_space<vmem>>, %arg5: memref<64x128xbf16, #tpu.memory_space<vmem>>, %arg6: memref<64x128xbf16, #tpu.memory_space<vmem>>) attributes {dimension_semantics = [#tpu.dimension_semantics<parallel>, #tpu.dimension_semantics<parallel>], iteration_bounds = array<i64: 2, 1>, scalar_prefetch = 0 : i64, scratch_operands = 0 : i64, tpu.core_type = #tpu.core_type<tc>, window_params = [{transform_indices = @transform_0, window_bounds = array<i64: 64, 640>}, {transform_indices = @transform_1, window_bounds = array<i64: 640, 128>}, {transform_indices = @transform_2, window_bounds = array<i64: 1, 128>}, {transform_indices = @transform_3, window_bounds = array<i64: 64, 128>}, {transform_indices = @transform_4, window_bounds = array<i64: 64, 128>}]} {
    %c0 = arith.constant 0 : index
    %c0_0 = arith.constant 0 : index
    %0 = vector.load %arg2[%c0, %c0_0] : memref<64x640xbf16, #tpu.memory_space<vmem>>, vector<64x640xbf16>
    %c0_1 = arith.constant 0 : index
    %c0_2 = arith.constant 0 : index
    %1 = vector.load %arg3[%c0_1, %c0_2] : memref<640x128xbf16, #tpu.memory_space<vmem>>, vector<640x128xbf16>
    %cst = arith.constant dense<0.000000e+00> : vector<64x128xf32>
    %2 = tpu.matmul %0, %1, %cst {dimension_numbers = #tpu.dot_dimension_numbers<[1], [0], [0], [1], [0, 0, 1, 1], [], []>} : vector<64x640xbf16>, vector<640x128xbf16>, vector<64x128xf32> -> vector<64x128xf32>
    %c0_3 = arith.constant 0 : index
    %c0_4 = arith.constant 0 : index
    %3 = vector.load %arg4[%c0_3, %c0_4] : memref<1x128xf32, #tpu.memory_space<vmem>>, vector<1x128xf32>
    %4 = vector.broadcast %3 : vector<1x128xf32> to vector<64x128xf32>
    %5 = arith.addf %2, %4 : vector<64x128xf32>
    %c0_5 = arith.constant 0 : index
    %c0_6 = arith.constant 0 : index
    %6 = vector.load %arg5[%c0_5, %c0_6] : memref<64x128xbf16, #tpu.memory_space<vmem>>, vector<64x128xbf16>
    %7 = arith.extf %6 : vector<64x128xbf16> to vector<64x128xf32>
    %8 = arith.addf %5, %7 : vector<64x128xf32>
    %cst_7 = arith.constant 0.000000e+00 : f32
    %9 = vector.broadcast %cst_7 : f32 to vector<64x128xf32>
    %10 = arith.maximumf %8, %9 : vector<64x128xf32>
    %11 = arith.truncf %10 : vector<64x128xf32> to vector<64x128xbf16>
    %c0_8 = arith.constant 0 : index
    %c0_9 = arith.constant 0 : index
    %12 = vector.load %arg6[%c0_8, %c0_9] : memref<64x128xbf16, #tpu.memory_space<vmem>>, vector<64x128xbf16>
    tpu.vector_store %arg6[%c0_8, %c0_9], %11 {strides = array<i32>} : memref<64x128xbf16, #tpu.memory_space<vmem>>, vector<64x128xbf16>,
    return
  }
  func.func @transform_0(%arg0: i32, %arg1: i32) -> (i32, i32) {
    %c0_i32 = arith.constant 0 : i32
    %c0_i32_0 = arith.constant 0 : i32
    return %arg0, %c0_i32 : i32, i32
  }
  func.func @transform_1(%arg0: i32, %arg1: i32) -> (i32, i32) {
    %c0_i32 = arith.constant 0 : i32
    %c0_i32_0 = arith.constant 0 : i32
    return %c0_i32, %arg1 : i32, i32
  }
  func.func @transform_2(%arg0: i32, %arg1: i32) -> (i32, i32) {
    %c0_i32 = arith.constant 0 : i32
    %c0_i32_0 = arith.constant 0 : i32
    return %c0_i32, %arg1 : i32, i32
  }
  func.func @transform_3(%arg0: i32, %arg1: i32) -> (i32, i32) {
    %c0_i32 = arith.constant 0 : i32
    return %arg0, %arg1 : i32, i32
  }
  func.func @transform_4(%arg0: i32, %arg1: i32) -> (i32, i32) {
    %c0_i32 = arith.constant 0 : i32
    return %arg0, %arg1 : i32, i32
  }
}

module attributes {stable_mosaic.version = 11 : i64} {
  func.func @_matmul_bias_kernel(%arg0: i32, %arg1: i32, %arg2: memref<16x640xbf16, #tpu.memory_space<vmem>>, %arg3: memref<640x128xbf16, #tpu.memory_space<vmem>>, %arg4: memref<1x128xf32, #tpu.memory_space<vmem>>, %arg5: memref<16x128xbf16, #tpu.memory_space<vmem>>) attributes {dimension_semantics = [#tpu.dimension_semantics<parallel>, #tpu.dimension_semantics<parallel>], iteration_bounds = array<i64: 2, 1>, scalar_prefetch = 0 : i64, scratch_operands = 0 : i64, tpu.core_type = #tpu.core_type<tc>, window_params = [{transform_indices = @transform_0, window_bounds = array<i64: 16, 640>}, {transform_indices = @transform_1, window_bounds = array<i64: 640, 128>}, {transform_indices = @transform_2, window_bounds = array<i64: 1, 128>}, {transform_indices = @transform_3, window_bounds = array<i64: 16, 128>}]} {
    %c0 = arith.constant 0 : index
    %c0_0 = arith.constant 0 : index
    %0 = vector.load %arg2[%c0, %c0_0] : memref<16x640xbf16, #tpu.memory_space<vmem>>, vector<16x640xbf16>
    %c0_1 = arith.constant 0 : index
    %c0_2 = arith.constant 0 : index
    %1 = vector.load %arg3[%c0_1, %c0_2] : memref<640x128xbf16, #tpu.memory_space<vmem>>, vector<640x128xbf16>
    %cst = arith.constant dense<0.000000e+00> : vector<16x128xf32>
    %2 = tpu.matmul %0, %1, %cst {dimension_numbers = #tpu.dot_dimension_numbers<[1], [0], [0], [1], [0, 0, 1, 1], [], []>} : vector<16x640xbf16>, vector<640x128xbf16>, vector<16x128xf32> -> vector<16x128xf32>
    %c0_3 = arith.constant 0 : index
    %c0_4 = arith.constant 0 : index
    %3 = vector.load %arg4[%c0_3, %c0_4] : memref<1x128xf32, #tpu.memory_space<vmem>>, vector<1x128xf32>
    %4 = vector.broadcast %3 : vector<1x128xf32> to vector<16x128xf32>
    %5 = arith.addf %2, %4 : vector<16x128xf32>
    %cst_5 = arith.constant 0.000000e+00 : f32
    %6 = vector.broadcast %cst_5 : f32 to vector<16x128xf32>
    %7 = arith.maximumf %5, %6 : vector<16x128xf32>
    %8 = arith.truncf %7 : vector<16x128xf32> to vector<16x128xbf16>
    %c0_6 = arith.constant 0 : index
    %c0_7 = arith.constant 0 : index
    %9 = vector.load %arg5[%c0_6, %c0_7] : memref<16x128xbf16, #tpu.memory_space<vmem>>, vector<16x128xbf16>
    tpu.vector_store %arg5[%c0_6, %c0_7], %8 {strides = array<i32>} : memref<16x128xbf16, #tpu.memory_space<vmem>>, vector<16x128xbf16>,
    return
  }
  func.func @transform_0(%arg0: i32, %arg1: i32) -> (i32, i32) {
    %c0_i32 = arith.constant 0 : i32
    %c0_i32_0 = arith.constant 0 : i32
    return %arg0, %c0_i32 : i32, i32
  }
  func.func @transform_1(%arg0: i32, %arg1: i32) -> (i32, i32) {
    %c0_i32 = arith.constant 0 : i32
    %c0_i32_0 = arith.constant 0 : i32
    return %c0_i32, %arg1 : i32, i32
  }
  func.func @transform_2(%arg0: i32, %arg1: i32) -> (i32, i32) {
    %c0_i32 = arith.constant 0 : i32
    %c0_i32_0 = arith.constant 0 : i32
    return %c0_i32, %arg1 : i32, i32
  }
  func.func @transform_3(%arg0: i32, %arg1: i32) -> (i32, i32) {
    %c0_i32 = arith.constant 0 : i32
    return %arg0, %arg1 : i32, i32
  }
}

module attributes {stable_mosaic.version = 11 : i64} {
  func.func @_matmul_bias_res_kernel(%arg0: i32, %arg1: i32, %arg2: memref<16x1152xbf16, #tpu.memory_space<vmem>>, %arg3: memref<1152x128xbf16, #tpu.memory_space<vmem>>, %arg4: memref<1x128xf32, #tpu.memory_space<vmem>>, %arg5: memref<16x128xbf16, #tpu.memory_space<vmem>>, %arg6: memref<16x128xbf16, #tpu.memory_space<vmem>>) attributes {dimension_semantics = [#tpu.dimension_semantics<parallel>, #tpu.dimension_semantics<parallel>], iteration_bounds = array<i64: 2, 1>, scalar_prefetch = 0 : i64, scratch_operands = 0 : i64, tpu.core_type = #tpu.core_type<tc>, window_params = [{transform_indices = @transform_0, window_bounds = array<i64: 16, 1152>}, {transform_indices = @transform_1, window_bounds = array<i64: 1152, 128>}, {transform_indices = @transform_2, window_bounds = array<i64: 1, 128>}, {transform_indices = @transform_3, window_bounds = array<i64: 16, 128>}, {transform_indices = @transform_4, window_bounds = array<i64: 16, 128>}]} {
    %c0 = arith.constant 0 : index
    %c0_0 = arith.constant 0 : index
    %0 = vector.load %arg2[%c0, %c0_0] : memref<16x1152xbf16, #tpu.memory_space<vmem>>, vector<16x1152xbf16>
    %c0_1 = arith.constant 0 : index
    %c0_2 = arith.constant 0 : index
    %1 = vector.load %arg3[%c0_1, %c0_2] : memref<1152x128xbf16, #tpu.memory_space<vmem>>, vector<1152x128xbf16>
    %cst = arith.constant dense<0.000000e+00> : vector<16x128xf32>
    %2 = tpu.matmul %0, %1, %cst {dimension_numbers = #tpu.dot_dimension_numbers<[1], [0], [0], [1], [0, 0, 1, 1], [], []>} : vector<16x1152xbf16>, vector<1152x128xbf16>, vector<16x128xf32> -> vector<16x128xf32>
    %c0_3 = arith.constant 0 : index
    %c0_4 = arith.constant 0 : index
    %3 = vector.load %arg4[%c0_3, %c0_4] : memref<1x128xf32, #tpu.memory_space<vmem>>, vector<1x128xf32>
    %4 = vector.broadcast %3 : vector<1x128xf32> to vector<16x128xf32>
    %5 = arith.addf %2, %4 : vector<16x128xf32>
    %c0_5 = arith.constant 0 : index
    %c0_6 = arith.constant 0 : index
    %6 = vector.load %arg5[%c0_5, %c0_6] : memref<16x128xbf16, #tpu.memory_space<vmem>>, vector<16x128xbf16>
    %7 = arith.extf %6 : vector<16x128xbf16> to vector<16x128xf32>
    %8 = arith.addf %5, %7 : vector<16x128xf32>
    %cst_7 = arith.constant 0.000000e+00 : f32
    %9 = vector.broadcast %cst_7 : f32 to vector<16x128xf32>
    %10 = arith.maximumf %8, %9 : vector<16x128xf32>
    %11 = arith.truncf %10 : vector<16x128xf32> to vector<16x128xbf16>
    %c0_8 = arith.constant 0 : index
    %c0_9 = arith.constant 0 : index
    %12 = vector.load %arg6[%c0_8, %c0_9] : memref<16x128xbf16, #tpu.memory_space<vmem>>, vector<16x128xbf16>
    tpu.vector_store %arg6[%c0_8, %c0_9], %11 {strides = array<i32>} : memref<16x128xbf16, #tpu.memory_space<vmem>>, vector<16x128xbf16>,
    return
  }
  func.func @transform_0(%arg0: i32, %arg1: i32) -> (i32, i32) {
    %c0_i32 = arith.constant 0 : i32
    %c0_i32_0 = arith.constant 0 : i32
    return %arg0, %c0_i32 : i32, i32
  }
  func.func @transform_1(%arg0: i32, %arg1: i32) -> (i32, i32) {
    %c0_i32 = arith.constant 0 : i32
    %c0_i32_0 = arith.constant 0 : i32
    return %c0_i32, %arg1 : i32, i32
  }
  func.func @transform_2(%arg0: i32, %arg1: i32) -> (i32, i32) {
    %c0_i32 = arith.constant 0 : i32
    %c0_i32_0 = arith.constant 0 : i32
    return %c0_i32, %arg1 : i32, i32
  }
  func.func @transform_3(%arg0: i32, %arg1: i32) -> (i32, i32) {
    %c0_i32 = arith.constant 0 : i32
    return %arg0, %arg1 : i32, i32
  }
  func.func @transform_4(%arg0: i32, %arg1: i32) -> (i32, i32) {
    %c0_i32 = arith.constant 0 : i32
    return %arg0, %arg1 : i32, i32
  }
}

module attributes {stable_mosaic.version = 11 : i64} {
  func.func @_matmul_bias_kernel(%arg0: i32, %arg1: i32, %arg2: memref<16x128xbf16, #tpu.memory_space<vmem>>, %arg3: memref<128x128xbf16, #tpu.memory_space<vmem>>, %arg4: memref<1x128xf32, #tpu.memory_space<vmem>>, %arg5: memref<16x128xbf16, #tpu.memory_space<vmem>>) attributes {dimension_semantics = [#tpu.dimension_semantics<parallel>, #tpu.dimension_semantics<parallel>], iteration_bounds = array<i64: 2, 1>, scalar_prefetch = 0 : i64, scratch_operands = 0 : i64, tpu.core_type = #tpu.core_type<tc>, window_params = [{transform_indices = @transform_0, window_bounds = array<i64: 16, 128>}, {transform_indices = @transform_1, window_bounds = array<i64: 128, 128>}, {transform_indices = @transform_2, window_bounds = array<i64: 1, 128>}, {transform_indices = @transform_3, window_bounds = array<i64: 16, 128>}]} {
    %c0 = arith.constant 0 : index
    %c0_0 = arith.constant 0 : index
    %0 = vector.load %arg2[%c0, %c0_0] : memref<16x128xbf16, #tpu.memory_space<vmem>>, vector<16x128xbf16>
    %c0_1 = arith.constant 0 : index
    %c0_2 = arith.constant 0 : index
    %1 = vector.load %arg3[%c0_1, %c0_2] : memref<128x128xbf16, #tpu.memory_space<vmem>>, vector<128x128xbf16>
    %cst = arith.constant dense<0.000000e+00> : vector<16x128xf32>
    %2 = tpu.matmul %0, %1, %cst {dimension_numbers = #tpu.dot_dimension_numbers<[1], [0], [0], [1], [0, 0, 1, 1], [], []>} : vector<16x128xbf16>, vector<128x128xbf16>, vector<16x128xf32> -> vector<16x128xf32>
    %c0_3 = arith.constant 0 : index
    %c0_4 = arith.constant 0 : index
    %3 = vector.load %arg4[%c0_3, %c0_4] : memref<1x128xf32, #tpu.memory_space<vmem>>, vector<1x128xf32>
    %4 = vector.broadcast %3 : vector<1x128xf32> to vector<16x128xf32>
    %5 = arith.addf %2, %4 : vector<16x128xf32>
    %6 = arith.truncf %5 : vector<16x128xf32> to vector<16x128xbf16>
    %c0_5 = arith.constant 0 : index
    %c0_6 = arith.constant 0 : index
    %7 = vector.load %arg5[%c0_5, %c0_6] : memref<16x128xbf16, #tpu.memory_space<vmem>>, vector<16x128xbf16>
    tpu.vector_store %arg5[%c0_5, %c0_6], %6 {strides = array<i32>} : memref<16x128xbf16, #tpu.memory_space<vmem>>, vector<16x128xbf16>,
    return
  }
  func.func @transform_0(%arg0: i32, %arg1: i32) -> (i32, i32) {
    %c0_i32 = arith.constant 0 : i32
    %c0_i32_0 = arith.constant 0 : i32
    return %arg0, %c0_i32 : i32, i32
  }
  func.func @transform_1(%arg0: i32, %arg1: i32) -> (i32, i32) {
    %c0_i32 = arith.constant 0 : i32
    %c0_i32_0 = arith.constant 0 : i32
    return %c0_i32, %arg1 : i32, i32
  }
  func.func @transform_2(%arg0: i32, %arg1: i32) -> (i32, i32) {
    %c0_i32 = arith.constant 0 : i32
    %c0_i32_0 = arith.constant 0 : i32
    return %c0_i32, %arg1 : i32, i32
  }
  func.func @transform_3(%arg0: i32, %arg1: i32) -> (i32, i32) {
    %c0_i32 = arith.constant 0 : i32
    return %arg0, %arg1 : i32, i32
  }
}

</mosaic_0001>

<llo_original>
// kernel: resnet_forward.6
$region0: #{resnet_forward.6}
  #allocation0 [shape = 'u32[]', space=smem, size = 0x4, offset = 0x4, fixed_abs, tag = 'smem constant byte address 0x4 - core index']
  #allocation1 [shape = 'u32[144,128]{1,0:T(1,128)}', space=vmem, size = 0x12000, scoped, tag = 'internal scratch']
  %s0 = inlined_call_operand.vmem [shape: bf16[512,256], index: 0, kind: input, shape index: {}]
  %s1 = inlined_call_operand.vmem [shape: bf16[256,128], index: 1, kind: input, shape index: {}]
  %s2 = inlined_call_operand.vmem [shape: f32[1,128], index: 2, kind: input, shape index: {}]
  %s3 = inlined_call_operand.vmem [shape: bf16[512,128], index: 3, kind: output, shape index: {}]
  %s4 = sld [smem:[#allocation0]]
  $region45: #{resnet_forward.6} parent=0
    _
  %s6 = ssub.s32 1, %s4
  %s7 = scalar_select 0, %s6, %s4
  loop: start=0, step=1, limit=4
  $region2: #{resnet_forward.6} parent=0 // loop_pre_header
    _
  $region3: #{resnet_forward.6} parent=0 // loop_header
    %s9 = sphi 0, %s13
    %p10 = scmp.ge.s32.totalorder %s9, 4
    %s16 = sphi 0, %s28
    %s17 = sphi 0, %s24
    %s18 = sphi 0, %s16
    %s19 = sphi 0, %s17
    %s20 = sphi 0, %s18
    %s21 = sphi 0, %s19
    %s31 = sphi 0, %s33
    %s34 = sphi 0, %s31
    %s35 = sphi 0, %s34
    %s51 = sphi 0, %s35
    %s57 = sphi 0, %s59
    %s60 = sphi 0, %s57
    %s61 = sphi 0, %s60
    %s77 = sphi 0, %s61
    %s83 = sphi 0, %s85
    %s86 = sphi 0, %s83
    %s87 = sphi 0, %s86
    %s103 = sphi 0, %s87
    %s111 = sphi 0, %s113
    %s114 = sphi 0, %s111
    %s115 = sphi 0, %s114
    %s131 = sphi 0, %s115
  $region4: #{resnet_forward.6} parent=0 // loop_header_branch
    %12 = sbr.rel (%p10) target = $region8
  $region5: #{resnet_forward.6} parent=0 // loop_body
    %s14 = ssub.s32 %s9, 1
    %s15 = ssub.s32 %s9, 2
    %s22 = sadd.s32 1, %s17
    %p23 = scmp.ge.s32.totalorder %s22, 1
    %s24 = scalar_select %p23, 0, %s22
    %s25 = sadd.s32 1, %s16
    %s26 = scalar_select %p23, %s25, %s16
    %p27 = scmp.ge.s32.totalorder %s26, 2
    %s28 = scalar_select %p27, 0, %s26
    %s29 = ssub.s32 %s16, %s28
    %p30 = scmp.eq.s32.totalorder %s29, 0
    %s32 = sadd.s32 %s31, 1
    %s33 = scalar_select %p30, %s31, %s32
    %p36 = pneg %p30
    %p37 = scmp.eq.s32.totalorder %s9, 1
    %p38 = por %p36, %p37
    %p39 = scmp.ne.s32.totalorder %s31, %s34
    %p40 = scmp.eq.s32.totalorder %s9, 0
    %p41 = por %p39, %p40
    %p42 = scmp.ne.s32.totalorder %s31, %s34
    %p43 = scmp.eq.s32.totalorder %s14, 1
    %p44 = por %p42, %p43
    %p45 = scmp.ne.s32.totalorder %s34, %s35
    %p46 = scmp.eq.s32.totalorder %s14, 0
    %p47 = por %p45, %p46
    %p48 = scmp.ne.s32.totalorder %s34, %s35
    %p49 = scmp.eq.s32.totalorder %s15, 1
    %p50 = por %p48, %p49
    %p52 = scmp.ne.s32.totalorder %s35, %s51
    %p53 = scmp.eq.s32.totalorder %s15, 0
    %p54 = por %p52, %p53
    %s55 = ssub.s32 %s17, %s24
    %p56 = scmp.eq.s32.totalorder %s55, 0
    %s58 = sadd.s32 %s57, 1
    %s59 = scalar_select %p56, %s57, %s58
    %p62 = pneg %p56
    %p63 = scmp.eq.s32.totalorder %s9, 1
    %p64 = por %p62, %p63
    %p65 = scmp.ne.s32.totalorder %s57, %s60
    %p66 = scmp.eq.s32.totalorder %s9, 0
    %p67 = por %p65, %p66
    %p68 = scmp.ne.s32.totalorder %s57, %s60
    %p69 = scmp.eq.s32.totalorder %s14, 1
    %p70 = por %p68, %p69
    %p71 = scmp.ne.s32.totalorder %s60, %s61
    %p72 = scmp.eq.s32.totalorder %s14, 0
    %p73 = por %p71, %p72
    %p74 = scmp.ne.s32.totalorder %s60, %s61
    %p75 = scmp.eq.s32.totalorder %s15, 1
    %p76 = por %p74, %p75
    %p78 = scmp.ne.s32.totalorder %s61, %s77
    %p79 = scmp.eq.s32.totalorder %s15, 0
    %p80 = por %p78, %p79
    %s81 = ssub.s32 %s17, %s24
    %p82 = scmp.eq.s32.totalorder %s81, 0
    %s84 = sadd.s32 %s83, 1
    %s85 = scalar_select %p82, %s83, %s84
    %p88 = pneg %p82
    %p89 = scmp.eq.s32.totalorder %s9, 1
    %p90 = por %p88, %p89
    %p91 = scmp.ne.s32.totalorder %s83, %s86
    %p92 = scmp.eq.s32.totalorder %s9, 0
    %p93 = por %p91, %p92
    %p94 = scmp.ne.s32.totalorder %s83, %s86
    %p95 = scmp.eq.s32.totalorder %s14, 1
    %p96 = por %p94, %p95
    %p97 = scmp.ne.s32.totalorder %s86, %s87
    %p98 = scmp.eq.s32.totalorder %s14, 0
    %p99 = por %p97, %p98
    %p100 = scmp.ne.s32.totalorder %s86, %s87
    %p101 = scmp.eq.s32.totalorder %s15, 1
    %p102 = por %p100, %p101
    %p104 = scmp.ne.s32.totalorder %s87, %s103
    %p105 = scmp.eq.s32.totalorder %s15, 0
    %p106 = por %p104, %p105
    %s107 = ssub.s32 %s16, %s28
    %s108 = ssub.s32 %s17, %s24
    %s109 = sor.u32 %s107, %s108
    %p110 = scmp.eq.s32.totalorder %s109, 0
    %s112 = sadd.s32 %s111, 1
    %s113 = scalar_select %p110, %s111, %s112
    %p116 = pneg %p110
    %p117 = scmp.eq.s32.totalorder %s9, 1
    %p118 = por %p116, %p117
    %p119 = scmp.ne.s32.totalorder %s111, %s114
    %p120 = scmp.eq.s32.totalorder %s9, 0
    %p121 = por %p119, %p120
    %p122 = scmp.ne.s32.totalorder %s111, %s114
    %p123 = scmp.eq.s32.totalorder %s14, 1
    %p124 = por %p122, %p123
    %p125 = scmp.ne.s32.totalorder %s114, %s115
    %p126 = scmp.eq.s32.totalorder %s14, 0
    %p127 = por %p125, %p126
    %p128 = scmp.ne.s32.totalorder %s114, %s115
    %p129 = scmp.eq.s32.totalorder %s15, 1
    %p130 = por %p128, %p129
    %p132 = scmp.ne.s32.totalorder %s115, %s131
    %p133 = scmp.eq.s32.totalorder %s15, 0
    %p134 = por %p132, %p133
    %p135 = scmp.le.s32.totalorder 1, %s9
    %p136 = scmp.lt.s32.totalorder %s9, 3
    %p137 = pnand %p135, %p136
    %p138 = pneg %p137
    // Predicated region
    $region9: #{resnet_forward.6} parent=5 // pred_check
      _
    $region10: #{resnet_forward.6} parent=5 // pred_check_branch
      %140 = sbr.rel (%p137) target = $region12
    $region11: #{resnet_forward.6} parent=5 // pred_region
      %s141 = ssub.s32 %s9, 1
      // Predicated region
      $region13: #{resnet_forward.6} parent=11 // pred_check
        %p142 = pneg %p73
      $region14: #{resnet_forward.6} parent=11 // pred_check_branch
        %144 = sbr.rel (%p142) target = $region16
      $region15: #{resnet_forward.6} parent=11 // pred_region
        %p145 = scmp.lt.s32.totalorder %s19, 0
        %s146 = scalar_select %p145, %s19, 0
        %s147 = smul.addr %s146, 4
        %s148 = scalar_lea.vmem %s1, %s147
      $region16: #{resnet_forward.6} parent=11 // pred_fallthru
        _
      // Predicated region
      $region17: #{resnet_forward.6} parent=11 // pred_check
        %p149 = pneg %p99
      $region18: #{resnet_forward.6} parent=11 // pred_check_branch
        %151 = sbr.rel (%p149) target = $region20
      $region19: #{resnet_forward.6} parent=11 // pred_region
        %p152 = scmp.lt.s32.totalorder %s19, 0
        %s153 = scalar_select %p152, %s19, 0
        %s154 = scalar_lea.vmem %s2, %s153
      $region20: #{resnet_forward.6} parent=11 // pred_fallthru
        _
    $region12: #{resnet_forward.6} parent=5 // pred_fallthru
      _
    %p155 = scmp.lt.s32.totalorder %s9, 2
    // Predicated region
    $region21: #{resnet_forward.6} parent=5 // pred_check
      %p156 = pneg %p155
    $region22: #{resnet_forward.6} parent=5 // pred_check_branch
      %158 = sbr.rel (%p156) target = $region24
    $region23: #{resnet_forward.6} parent=5 // pred_region
      // Predicated region
      $region25: #{resnet_forward.6} parent=23 // pred_check
        %p159 = pneg %p41
      $region26: #{resnet_forward.6} parent=23 // pred_check_branch
        %161 = sbr.rel (%p159) target = $region28
      $region27: #{resnet_forward.6} parent=23 // pred_region
        %s162 = smul.u32 32, %s16
        %p163 = scmp.lt.s32.totalorder %s162, 63
        %s164 = scalar_select %p163, %s162, 63
        %s165 = smul.addr %s164, 2
        %s166 = smul.addr %s165, 4
        %s167 = scalar_lea.vmem %s0, %s166
        %s168 = smul.u32 32, %s16
      $region28: #{resnet_forward.6} parent=23 // pred_fallthru
        _
    $region24: #{resnet_forward.6} parent=5 // pred_fallthru
      _
    %p169 = scmp.le.s32.totalorder 1, %s9
    %p170 = scmp.lt.s32.totalorder %s9, 3
    %p171 = pnand %p169, %p170
    %p172 = pneg %p171
    // Predicated region
    $region29: #{resnet_forward.6} parent=5 // pred_check
      _
    $region30: #{resnet_forward.6} parent=5 // pred_check_branch
      %174 = sbr.rel (%p171) target = $region32
    $region31: #{resnet_forward.6} parent=5 // pred_region
      %s175 = ssub.s32 %s9, 1
      %s176 = smul.u32 32, %s18
      %p177 = scmp.lt.s32.totalorder %s176, 63
      %s178 = scalar_select %p177, %s176, 63
      %s179 = smul.addr %s178, 2
      %s180 = smul.addr %s179, 4
      %s181 = scalar_lea.vmem %s0, %s180
      %p182 = pneg %p47
      %p183 = pneg %p44
      %p184 = scmp.lt.s32.totalorder %s19, 0
      %s185 = scalar_select %p184, %s19, 0
      %s186 = smul.addr %s185, 4
      %s187 = scalar_lea.vmem %s1, %s186
      %p188 = pneg %p73
      %p189 = pneg %p70
      %p190 = scmp.lt.s32.totalorder %s19, 0
      %s191 = scalar_select %p190, %s19, 0
      %s192 = scalar_lea.vmem %s2, %s191
      %p193 = pneg %p99
      %p194 = pneg %p96
      %p195 = pneg %p127
      %p196 = pneg %p124
      %s197 = smul.u32 32, %s18
      %p198 = scmp.lt.s32.totalorder %s197, 63
      %s199 = scalar_select %p198, %s197, 63
      %p200 = scmp.lt.s32.totalorder %s19, 0
      %s201 = scalar_select %p200, %s19, 0
      %s202 = sadd.s32 %s201, %s199
      %s203 = smul.addr %s202, 4
      %s204 = scalar_lea.vmem %s3, %s203
      %s205 = smul.u32 32, %s18
      %p206 = scmp.lt.s32.totalorder %s205, 63
      %s207 = scalar_select %p206, %s205, 63
      %s208 = smul.addr %s207, 2
      %s209 = smul.addr %s208, 4
      %s210 = scalar_lea.vmem %s0, %s209
      %s211 = smul.u32 32, %s18
      %p212 = scmp.lt.s32.totalorder %s19, 0
      %s213 = scalar_select %p212, %s19, 0
      %s214 = smul.addr %s213, 4
      %s215 = scalar_lea.vmem %s1, %s214
      %p216 = scmp.lt.s32.totalorder %s19, 0
      %s217 = scalar_select %p216, %s19, 0
      %s218 = scalar_lea.vmem %s2, %s217
      %s219 = smul.u32 32, %s18
      %p220 = scmp.lt.s32.totalorder %s219, 63
      %s221 = scalar_select %p220, %s219, 63
      %p222 = scmp.lt.s32.totalorder %s19, 0
      %s223 = scalar_select %p222, %s19, 0
      %s224 = sadd.s32 %s223, %s221
      %s225 = smul.addr %s224, 4
      %s226 = scalar_lea.vmem %s3, %s225
      %s227 = smul.u32 32, %s18
      %v229 = vld [vmem:[%s210] sm:$0xff]
      %v230 = vld [vmem:[%s210 + $0x8] sm:$0xff]
      %v231 = vld [vmem:[%s210 + $0x10] sm:$0xff]
      %v232 = vld [vmem:[%s210 + $0x18] sm:$0xff]
      %v233 = vld [vmem:[%s210 + $0x20] sm:$0xff]
      %v234 = vld [vmem:[%s210 + $0x28] sm:$0xff]
      %v235 = vld [vmem:[%s210 + $0x30] sm:$0xff]
      %v236 = vld [vmem:[%s210 + $0x38] sm:$0xff]
      %v237 = vld [vmem:[%s210 + $0x40] sm:$0xff]
      %v238 = vld [vmem:[%s210 + $0x48] sm:$0xff]
      %v239 = vld [vmem:[%s210 + $0x50] sm:$0xff]
      %v240 = vld [vmem:[%s210 + $0x58] sm:$0xff]
      %v241 = vld [vmem:[%s210 + $0x60] sm:$0xff]
      %v242 = vld [vmem:[%s210 + $0x68] sm:$0xff]
      %v243 = vld [vmem:[%s210 + $0x70] sm:$0xff]
      %v244 = vld [vmem:[%s210 + $0x78] sm:$0xff]
      %v245 = vld [vmem:[%s210 + $0x80] sm:$0xff]
      %v246 = vld [vmem:[%s210 + $0x88] sm:$0xff]
      %v247 = vld [vmem:[%s210 + $0x90] sm:$0xff]
      %v248 = vld [vmem:[%s210 + $0x98] sm:$0xff]
      %v249 = vld [vmem:[%s210 + $0xa0] sm:$0xff]
      %v250 = vld [vmem:[%s210 + $0xa8] sm:$0xff]
      %v251 = vld [vmem:[%s210 + $0xb0] sm:$0xff]
      %v252 = vld [vmem:[%s210 + $0xb8] sm:$0xff]
      %v253 = vld [vmem:[%s210 + $0xc0] sm:$0xff]
      %v254 = vld [vmem:[%s210 + $0xc8] sm:$0xff]
      %v255 = vld [vmem:[%s210 + $0xd0] sm:$0xff]
      %v256 = vld [vmem:[%s210 + $0xd8] sm:$0xff]
      %v257 = vld [vmem:[%s210 + $0xe0] sm:$0xff]
      %v258 = vld [vmem:[%s210 + $0xe8] sm:$0xff]
      %v259 = vld [vmem:[%s210 + $0xf0] sm:$0xff]
      %v260 = vld [vmem:[%s210 + $0xf8] sm:$0xff]
      %v261 = vld [vmem:[%s215] sm:$0xf]
      %v262 = vld [vmem:[%s215 + $0x4] sm:$0xf]
      %v263 = vld [vmem:[%s215 + $0x8] sm:$0xf]
      %v264 = vld [vmem:[%s215 + $0xc] sm:$0xf]
      %v265 = vld [vmem:[%s215 + $0x10] sm:$0xf]
      %v266 = vld [vmem:[%s215 + $0x14] sm:$0xf]
      %v267 = vld [vmem:[%s215 + $0x18] sm:$0xf]
      %v268 = vld [vmem:[%s215 + $0x1c] sm:$0xf]
      %v269 = vld [vmem:[%s215 + $0x20] sm:$0xf]
      %v270 = vld [vmem:[%s215 + $0x24] sm:$0xf]
      %v271 = vld [vmem:[%s215 + $0x28] sm:$0xf]
      %v272 = vld [vmem:[%s215 + $0x2c] sm:$0xf]
      %v273 = vld [vmem:[%s215 + $0x30] sm:$0xf]
      %v274 = vld [vmem:[%s215 + $0x34] sm:$0xf]
      %v275 = vld [vmem:[%s215 + $0x38] sm:$0xf]
      %v276 = vld [vmem:[%s215 + $0x3c] sm:$0xf]
      %v277 = vld [vmem:[%s215 + $0x40] sm:$0xf]
      %v278 = vld [vmem:[%s215 + $0x44] sm:$0xf]
      %v279 = vld [vmem:[%s215 + $0x48] sm:$0xf]
      %v280 = vld [vmem:[%s215 + $0x4c] sm:$0xf]
      %v281 = vld [vmem:[%s215 + $0x50] sm:$0xf]
      %v282 = vld [vmem:[%s215 + $0x54] sm:$0xf]
      %v283 = vld [vmem:[%s215 + $0x58] sm:$0xf]
      %v284 = vld [vmem:[%s215 + $0x5c] sm:$0xf]
      %v285 = vld [vmem:[%s215 + $0x60] sm:$0xf]
      %v286 = vld [vmem:[%s215 + $0x64] sm:$0xf]
      %v287 = vld [vmem:[%s215 + $0x68] sm:$0xf]
      %v288 = vld [vmem:[%s215 + $0x6c] sm:$0xf]
      %v289 = vld [vmem:[%s215 + $0x70] sm:$0xf]
      %v290 = vld [vmem:[%s215 + $0x74] sm:$0xf]
      %v291 = vld [vmem:[%s215 + $0x78] sm:$0xf]
      %v292 = vld [vmem:[%s215 + $0x7c] sm:$0xf]
      %v293 = vld [vmem:[%s218] sm:$0x1]
      %v295 = vlaneseq
      %v296 = vshrl.u32 %v295, 7
      %v297 = vsub.s32 0, %v296
      %v298 = vrot.slane %v293, %v297
      %v332 = vunpack.c.l.b16 %v229
      %v333 = vunpack.c.h.b16 %v229
      %v334 = vunpack.c.l.b16 %v230
      %v335 = vunpack.c.h.b16 %v230
      %v336 = vunpack.c.l.b16 %v231
      %v337 = vunpack.c.h.b16 %v231
      %v338 = vunpack.c.l.b16 %v232
      %v339 = vunpack.c.h.b16 %v232
      %v340 = vunpack.c.l.b16 %v233
      %v341 = vunpack.c.h.b16 %v233
      %v342 = vunpack.c.l.b16 %v234
      %v343 = vunpack.c.h.b16 %v234
      %v344 = vunpack.c.l.b16 %v235
      %v345 = vunpack.c.h.b16 %v235
      %v346 = vunpack.c.l.b16 %v236
      %v347 = vunpack.c.h.b16 %v236
      %v348 = vunpack.c.l.b16 %v237
      %v349 = vunpack.c.h.b16 %v237
      %v350 = vunpack.c.l.b16 %v238
      %v351 = vunpack.c.h.b16 %v238
      %v352 = vunpack.c.l.b16 %v239
      %v353 = vunpack.c.h.b16 %v239
      %v354 = vunpack.c.l.b16 %v240
      %v355 = vunpack.c.h.b16 %v240
      %v356 = vunpack.c.l.b16 %v241
      %v357 = vunpack.c.h.b16 %v241
      %v358 = vunpack.c.l.b16 %v242
      %v359 = vunpack.c.h.b16 %v242
      %v360 = vunpack.c.l.b16 %v243
      %v361 = vunpack.c.h.b16 %v243
      %v362 = vunpack.c.l.b16 %v244
      %v363 = vunpack.c.h.b16 %v244
      %v364 = vunpack.c.l.b16 %v245
      %v365 = vunpack.c.h.b16 %v245
      %v366 = vunpack.c.l.b16 %v246
      %v367 = vunpack.c.h.b16 %v246
      %v368 = vunpack.c.l.b16 %v247
      %v369 = vunpack.c.h.b16 %v247
      %v370 = vunpack.c.l.b16 %v248
      %v371 = vunpack.c.h.b16 %v248
      %v372 = vunpack.c.l.b16 %v249
      %v373 = vunpack.c.h.b16 %v249
      %v374 = vunpack.c.l.b16 %v250
      %v375 = vunpack.c.h.b16 %v250
      %v376 = vunpack.c.l.b16 %v251
      %v377 = vunpack.c.h.b16 %v251
      %v378 = vunpack.c.l.b16 %v252
      %v379 = vunpack.c.h.b16 %v252
      %v380 = vunpack.c.l.b16 %v253
      %v381 = vunpack.c.h.b16 %v253
      %v382 = vunpack.c.l.b16 %v254
      %v383 = vunpack.c.h.b16 %v254
      %v384 = vunpack.c.l.b16 %v255
      %v385 = vunpack.c.h.b16 %v255
      %v386 = vunpack.c.l.b16 %v256
      %v387 = vunpack.c.h.b16 %v256
      %v388 = vunpack.c.l.b16 %v257
      %v389 = vunpack.c.h.b16 %v257
      %v390 = vunpack.c.l.b16 %v258
      %v391 = vunpack.c.h.b16 %v258
      %v392 = vunpack.c.l.b16 %v259
      %v393 = vunpack.c.h.b16 %v259
      %v394 = vunpack.c.l.b16 %v260
      %v395 = vunpack.c.h.b16 %v260
      %v396 = vpack.c.b16 %v334, %v332
      %v397 = vpack.c.b16 %v335, %v333
      %v398 = vpack.c.b16 %v338, %v336
      %v399 = vpack.c.b16 %v339, %v337
      %v400 = vpack.c.b16 %v342, %v340
      %v401 = vpack.c.b16 %v343, %v341
      %v402 = vpack.c.b16 %v346, %v344
      %v403 = vpack.c.b16 %v347, %v345
      %v404 = vpack.c.b16 %v350, %v348
      %v405 = vpack.c.b16 %v351, %v349
      %v406 = vpack.c.b16 %v354, %v352
      %v407 = vpack.c.b16 %v355, %v353
      %v408 = vpack.c.b16 %v358, %v356
      %v409 = vpack.c.b16 %v359, %v357
      %v410 = vpack.c.b16 %v362, %v360
      %v411 = vpack.c.b16 %v363, %v361
      %v412 = vpack.c.b16 %v366, %v364
      %v413 = vpack.c.b16 %v367, %v365
      %v414 = vpack.c.b16 %v370, %v368
      %v415 = vpack.c.b16 %v371, %v369
      %v416 = vpack.c.b16 %v374, %v372
      %v417 = vpack.c.b16 %v375, %v373
      %v418 = vpack.c.b16 %v378, %v376
      %v419 = vpack.c.b16 %v379, %v377
      %v420 = vpack.c.b16 %v382, %v380
      %v421 = vpack.c.b16 %v383, %v381
      %v422 = vpack.c.b16 %v386, %v384
      %v423 = vpack.c.b16 %v387, %v385
      %v424 = vpack.c.b16 %v390, %v388
      %v425 = vpack.c.b16 %v391, %v389
      %v426 = vpack.c.b16 %v394, %v392
      %v427 = vpack.c.b16 %v395, %v393
      %v492 = vunpack.c.l.b16 %v261
      %v493 = vunpack.c.l.b16 %v262
      %v494 = vunpack.c.l.b16 %v263
      %v495 = vunpack.c.l.b16 %v264
      %v496 = vunpack.c.l.b16 %v265
      %v497 = vunpack.c.l.b16 %v266
      %v498 = vunpack.c.l.b16 %v267
      %v499 = vunpack.c.l.b16 %v268
      %v500 = vunpack.c.l.b16 %v269
      %v501 = vunpack.c.l.b16 %v270
      %v502 = vunpack.c.l.b16 %v271
      %v503 = vunpack.c.l.b16 %v272
      %v504 = vunpack.c.l.b16 %v273
      %v505 = vunpack.c.l.b16 %v274
      %v506 = vunpack.c.l.b16 %v275
      %v507 = vunpack.c.l.b16 %v276
      %v508 = vunpack.c.l.b16 %v277
      %v509 = vunpack.c.l.b16 %v278
      %v510 = vunpack.c.l.b16 %v279
      %v511 = vunpack.c.l.b16 %v280
      %v512 = vunpack.c.l.b16 %v281
      %v513 = vunpack.c.l.b16 %v282
      %v514 = vunpack.c.l.b16 %v283
      %v515 = vunpack.c.l.b16 %v284
      %v516 = vunpack.c.l.b16 %v285
      %v517 = vunpack.c.l.b16 %v286
      %v518 = vunpack.c.l.b16 %v287
      %v519 = vunpack.c.l.b16 %v288
      %v520 = vunpack.c.l.b16 %v289
      %v521 = vunpack.c.l.b16 %v290
      %v522 = vunpack.c.l.b16 %v291
      %v523 = vunpack.c.l.b16 %v292
      %v524 = vpack.c.b16 %v493, %v492
      %v525 = vpack.c.b16 %v495, %v494
      %v526 = vpack.c.b16 %v497, %v496
      %v527 = vpack.c.b16 %v499, %v498
      %v528 = vpack.c.b16 %v501, %v500
      %v529 = vpack.c.b16 %v503, %v502
      %v530 = vpack.c.b16 %v505, %v504
      %v531 = vpack.c.b16 %v507, %v506
      %v532 = vpack.c.b16 %v509, %v508
      %v533 = vpack.c.b16 %v511, %v510
      %v534 = vpack.c.b16 %v513, %v512
      %v535 = vpack.c.b16 %v515, %v514
      %v536 = vpack.c.b16 %v517, %v516
      %v537 = vpack.c.b16 %v519, %v518
      %v538 = vpack.c.b16 %v521, %v520
      %v539 = vpack.c.b16 %v523, %v522
      %556 = vmatprep.subr.bf16.mxu0 0
      %557 = vmatpush1.bf16.msra.mxu0 %v524
      %558 = vmatprep.subr.bf16.mxu0 0
      %559 = vmatpush1.bf16.msra.mxu0 %v525
      %560 = vmatprep.subr.bf16.mxu0 0
      %561 = vmatpush1.bf16.msra.mxu0 %v526
      %562 = vmatprep.subr.bf16.mxu0 0
      %563 = vmatpush1.bf16.msra.mxu0 %v527
      %564 = vmatprep.subr.bf16.mxu0 0
      %565 = vmatpush1.bf16.msra.mxu0 %v528
      %566 = vmatprep.subr.bf16.mxu0 0
      %567 = vmatpush1.bf16.msra.mxu0 %v529
      %568 = vmatprep.subr.bf16.mxu0 0
      %569 = vmatpush1.bf16.msra.mxu0 %v530
      %570 = vmatprep.subr.bf16.mxu0 0
      %571 = vmatpush1.bf16.msra.mxu0 %v531
      %572 = vmatprep.subr.bf16.mxu0 0
      %573 = vmatpush1.bf16.msra.mxu0 %v532
      %574 = vmatprep.subr.bf16.mxu0 0
      %575 = vmatpush1.bf16.msra.mxu0 %v533
      %576 = vmatprep.subr.bf16.mxu0 0
      %577 = vmatpush1.bf16.msra.mxu0 %v534
      %578 = vmatprep.subr.bf16.mxu0 0
      %579 = vmatpush1.bf16.msra.mxu0 %v535
      %580 = vmatprep.subr.bf16.mxu0 0
      %581 = vmatpush1.bf16.msra.mxu0 %v536
      %582 = vmatprep.subr.bf16.mxu0 0
      %583 = vmatpush1.bf16.msra.mxu0 %v537
      %584 = vmatprep.subr.bf16.mxu0 0
      %585 = vmatpush1.bf16.msra.mxu0 %v538
      %586 = vmatprep.subr.bf16.mxu0 0
      %587 = vmatpush1.bf16.msra.mxu0 %v539
      %588 = vmatprep.mubr.bf16.mxu0 %v397
      %589 = vmatmul.mubr.bf16.gmra.mrb[0].mxu0 %v396
      %v590 = vpop.f32.mrb[0].mxu0
      %v591 = vadd.f32 %v298, %v590
      %v592 = vpop.f32.mrb[0].mxu0
      %v593 = vpop.f32.mrb[0].mxu0
      %v594 = vadd.f32 %v298, %v593
      %v595 = vpop.f32.mrb[0].mxu0
      %596 = vmatprep.mubr.bf16.mxu0 %v399
      %597 = vmatmul.mubr.bf16.gmra.mrb[0].mxu0 %v398
      %v598 = vpop.f32.mrb[0].mxu0
      %v599 = vadd.f32 %v298, %v598
      %v600 = vpop.f32.mrb[0].mxu0
      %v601 = vpop.f32.mrb[0].mxu0
      %v602 = vadd.f32 %v298, %v601
      %v603 = vpop.f32.mrb[0].mxu0
      %604 = vmatprep.mubr.bf16.mxu0 %v401
      %605 = vmatmul.mubr.bf16.gmra.mrb[0].mxu0 %v400
      %v606 = vpop.f32.mrb[0].mxu0
      %v607 = vadd.f32 %v298, %v606
      %v608 = vpop.f32.mrb[0].mxu0
      %v609 = vpop.f32.mrb[0].mxu0
      %v610 = vadd.f32 %v298, %v609
      %v611 = vpop.f32.mrb[0].mxu0
      %612 = vmatprep.mubr.bf16.mxu0 %v403
      %613 = vmatmul.mubr.bf16.gmra.mrb[0].mxu0 %v402
      %v614 = vpop.f32.mrb[0].mxu0
      %v615 = vadd.f32 %v298, %v614
      %v616 = vpop.f32.mrb[0].mxu0
      %v617 = vpop.f32.mrb[0].mxu0
      %v618 = vadd.f32 %v298, %v617
      %v619 = vpop.f32.mrb[0].mxu0
      %620 = vmatprep.mubr.bf16.mxu0 %v405
      %621 = vmatmul.mubr.bf16.gmra.mrb[0].mxu0 %v404
      %v622 = vpop.f32.mrb[0].mxu0
      %v623 = vadd.f32 %v298, %v622
      %v624 = vpop.f32.mrb[0].mxu0
      %v625 = vpop.f32.mrb[0].mxu0
      %v626 = vadd.f32 %v298, %v625
      %v627 = vpop.f32.mrb[0].mxu0
      %628 = vmatprep.mubr.bf16.mxu0 %v407
      %629 = vmatmul.mubr.bf16.gmra.mrb[0].mxu0 %v406
      %v630 = vpop.f32.mrb[0].mxu0
      %v631 = vadd.f32 %v298, %v630
      %v632 = vpop.f32.mrb[0].mxu0
      %v633 = vpop.f32.mrb[0].mxu0
      %v634 = vadd.f32 %v298, %v633
      %v635 = vpop.f32.mrb[0].mxu0
      %636 = vmatprep.mubr.bf16.mxu0 %v409
      %637 = vmatmul.mubr.bf16.gmra.mrb[0].mxu0 %v408
      %v638 = vpop.f32.mrb[0].mxu0
      %v639 = vadd.f32 %v298, %v638
      %v640 = vpop.f32.mrb[0].mxu0
      %v641 = vpop.f32.mrb[0].mxu0
      %v642 = vadd.f32 %v298, %v641
      %v643 = vpop.f32.mrb[0].mxu0
      %644 = vmatprep.mubr.bf16.mxu0 %v411
      %645 = vmatmul.mubr.bf16.gmra.mrb[0].mxu0 %v410
      %v646 = vpop.f32.mrb[0].mxu0
      %v647 = vadd.f32 %v298, %v646
      %v648 = vpop.f32.mrb[0].mxu0
      %v649 = vpop.f32.mrb[0].mxu0
      %v650 = vadd.f32 %v298, %v649
      %v651 = vpop.f32.mrb[0].mxu0
      %652 = vmatprep.mubr.bf16.mxu0 %v413
      %653 = vmatmul.mubr.bf16.gmra.mrb[0].mxu0 %v412
      %v654 = vpop.f32.mrb[0].mxu0
      %v655 = vadd.f32 %v298, %v654
      %v656 = vpop.f32.mrb[0].mxu0
      %v657 = vpop.f32.mrb[0].mxu0
      %v658 = vadd.f32 %v298, %v657
      %v659 = vpop.f32.mrb[0].mxu0
      %660 = vmatprep.mubr.bf16.mxu0 %v415
      %661 = vmatmul.mubr.bf16.gmra.mrb[0].mxu0 %v414
      %v662 = vpop.f32.mrb[0].mxu0
      %v663 = vadd.f32 %v298, %v662
      %v664 = vpop.f32.mrb[0].mxu0
      %v665 = vpop.f32.mrb[0].mxu0
      %v666 = vadd.f32 %v298, %v665
      %v667 = vpop.f32.mrb[0].mxu0
      %668 = vmatprep.mubr.bf16.mxu0 %v417
      %669 = vmatmul.mubr.bf16.gmra.mrb[0].mxu0 %v416
      %v670 = vpop.f32.mrb[0].mxu0
      %v671 = vadd.f32 %v298, %v670
      %v672 = vpop.f32.mrb[0].mxu0
      %v673 = vpop.f32.mrb[0].mxu0
      %v674 = vadd.f32 %v298, %v673
      %v675 = vpop.f32.mrb[0].mxu0
      %676 = vmatprep.mubr.bf16.mxu0 %v419
      %677 = vmatmul.mubr.bf16.gmra.mrb[0].mxu0 %v418
      %v678 = vpop.f32.mrb[0].mxu0
      %v679 = vadd.f32 %v298, %v678
      %v680 = vpop.f32.mrb[0].mxu0
      %v681 = vpop.f32.mrb[0].mxu0
      %v682 = vadd.f32 %v298, %v681
      %v683 = vpop.f32.mrb[0].mxu0
      %684 = vmatprep.mubr.bf16.mxu0 %v421
      %685 = vmatmul.mubr.bf16.gmra.mrb[0].mxu0 %v420
      %v686 = vpop.f32.mrb[0].mxu0
      %v687 = vadd.f32 %v298, %v686
      %v688 = vpop.f32.mrb[0].mxu0
      %v689 = vpop.f32.mrb[0].mxu0
      %v690 = vadd.f32 %v298, %v689
      %v691 = vpop.f32.mrb[0].mxu0
      %692 = vmatprep.mubr.bf16.mxu0 %v423
      %693 = vmatmul.mubr.bf16.gmra.mrb[0].mxu0 %v422
      %v694 = vpop.f32.mrb[0].mxu0
      %v695 = vadd.f32 %v298, %v694
      %v696 = vpop.f32.mrb[0].mxu0
      %v697 = vpop.f32.mrb[0].mxu0
      %v698 = vadd.f32 %v298, %v697
      %v699 = vpop.f32.mrb[0].mxu0
      %700 = vmatprep.mubr.bf16.mxu0 %v425
      %701 = vmatmul.mubr.bf16.gmra.mrb[0].mxu0 %v424
      %v702 = vpop.f32.mrb[0].mxu0
      %v703 = vadd.f32 %v298, %v702
      %v704 = vpop.f32.mrb[0].mxu0
      %v705 = vpop.f32.mrb[0].mxu0
      %v706 = vadd.f32 %v298, %v705
      %v707 = vpop.f32.mrb[0].mxu0
      %708 = vmatprep.mubr.bf16.mxu0 %v427
      %709 = vmatmul.mubr.bf16.gmra.mrb[0].mxu0 %v426
      %v710 = vpop.f32.mrb[0].mxu0
      %v711 = vadd.f32 %v298, %v710
      %v712 = vpop.f32.mrb[0].mxu0
      %v713 = vpop.f32.mrb[0].mxu0
      %v714 = vadd.f32 %v298, %v713
      %v715 = vpop.f32.mrb[0].mxu0
      %716 = vdwg.mxu0
      %v717 = vmax.f32 %v591, 0.0
      %v718 = vmax.f32 %v594, 0.0
      %v719 = vmax.f32 %v599, 0.0
      %v720 = vmax.f32 %v602, 0.0
      %v721 = vmax.f32 %v607, 0.0
      %v722 = vmax.f32 %v610, 0.0
      %v723 = vmax.f32 %v615, 0.0
      %v724 = vmax.f32 %v618, 0.0
      %v725 = vmax.f32 %v623, 0.0
      %v726 = vmax.f32 %v626, 0.0
      %v727 = vmax.f32 %v631, 0.0
      %v728 = vmax.f32 %v634, 0.0
      %v729 = vmax.f32 %v639, 0.0
      %v730 = vmax.f32 %v642, 0.0
      %v731 = vmax.f32 %v647, 0.0
      %v732 = vmax.f32 %v650, 0.0
      %v733 = vmax.f32 %v655, 0.0
      %v734 = vmax.f32 %v658, 0.0
      %v735 = vmax.f32 %v663, 0.0
      %v736 = vmax.f32 %v666, 0.0
      %v737 = vmax.f32 %v671, 0.0
      %v738 = vmax.f32 %v674, 0.0
      %v739 = vmax.f32 %v679, 0.0
      %v740 = vmax.f32 %v682, 0.0
      %v741 = vmax.f32 %v687, 0.0
      %v742 = vmax.f32 %v690, 0.0
      %v743 = vmax.f32 %v695, 0.0
      %v744 = vmax.f32 %v698, 0.0
      %v745 = vmax.f32 %v703, 0.0
      %v746 = vmax.f32 %v706, 0.0
      %v747 = vmax.f32 %v711, 0.0
      %v748 = vmax.f32 %v714, 0.0
      %v749 = vpack.c.bf16 %v718, %v717
      %v750 = vpack.c.bf16 %v720, %v719
      %v751 = vpack.c.bf16 %v722, %v721
      %v752 = vpack.c.bf16 %v724, %v723
      %v753 = vpack.c.bf16 %v726, %v725
      %v754 = vpack.c.bf16 %v728, %v727
      %v755 = vpack.c.bf16 %v730, %v729
      %v756 = vpack.c.bf16 %v732, %v731
      %v757 = vpack.c.bf16 %v734, %v733
      %v758 = vpack.c.bf16 %v736, %v735
      %v759 = vpack.c.bf16 %v738, %v737
      %v760 = vpack.c.bf16 %v740, %v739
      %v761 = vpack.c.bf16 %v742, %v741
      %v762 = vpack.c.bf16 %v744, %v743
      %v763 = vpack.c.bf16 %v746, %v745
      %v764 = vpack.c.bf16 %v748, %v747
      %v781 = vunpack.c.l.b16 %v749
      %v782 = vunpack.c.h.b16 %v749
      %v783 = vunpack.c.l.b16 %v750
      %v784 = vunpack.c.h.b16 %v750
      %v785 = vunpack.c.l.b16 %v751
      %v786 = vunpack.c.h.b16 %v751
      %v787 = vunpack.c.l.b16 %v752
      %v788 = vunpack.c.h.b16 %v752
      %v789 = vunpack.c.l.b16 %v753
      %v790 = vunpack.c.h.b16 %v753
      %v791 = vunpack.c.l.b16 %v754
      %v792 = vunpack.c.h.b16 %v754
      %v793 = vunpack.c.l.b16 %v755
      %v794 = vunpack.c.h.b16 %v755
      %v795 = vunpack.c.l.b16 %v756
      %v796 = vunpack.c.h.b16 %v756
      %v797 = vunpack.c.l.b16 %v757
      %v798 = vunpack.c.h.b16 %v757
      %v799 = vunpack.c.l.b16 %v758
      %v800 = vunpack.c.h.b16 %v758
      %v801 = vunpack.c.l.b16 %v759
      %v802 = vunpack.c.h.b16 %v759
      %v803 = vunpack.c.l.b16 %v760
      %v804 = vunpack.c.h.b16 %v760
      %v805 = vunpack.c.l.b16 %v761
      %v806 = vunpack.c.h.b16 %v761
      %v807 = vunpack.c.l.b16 %v762
      %v808 = vunpack.c.h.b16 %v762
      %v809 = vunpack.c.l.b16 %v763
      %v810 = vunpack.c.h.b16 %v763
      %v811 = vunpack.c.l.b16 %v764
      %v812 = vunpack.c.h.b16 %v764
      %v813 = vpack.c.b16 %v781, %v781
      %v814 = vpack.c.b16 %v782, %v782
      %v815 = vpack.c.b16 %v783, %v783
      %v816 = vpack.c.b16 %v784, %v784
      %v817 = vpack.c.b16 %v785, %v785
      %v818 = vpack.c.b16 %v786, %v786
      %v819 = vpack.c.b16 %v787, %v787
      %v820 = vpack.c.b16 %v788, %v788
      %v821 = vpack.c.b16 %v789, %v789
      %v822 = vpack.c.b16 %v790, %v790
      %v823 = vpack.c.b16 %v791, %v791
      %v824 = vpack.c.b16 %v792, %v792
      %v825 = vpack.c.b16 %v793, %v793
      %v826 = vpack.c.b16 %v794, %v794
      %v827 = vpack.c.b16 %v795, %v795
      %v828 = vpack.c.b16 %v796, %v796
      %v829 = vpack.c.b16 %v797, %v797
      %v830 = vpack.c.b16 %v798, %v798
      %v831 = vpack.c.b16 %v799, %v799
      %v832 = vpack.c.b16 %v800, %v800
      %v833 = vpack.c.b16 %v801, %v801
      %v834 = vpack.c.b16 %v802, %v802
      %v835 = vpack.c.b16 %v803, %v803
      %v836 = vpack.c.b16 %v804, %v804
      %v837 = vpack.c.b16 %v805, %v805
      %v838 = vpack.c.b16 %v806, %v806
      %v839 = vpack.c.b16 %v807, %v807
      %v840 = vpack.c.b16 %v808, %v808
      %v841 = vpack.c.b16 %v809, %v809
      %v842 = vpack.c.b16 %v810, %v810
      %v843 = vpack.c.b16 %v811, %v811
      %v844 = vpack.c.b16 %v812, %v812
      %877 = vst [vmem:[%s226] sm:$0xf] %v813
      %878 = vst [vmem:[%s226 + $0x4] sm:$0xf] %v814
      %879 = vst [vmem:[%s226 + $0x8] sm:$0xf] %v815
      %880 = vst [vmem:[%s226 + $0xc] sm:$0xf] %v816
      %881 = vst [vmem:[%s226 + $0x10] sm:$0xf] %v817
      %882 = vst [vmem:[%s226 + $0x14] sm:$0xf] %v818
      %883 = vst [vmem:[%s226 + $0x18] sm:$0xf] %v819
      %884 = vst [vmem:[%s226 + $0x1c] sm:$0xf] %v820
      %885 = vst [vmem:[%s226 + $0x20] sm:$0xf] %v821
      %886 = vst [vmem:[%s226 + $0x24] sm:$0xf] %v822
      %887 = vst [vmem:[%s226 + $0x28] sm:$0xf] %v823
      %888 = vst [vmem:[%s226 + $0x2c] sm:$0xf] %v824
      %889 = vst [vmem:[%s226 + $0x30] sm:$0xf] %v825
      %890 = vst [vmem:[%s226 + $0x34] sm:$0xf] %v826
      %891 = vst [vmem:[%s226 + $0x38] sm:$0xf] %v827
      %892 = vst [vmem:[%s226 + $0x3c] sm:$0xf] %v828
      %893 = vst [vmem:[%s226 + $0x40] sm:$0xf] %v829
      %894 = vst [vmem:[%s226 + $0x44] sm:$0xf] %v830
      %895 = vst [vmem:[%s226 + $0x48] sm:$0xf] %v831
      %896 = vst [vmem:[%s226 + $0x4c] sm:$0xf] %v832
      %897 = vst [vmem:[%s226 + $0x50] sm:$0xf] %v833
      %898 = vst [vmem:[%s226 + $0x54] sm:$0xf] %v834
      %899 = vst [vmem:[%s226 + $0x58] sm:$0xf] %v835
      %900 = vst [vmem:[%s226 + $0x5c] sm:$0xf] %v836
      %901 = vst [vmem:[%s226 + $0x60] sm:$0xf] %v837
      %902 = vst [vmem:[%s226 + $0x64] sm:$0xf] %v838
      %903 = vst [vmem:[%s226 + $0x68] sm:$0xf] %v839
      %904 = vst [vmem:[%s226 + $0x6c] sm:$0xf] %v840
      %905 = vst [vmem:[%s226 + $0x70] sm:$0xf] %v841
      %906 = vst [vmem:[%s226 + $0x74] sm:$0xf] %v842
      %907 = vst [vmem:[%s226 + $0x78] sm:$0xf] %v843
      %908 = vst [vmem:[%s226 + $0x7c] sm:$0xf] %v844
      %s909 = smul.u32 32, %s18
      %p910 = scmp.lt.s32.totalorder %s909, 63
      %s911 = scalar_select %p910, %s909, 63
      %p912 = scmp.lt.s32.totalorder %s19, 0
      %s913 = scalar_select %p912, %s19, 0
      %s914 = sadd.s32 %s913, %s911
      %s915 = smul.addr %s914, 4
      %s916 = scalar_lea.vmem %s3, %s915
      // Predicated region
      $region33: #{resnet_forward.6} parent=31 // pred_check
        %p917 = pneg %p124
      $region34: #{resnet_forward.6} parent=31 // pred_check_branch
        %919 = sbr.rel (%p917) target = $region36
      $region35: #{resnet_forward.6} parent=31 // pred_region
        %s920 = smul.u32 32, %s18
      $region36: #{resnet_forward.6} parent=31 // pred_fallthru
        _
    $region32: #{resnet_forward.6} parent=5 // pred_fallthru
      _
    %p921 = scmp.le.s32.totalorder 2, %s9
    // Predicated region
    $region37: #{resnet_forward.6} parent=5 // pred_check
      %p922 = pneg %p921
    $region38: #{resnet_forward.6} parent=5 // pred_check_branch
      %924 = sbr.rel (%p922) target = $region40
    $region39: #{resnet_forward.6} parent=5 // pred_region
      %s925 = ssub.s32 %s9, 2
      // Predicated region
      $region41: #{resnet_forward.6} parent=39 // pred_check
        %p926 = pneg %p130
      $region42: #{resnet_forward.6} parent=39 // pred_check_branch
        %928 = sbr.rel (%p926) target = $region44
      $region43: #{resnet_forward.6} parent=39 // pred_region
        %s929 = smul.u32 32, %s20
        %p930 = scmp.lt.s32.totalorder %s929, 63
        %s931 = scalar_select %p930, %s929, 63
        %p932 = scmp.lt.s32.totalorder %s21, 0
        %s933 = scalar_select %p932, %s21, 0
        %s934 = sadd.s32 %s933, %s931
        %s935 = smul.addr %s934, 4
        %s936 = scalar_lea.vmem %s3, %s935
      $region44: #{resnet_forward.6} parent=39 // pred_fallthru
        _
    $region40: #{resnet_forward.6} parent=5 // pred_fallthru
      _
  $region6: #{resnet_forward.6} parent=0 // loop_footer
    %s13 = sadd.s32 1, %s9
  $region7: #{resnet_forward.6} parent=0 // loop_footer_branch
    %8 = sbr.rel target = $region3
  $region8: #{resnet_forward.6} parent=0 // loop_exit
    _

// kernel: resnet_forward.7
$region0: #{resnet_forward.7}
  #allocation0 [shape = 'u32[]', space=smem, size = 0x4, offset = 0x4, fixed_abs, tag = 'smem constant byte address 0x4 - core index']
  #allocation1 [shape = 'u32[144,128]{1,0:T(1,128)}', space=vmem, size = 0x12000, scoped, tag = 'internal scratch']
  %s0 = inlined_call_operand.vmem [shape: bf16[128,640], index: 0, kind: input, shape index: {}]
  %s1 = inlined_call_operand.vmem [shape: bf16[640,128], index: 1, kind: input, shape index: {}]
  %s2 = inlined_call_operand.vmem [shape: f32[1,128], index: 2, kind: input, shape index: {}]
  %s3 = inlined_call_operand.vmem [shape: bf16[128,128], index: 3, kind: output, shape index: {}]
  %s4 = sld [smem:[#allocation0]]
  $region45: #{resnet_forward.7} parent=0
    _
  %s6 = ssub.s32 1, %s4
  %s7 = scalar_select 0, %s6, %s4
  loop: start=0, step=1, limit=4
  $region2: #{resnet_forward.7} parent=0 // loop_pre_header
    _
  $region3: #{resnet_forward.7} parent=0 // loop_header
    %s9 = sphi 0, %s13
    %p10 = scmp.ge.s32.totalorder %s9, 4
    %s16 = sphi 0, %s28
    %s17 = sphi 0, %s24
    %s18 = sphi 0, %s16
    %s19 = sphi 0, %s17
    %s20 = sphi 0, %s18
    %s21 = sphi 0, %s19
    %s31 = sphi 0, %s33
    %s34 = sphi 0, %s31
    %s35 = sphi 0, %s34
    %s51 = sphi 0, %s35
    %s57 = sphi 0, %s59
    %s60 = sphi 0, %s57
    %s61 = sphi 0, %s60
    %s77 = sphi 0, %s61
    %s83 = sphi 0, %s85
    %s86 = sphi 0, %s83
    %s87 = sphi 0, %s86
    %s103 = sphi 0, %s87
    %s111 = sphi 0, %s113
    %s114 = sphi 0, %s111
    %s115 = sphi 0, %s114
    %s131 = sphi 0, %s115
  $region4: #{resnet_forward.7} parent=0 // loop_header_branch
    %12 = sbr.rel (%p10) target = $region8
  $region5: #{resnet_forward.7} parent=0 // loop_body
    %s14 = ssub.s32 %s9, 1
    %s15 = ssub.s32 %s9, 2
    %s22 = sadd.s32 1, %s17
    %p23 = scmp.ge.s32.totalorder %s22, 1
    %s24 = scalar_select %p23, 0, %s22
    %s25 = sadd.s32 1, %s16
    %s26 = scalar_select %p23, %s25, %s16
    %p27 = scmp.ge.s32.totalorder %s26, 2
    %s28 = scalar_select %p27, 0, %s26
    %s29 = ssub.s32 %s16, %s28
    %p30 = scmp.eq.s32.totalorder %s29, 0
    %s32 = sadd.s32 %s31, 1
    %s33 = scalar_select %p30, %s31, %s32
    %p36 = pneg %p30
    %p37 = scmp.eq.s32.totalorder %s9, 1
    %p38 = por %p36, %p37
    %p39 = scmp.ne.s32.totalorder %s31, %s34
    %p40 = scmp.eq.s32.totalorder %s9, 0
    %p41 = por %p39, %p40
    %p42 = scmp.ne.s32.totalorder %s31, %s34
    %p43 = scmp.eq.s32.totalorder %s14, 1
    %p44 = por %p42, %p43
    %p45 = scmp.ne.s32.totalorder %s34, %s35
    %p46 = scmp.eq.s32.totalorder %s14, 0
    %p47 = por %p45, %p46
    %p48 = scmp.ne.s32.totalorder %s34, %s35
    %p49 = scmp.eq.s32.totalorder %s15, 1
    %p50 = por %p48, %p49
    %p52 = scmp.ne.s32.totalorder %s35, %s51
    %p53 = scmp.eq.s32.totalorder %s15, 0
    %p54 = por %p52, %p53
    %s55 = ssub.s32 %s17, %s24
    %p56 = scmp.eq.s32.totalorder %s55, 0
    %s58 = sadd.s32 %s57, 1
    %s59 = scalar_select %p56, %s57, %s58
    %p62 = pneg %p56
    %p63 = scmp.eq.s32.totalorder %s9, 1
    %p64 = por %p62, %p63
    %p65 = scmp.ne.s32.totalorder %s57, %s60
    %p66 = scmp.eq.s32.totalorder %s9, 0
    %p67 = por %p65, %p66
    %p68 = scmp.ne.s32.totalorder %s57, %s60
    %p69 = scmp.eq.s32.totalorder %s14, 1
    %p70 = por %p68, %p69
    %p71 = scmp.ne.s32.totalorder %s60, %s61
    %p72 = scmp.eq.s32.totalorder %s14, 0
    %p73 = por %p71, %p72
    %p74 = scmp.ne.s32.totalorder %s60, %s61
    %p75 = scmp.eq.s32.totalorder %s15, 1
    %p76 = por %p74, %p75
    %p78 = scmp.ne.s32.totalorder %s61, %s77
    %p79 = scmp.eq.s32.totalorder %s15, 0
    %p80 = por %p78, %p79
    %s81 = ssub.s32 %s17, %s24
    %p82 = scmp.eq.s32.totalorder %s81, 0
    %s84 = sadd.s32 %s83, 1
    %s85 = scalar_select %p82, %s83, %s84
    %p88 = pneg %p82
    %p89 = scmp.eq.s32.totalorder %s9, 1
    %p90 = por %p88, %p89
    %p91 = scmp.ne.s32.totalorder %s83, %s86
    %p92 = scmp.eq.s32.totalorder %s9, 0
    %p93 = por %p91, %p92
    %p94 = scmp.ne.s32.totalorder %s83, %s86
    %p95 = scmp.eq.s32.totalorder %s14, 1
    %p96 = por %p94, %p95
    %p97 = scmp.ne.s32.totalorder %s86, %s87
    %p98 = scmp.eq.s32.totalorder %s14, 0
    %p99 = por %p97, %p98
    %p100 = scmp.ne.s32.totalorder %s86, %s87
    %p101 = scmp.eq.s32.totalorder %s15, 1
    %p102 = por %p100, %p101
    %p104 = scmp.ne.s32.totalorder %s87, %s103
    %p105 = scmp.eq.s32.totalorder %s15, 0
    %p106 = por %p104, %p105
    %s107 = ssub.s32 %s16, %s28
    %s108 = ssub.s32 %s17, %s24
    %s109 = sor.u32 %s107, %s108
    %p110 = scmp.eq.s32.totalorder %s109, 0
    %s112 = sadd.s32 %s111, 1
    %s113 = scalar_select %p110, %s111, %s112
    %p116 = pneg %p110
    %p117 = scmp.eq.s32.totalorder %s9, 1
    %p118 = por %p116, %p117
    %p119 = scmp.ne.s32.totalorder %s111, %s114
    %p120 = scmp.eq.s32.totalorder %s9, 0
    %p121 = por %p119, %p120
    %p122 = scmp.ne.s32.totalorder %s111, %s114
    %p123 = scmp.eq.s32.totalorder %s14, 1
    %p124 = por %p122, %p123
    %p125 = scmp.ne.s32.totalorder %s114, %s115
    %p126 = scmp.eq.s32.totalorder %s14, 0
    %p127 = por %p125, %p126
    %p128 = scmp.ne.s32.totalorder %s114, %s115
    %p129 = scmp.eq.s32.totalorder %s15, 1
    %p130 = por %p128, %p129
    %p132 = scmp.ne.s32.totalorder %s115, %s131
    %p133 = scmp.eq.s32.totalorder %s15, 0
    %p134 = por %p132, %p133
    %p135 = scmp.le.s32.totalorder 1, %s9
    %p136 = scmp.lt.s32.totalorder %s9, 3
    %p137 = pnand %p135, %p136
    %p138 = pneg %p137
    // Predicated region
    $region9: #{resnet_forward.7} parent=5 // pred_check
      _
    $region10: #{resnet_forward.7} parent=5 // pred_check_branch
      %140 = sbr.rel (%p137) target = $region12
    $region11: #{resnet_forward.7} parent=5 // pred_region
      %s141 = ssub.s32 %s9, 1
      // Predicated region
      $region13: #{resnet_forward.7} parent=11 // pred_check
        %p142 = pneg %p73
      $region14: #{resnet_forward.7} parent=11 // pred_check_branch
        %144 = sbr.rel (%p142) target = $region16
      $region15: #{resnet_forward.7} parent=11 // pred_region
        %p145 = scmp.lt.s32.totalorder %s19, 0
        %s146 = scalar_select %p145, %s19, 0
        %s147 = smul.addr %s146, 4
        %s148 = scalar_lea.vmem %s1, %s147
      $region16: #{resnet_forward.7} parent=11 // pred_fallthru
        _
      // Predicated region
      $region17: #{resnet_forward.7} parent=11 // pred_check
        %p149 = pneg %p99
      $region18: #{resnet_forward.7} parent=11 // pred_check_branch
        %151 = sbr.rel (%p149) target = $region20
      $region19: #{resnet_forward.7} parent=11 // pred_region
        %p152 = scmp.lt.s32.totalorder %s19, 0
        %s153 = scalar_select %p152, %s19, 0
        %s154 = scalar_lea.vmem %s2, %s153
      $region20: #{resnet_forward.7} parent=11 // pred_fallthru
        _
    $region12: #{resnet_forward.7} parent=5 // pred_fallthru
      _
    %p155 = scmp.lt.s32.totalorder %s9, 2
    // Predicated region
    $region21: #{resnet_forward.7} parent=5 // pred_check
      %p156 = pneg %p155
    $region22: #{resnet_forward.7} parent=5 // pred_check_branch
      %158 = sbr.rel (%p156) target = $region24
    $region23: #{resnet_forward.7} parent=5 // pred_region
      // Predicated region
      $region25: #{resnet_forward.7} parent=23 // pred_check
        %p159 = pneg %p41
      $region26: #{resnet_forward.7} parent=23 // pred_check_branch
        %161 = sbr.rel (%p159) target = $region28
      $region27: #{resnet_forward.7} parent=23 // pred_region
        %s162 = smul.u32 8, %s16
        %p163 = scmp.lt.s32.totalorder %s162, 15
        %s164 = scalar_select %p163, %s162, 15
        %s165 = smul.addr %s164, 5
        %s166 = smul.addr %s165, 4
        %s167 = scalar_lea.vmem %s0, %s166
        %s168 = smul.u32 8, %s16
      $region28: #{resnet_forward.7} parent=23 // pred_fallthru
        _
    $region24: #{resnet_forward.7} parent=5 // pred_fallthru
      _
    %p169 = scmp.le.s32.totalorder 1, %s9
    %p170 = scmp.lt.s32.totalorder %s9, 3
    %p171 = pnand %p169, %p170
    %p172 = pneg %p171
    // Predicated region
    $region29: #{resnet_forward.7} parent=5 // pred_check
      _
    $region30: #{resnet_forward.7} parent=5 // pred_check_branch
      %174 = sbr.rel (%p171) target = $region32
    $region31: #{resnet_forward.7} parent=5 // pred_region
      %s175 = ssub.s32 %s9, 1
      %s176 = smul.u32 8, %s18
      %p177 = scmp.lt.s32.totalorder %s176, 15
      %s178 = scalar_select %p177, %s176, 15
      %s179 = smul.addr %s178, 5
      %s180 = smul.addr %s179, 4
      %s181 = scalar_lea.vmem %s0, %s180
      %p182 = pneg %p47
      %p183 = pneg %p44
      %p184 = scmp.lt.s32.totalorder %s19, 0
      %s185 = scalar_select %p184, %s19, 0
      %s186 = smul.addr %s185, 4
      %s187 = scalar_lea.vmem %s1, %s186
      %p188 = pneg %p73
      %p189 = pneg %p70
      %p190 = scmp.lt.s32.totalorder %s19, 0
      %s191 = scalar_select %p190, %s19, 0
      %s192 = scalar_lea.vmem %s2, %s191
      %p193 = pneg %p99
      %p194 = pneg %p96
      %p195 = pneg %p127
      %p196 = pneg %p124
      %s197 = smul.u32 8, %s18
      %p198 = scmp.lt.s32.totalorder %s197, 15
      %s199 = scalar_select %p198, %s197, 15
      %p200 = scmp.lt.s32.totalorder %s19, 0
      %s201 = scalar_select %p200, %s19, 0
      %s202 = sadd.s32 %s201, %s199
      %s203 = smul.addr %s202, 4
      %s204 = scalar_lea.vmem %s3, %s203
      %s205 = smul.u32 8, %s18
      %p206 = scmp.lt.s32.totalorder %s205, 15
      %s207 = scalar_select %p206, %s205, 15
      %s208 = smul.addr %s207, 5
      %s209 = smul.addr %s208, 4
      %s210 = scalar_lea.vmem %s0, %s209
      %s211 = smul.u32 8, %s18
      %p212 = scmp.lt.s32.totalorder %s19, 0
      %s213 = scalar_select %p212, %s19, 0
      %s214 = smul.addr %s213, 4
      %s215 = scalar_lea.vmem %s1, %s214
      %p216 = scmp.lt.s32.totalorder %s19, 0
      %s217 = scalar_select %p216, %s19, 0
      %s218 = scalar_lea.vmem %s2, %s217
      %s219 = smul.u32 8, %s18
      %p220 = scmp.lt.s32.totalorder %s219, 15
      %s221 = scalar_select %p220, %s219, 15
      %p222 = scmp.lt.s32.totalorder %s19, 0
      %s223 = scalar_select %p222, %s19, 0
      %s224 = sadd.s32 %s223, %s221
      %s225 = smul.addr %s224, 4
      %s226 = scalar_lea.vmem %s3, %s225
      %s227 = smul.u32 8, %s18
      %v229 = vld [vmem:[%s210] sm:$0xff]
      %v230 = vld [vmem:[%s210 + $0x8] sm:$0xff]
      %v231 = vld [vmem:[%s210 + $0x10] sm:$0xf]
      %v232 = vld [vmem:[%s210 + $0x14] sm:$0xff]
      %v233 = vld [vmem:[%s210 + $0x1c] sm:$0xff]
      %v234 = vld [vmem:[%s210 + $0x24] sm:$0xf]
      %v235 = vld [vmem:[%s210 + $0x28] sm:$0xff]
      %v236 = vld [vmem:[%s210 + $0x30] sm:$0xff]
      %v237 = vld [vmem:[%s210 + $0x38] sm:$0xf]
      %v238 = vld [vmem:[%s210 + $0x3c] sm:$0xff]
      %v239 = vld [vmem:[%s210 + $0x44] sm:$0xff]
      %v240 = vld [vmem:[%s210 + $0x4c] sm:$0xf]
      %v241 = vld [vmem:[%s210 + $0x50] sm:$0xff]
      %v242 = vld [vmem:[%s210 + $0x58] sm:$0xff]
      %v243 = vld [vmem:[%s210 + $0x60] sm:$0xf]
      %v244 = vld [vmem:[%s210 + $0x64] sm:$0xff]
      %v245 = vld [vmem:[%s210 + $0x6c] sm:$0xff]
      %v246 = vld [vmem:[%s210 + $0x74] sm:$0xf]
      %v247 = vld [vmem:[%s210 + $0x78] sm:$0xff]
      %v248 = vld [vmem:[%s210 + $0x80] sm:$0xff]
      %v249 = vld [vmem:[%s210 + $0x88] sm:$0xf]
      %v250 = vld [vmem:[%s210 + $0x8c] sm:$0xff]
      %v251 = vld [vmem:[%s210 + $0x94] sm:$0xff]
      %v252 = vld [vmem:[%s210 + $0x9c] sm:$0xf]
      %v253 = vld [vmem:[%s215] sm:$0xf]
      %v254 = vld [vmem:[%s215 + $0x4] sm:$0xf]
      %v255 = vld [vmem:[%s215 + $0x8] sm:$0xf]
      %v256 = vld [vmem:[%s215 + $0xc] sm:$0xf]
      %v257 = vld [vmem:[%s215 + $0x10] sm:$0xf]
      %v258 = vld [vmem:[%s215 + $0x14] sm:$0xf]
      %v259 = vld [vmem:[%s215 + $0x18] sm:$0xf]
      %v260 = vld [vmem:[%s215 + $0x1c] sm:$0xf]
      %v261 = vld [vmem:[%s215 + $0x20] sm:$0xf]
      %v262 = vld [vmem:[%s215 + $0x24] sm:$0xf]
      %v263 = vld [vmem:[%s215 + $0x28] sm:$0xf]
      %v264 = vld [vmem:[%s215 + $0x2c] sm:$0xf]
      %v265 = vld [vmem:[%s215 + $0x30] sm:$0xf]
      %v266 = vld [vmem:[%s215 + $0x34] sm:$0xf]
      %v267 = vld [vmem:[%s215 + $0x38] sm:$0xf]
      %v268 = vld [vmem:[%s215 + $0x3c] sm:$0xf]
      %v269 = vld [vmem:[%s215 + $0x40] sm:$0xf]
      %v270 = vld [vmem:[%s215 + $0x44] sm:$0xf]
      %v271 = vld [vmem:[%s215 + $0x48] sm:$0xf]
      %v272 = vld [vmem:[%s215 + $0x4c] sm:$0xf]
      %v273 = vld [vmem:[%s215 + $0x50] sm:$0xf]
      %v274 = vld [vmem:[%s215 + $0x54] sm:$0xf]
      %v275 = vld [vmem:[%s215 + $0x58] sm:$0xf]
      %v276 = vld [vmem:[%s215 + $0x5c] sm:$0xf]
      %v277 = vld [vmem:[%s215 + $0x60] sm:$0xf]
      %v278 = vld [vmem:[%s215 + $0x64] sm:$0xf]
      %v279 = vld [vmem:[%s215 + $0x68] sm:$0xf]
      %v280 = vld [vmem:[%s215 + $0x6c] sm:$0xf]
      %v281 = vld [vmem:[%s215 + $0x70] sm:$0xf]
      %v282 = vld [vmem:[%s215 + $0x74] sm:$0xf]
      %v283 = vld [vmem:[%s215 + $0x78] sm:$0xf]
      %v284 = vld [vmem:[%s215 + $0x7c] sm:$0xf]
      %v285 = vld [vmem:[%s215 + $0x80] sm:$0xf]
      %v286 = vld [vmem:[%s215 + $0x84] sm:$0xf]
      %v287 = vld [vmem:[%s215 + $0x88] sm:$0xf]
      %v288 = vld [vmem:[%s215 + $0x8c] sm:$0xf]
      %v289 = vld [vmem:[%s215 + $0x90] sm:$0xf]
      %v290 = vld [vmem:[%s215 + $0x94] sm:$0xf]
      %v291 = vld [vmem:[%s215 + $0x98] sm:$0xf]
      %v292 = vld [vmem:[%s215 + $0x9c] sm:$0xf]
      %v293 = vld [vmem:[%s215 + $0xa0] sm:$0xf]
      %v294 = vld [vmem:[%s215 + $0xa4] sm:$0xf]
      %v295 = vld [vmem:[%s215 + $0xa8] sm:$0xf]
      %v296 = vld [vmem:[%s215 + $0xac] sm:$0xf]
      %v297 = vld [vmem:[%s215 + $0xb0] sm:$0xf]
      %v298 = vld [vmem:[%s215 + $0xb4] sm:$0xf]
      %v299 = vld [vmem:[%s215 + $0xb8] sm:$0xf]
      %v300 = vld [vmem:[%s215 + $0xbc] sm:$0xf]
      %v301 = vld [vmem:[%s215 + $0xc0] sm:$0xf]
      %v302 = vld [vmem:[%s215 + $0xc4] sm:$0xf]
      %v303 = vld [vmem:[%s215 + $0xc8] sm:$0xf]
      %v304 = vld [vmem:[%s215 + $0xcc] sm:$0xf]
      %v305 = vld [vmem:[%s215 + $0xd0] sm:$0xf]
      %v306 = vld [vmem:[%s215 + $0xd4] sm:$0xf]
      %v307 = vld [vmem:[%s215 + $0xd8] sm:$0xf]
      %v308 = vld [vmem:[%s215 + $0xdc] sm:$0xf]
      %v309 = vld [vmem:[%s215 + $0xe0] sm:$0xf]
      %v310 = vld [vmem:[%s215 + $0xe4] sm:$0xf]
      %v311 = vld [vmem:[%s215 + $0xe8] sm:$0xf]
      %v312 = vld [vmem:[%s215 + $0xec] sm:$0xf]
      %v313 = vld [vmem:[%s215 + $0xf0] sm:$0xf]
      %v314 = vld [vmem:[%s215 + $0xf4] sm:$0xf]
      %v315 = vld [vmem:[%s215 + $0xf8] sm:$0xf]
      %v316 = vld [vmem:[%s215 + $0xfc] sm:$0xf]
      %v317 = vld [vmem:[%s215 + $0x100] sm:$0xf]
      %v318 = vld [vmem:[%s215 + $0x104] sm:$0xf]
      %v319 = vld [vmem:[%s215 + $0x108] sm:$0xf]
      %v320 = vld [vmem:[%s215 + $0x10c] sm:$0xf]
      %v321 = vld [vmem:[%s215 + $0x110] sm:$0xf]
      %v322 = vld [vmem:[%s215 + $0x114] sm:$0xf]
      %v323 = vld [vmem:[%s215 + $0x118] sm:$0xf]
      %v324 = vld [vmem:[%s215 + $0x11c] sm:$0xf]
      %v325 = vld [vmem:[%s215 + $0x120] sm:$0xf]
      %v326 = vld [vmem:[%s215 + $0x124] sm:$0xf]
      %v327 = vld [vmem:[%s215 + $0x128] sm:$0xf]
      %v328 = vld [vmem:[%s215 + $0x12c] sm:$0xf]
      %v329 = vld [vmem:[%s215 + $0x130] sm:$0xf]
      %v330 = vld [vmem:[%s215 + $0x134] sm:$0xf]
      %v331 = vld [vmem:[%s215 + $0x138] sm:$0xf]
      %v332 = vld [vmem:[%s215 + $0x13c] sm:$0xf]
      %v333 = vld [vmem:[%s218] sm:$0x1]
      %v335 = vlaneseq
      %v336 = vshrl.u32 %v335, 7
      %v337 = vsub.s32 0, %v336
      %v338 = vrot.slane %v333, %v337
      %v364 = vunpack.c.l.b16 %v229
      %v365 = vunpack.c.h.b16 %v229
      %v366 = vunpack.c.l.b16 %v230
      %v367 = vunpack.c.h.b16 %v230
      %v368 = vunpack.c.l.b16 %v231
      %v369 = vunpack.c.l.b16 %v232
      %v370 = vunpack.c.h.b16 %v232
      %v371 = vunpack.c.l.b16 %v233
      %v372 = vunpack.c.h.b16 %v233
      %v373 = vunpack.c.l.b16 %v234
      %v374 = vunpack.c.l.b16 %v235
      %v375 = vunpack.c.h.b16 %v235
      %v376 = vunpack.c.l.b16 %v236
      %v377 = vunpack.c.h.b16 %v236
      %v378 = vunpack.c.l.b16 %v237
      %v379 = vunpack.c.l.b16 %v238
      %v380 = vunpack.c.h.b16 %v238
      %v381 = vunpack.c.l.b16 %v239
      %v382 = vunpack.c.h.b16 %v239
      %v383 = vunpack.c.l.b16 %v240
      %v384 = vunpack.c.l.b16 %v241
      %v385 = vunpack.c.h.b16 %v241
      %v386 = vunpack.c.l.b16 %v242
      %v387 = vunpack.c.h.b16 %v242
      %v388 = vunpack.c.l.b16 %v243
      %v389 = vunpack.c.l.b16 %v244
      %v390 = vunpack.c.h.b16 %v244
      %v391 = vunpack.c.l.b16 %v245
      %v392 = vunpack.c.h.b16 %v245
      %v393 = vunpack.c.l.b16 %v246
      %v394 = vunpack.c.l.b16 %v247
      %v395 = vunpack.c.h.b16 %v247
      %v396 = vunpack.c.l.b16 %v248
      %v397 = vunpack.c.h.b16 %v248
      %v398 = vunpack.c.l.b16 %v249
      %v399 = vunpack.c.l.b16 %v250
      %v400 = vunpack.c.h.b16 %v250
      %v401 = vunpack.c.l.b16 %v251
      %v402 = vunpack.c.h.b16 %v251
      %v403 = vunpack.c.l.b16 %v252
      %v404 = vpack.c.b16 %v369, %v364
      %v405 = vpack.c.b16 %v370, %v365
      %v406 = vpack.c.b16 %v371, %v366
      %v407 = vpack.c.b16 %v372, %v367
      %v408 = vpack.c.b16 %v373, %v368
      %v409 = vpack.c.b16 %v379, %v374
      %v410 = vpack.c.b16 %v380, %v375
      %v411 = vpack.c.b16 %v381, %v376
      %v412 = vpack.c.b16 %v382, %v377
      %v413 = vpack.c.b16 %v383, %v378
      %v414 = vpack.c.b16 %v389, %v384
      %v415 = vpack.c.b16 %v390, %v385
      %v416 = vpack.c.b16 %v391, %v386
      %v417 = vpack.c.b16 %v392, %v387
      %v418 = vpack.c.b16 %v393, %v388
      %v419 = vpack.c.b16 %v399, %v394
      %v420 = vpack.c.b16 %v400, %v395
      %v421 = vpack.c.b16 %v401, %v396
      %v422 = vpack.c.b16 %v402, %v397
      %v423 = vpack.c.b16 %v403, %v398
      %v524 = vunpack.c.l.b16 %v253
      %v525 = vunpack.c.l.b16 %v254
      %v526 = vunpack.c.l.b16 %v255
      %v527 = vunpack.c.l.b16 %v256
      %v528 = vunpack.c.l.b16 %v257
      %v529 = vunpack.c.l.b16 %v258
      %v530 = vunpack.c.l.b16 %v259
      %v531 = vunpack.c.l.b16 %v260
      %v532 = vunpack.c.l.b16 %v261
      %v533 = vunpack.c.l.b16 %v262
      %v534 = vunpack.c.l.b16 %v263
      %v535 = vunpack.c.l.b16 %v264
      %v536 = vunpack.c.l.b16 %v265
      %v537 = vunpack.c.l.b16 %v266
      %v538 = vunpack.c.l.b16 %v267
      %v539 = vunpack.c.l.b16 %v268
      %v540 = vunpack.c.l.b16 %v269
      %v541 = vunpack.c.l.b16 %v270
      %v542 = vunpack.c.l.b16 %v271
      %v543 = vunpack.c.l.b16 %v272
      %v544 = vunpack.c.l.b16 %v273
      %v545 = vunpack.c.l.b16 %v274
      %v546 = vunpack.c.l.b16 %v275
      %v547 = vunpack.c.l.b16 %v276
      %v548 = vunpack.c.l.b16 %v277
      %v549 = vunpack.c.l.b16 %v278
      %v550 = vunpack.c.l.b16 %v279
      %v551 = vunpack.c.l.b16 %v280
      %v552 = vunpack.c.l.b16 %v281
      %v553 = vunpack.c.l.b16 %v282
      %v554 = vunpack.c.l.b16 %v283
      %v555 = vunpack.c.l.b16 %v284
      %v556 = vunpack.c.l.b16 %v285
      %v557 = vunpack.c.l.b16 %v286
      %v558 = vunpack.c.l.b16 %v287
      %v559 = vunpack.c.l.b16 %v288
      %v560 = vunpack.c.l.b16 %v289
      %v561 = vunpack.c.l.b16 %v290
      %v562 = vunpack.c.l.b16 %v291
      %v563 = vunpack.c.l.b16 %v292
      %v564 = vunpack.c.l.b16 %v293
      %v565 = vunpack.c.l.b16 %v294
      %v566 = vunpack.c.l.b16 %v295
      %v567 = vunpack.c.l.b16 %v296
      %v568 = vunpack.c.l.b16 %v297
      %v569 = vunpack.c.l.b16 %v298
      %v570 = vunpack.c.l.b16 %v299
      %v571 = vunpack.c.l.b16 %v300
      %v572 = vunpack.c.l.b16 %v301
      %v573 = vunpack.c.l.b16 %v302
      %v574 = vunpack.c.l.b16 %v303
      %v575 = vunpack.c.l.b16 %v304
      %v576 = vunpack.c.l.b16 %v305
      %v577 = vunpack.c.l.b16 %v306
      %v578 = vunpack.c.l.b16 %v307
      %v579 = vunpack.c.l.b16 %v308
      %v580 = vunpack.c.l.b16 %v309
      %v581 = vunpack.c.l.b16 %v310
      %v582 = vunpack.c.l.b16 %v311
      %v583 = vunpack.c.l.b16 %v312
      %v584 = vunpack.c.l.b16 %v313
      %v585 = vunpack.c.l.b16 %v314
      %v586 = vunpack.c.l.b16 %v315
      %v587 = vunpack.c.l.b16 %v316
      %v588 = vunpack.c.l.b16 %v317
      %v589 = vunpack.c.l.b16 %v318
      %v590 = vunpack.c.l.b16 %v319
      %v591 = vunpack.c.l.b16 %v320
      %v592 = vunpack.c.l.b16 %v321
      %v593 = vunpack.c.l.b16 %v322
      %v594 = vunpack.c.l.b16 %v323
      %v595 = vunpack.c.l.b16 %v324
      %v596 = vunpack.c.l.b16 %v325
      %v597 = vunpack.c.l.b16 %v326
      %v598 = vunpack.c.l.b16 %v327
      %v599 = vunpack.c.l.b16 %v328
      %v600 = vunpack.c.l.b16 %v329
      %v601 = vunpack.c.l.b16 %v330
      %v602 = vunpack.c.l.b16 %v331
      %v603 = vunpack.c.l.b16 %v332
      %v604 = vpack.c.b16 %v525, %v524
      %v605 = vpack.c.b16 %v527, %v526
      %v606 = vpack.c.b16 %v529, %v528
      %v607 = vpack.c.b16 %v531, %v530
      %v608 = vpack.c.b16 %v533, %v532
      %v609 = vpack.c.b16 %v535, %v534
      %v610 = vpack.c.b16 %v537, %v536
      %v611 = vpack.c.b16 %v539, %v538
      %v612 = vpack.c.b16 %v541, %v540
      %v613 = vpack.c.b16 %v543, %v542
      %v614 = vpack.c.b16 %v545, %v544
      %v615 = vpack.c.b16 %v547, %v546
      %v616 = vpack.c.b16 %v549, %v548
      %v617 = vpack.c.b16 %v551, %v550
      %v618 = vpack.c.b16 %v553, %v552
      %v619 = vpack.c.b16 %v555, %v554
      %v620 = vpack.c.b16 %v557, %v556
      %v621 = vpack.c.b16 %v559, %v558
      %v622 = vpack.c.b16 %v561, %v560
      %v623 = vpack.c.b16 %v563, %v562
      %v624 = vpack.c.b16 %v565, %v564
      %v625 = vpack.c.b16 %v567, %v566
      %v626 = vpack.c.b16 %v569, %v568
      %v627 = vpack.c.b16 %v571, %v570
      %v628 = vpack.c.b16 %v573, %v572
      %v629 = vpack.c.b16 %v575, %v574
      %v630 = vpack.c.b16 %v577, %v576
      %v631 = vpack.c.b16 %v579, %v578
      %v632 = vpack.c.b16 %v581, %v580
      %v633 = vpack.c.b16 %v583, %v582
      %v634 = vpack.c.b16 %v585, %v584
      %v635 = vpack.c.b16 %v587, %v586
      %v636 = vpack.c.b16 %v589, %v588
      %v637 = vpack.c.b16 %v591, %v590
      %v638 = vpack.c.b16 %v593, %v592
      %v639 = vpack.c.b16 %v595, %v594
      %v640 = vpack.c.b16 %v597, %v596
      %v641 = vpack.c.b16 %v599, %v598
      %v642 = vpack.c.b16 %v601, %v600
      %v643 = vpack.c.b16 %v603, %v602
      %684 = vmatprep.subr.bf16.mxu0 0
      %685 = vmatpush1.bf16.msra.mxu0 %v604
      %686 = vmatprep.subr.bf16.mxu0 0
      %687 = vmatpush1.bf16.msra.mxu0 %v605
      %688 = vmatprep.subr.bf16.mxu0 0
      %689 = vmatpush1.bf16.msra.mxu0 %v606
      %690 = vmatprep.subr.bf16.mxu0 0
      %691 = vmatpush1.bf16.msra.mxu0 %v607
      %692 = vmatprep.subr.bf16.mxu0 0
      %693 = vmatpush1.bf16.msra.mxu0 %v608
      %694 = vmatprep.subr.bf16.mxu0 0
      %695 = vmatpush1.bf16.msra.mxu0 %v609
      %696 = vmatprep.subr.bf16.mxu0 0
      %697 = vmatpush1.bf16.msra.mxu0 %v610
      %698 = vmatprep.subr.bf16.mxu0 0
      %699 = vmatpush1.bf16.msra.mxu0 %v611
      %700 = vmatprep.subr.bf16.mxu0 0
      %701 = vmatpush1.bf16.msra.mxu0 %v612
      %702 = vmatprep.subr.bf16.mxu0 0
      %703 = vmatpush1.bf16.msra.mxu0 %v613
      %704 = vmatprep.subr.bf16.mxu0 0
      %705 = vmatpush1.bf16.msra.mxu0 %v614
      %706 = vmatprep.subr.bf16.mxu0 0
      %707 = vmatpush1.bf16.msra.mxu0 %v615
      %708 = vmatprep.subr.bf16.mxu0 0
      %709 = vmatpush1.bf16.msra.mxu0 %v616
      %710 = vmatprep.subr.bf16.mxu0 0
      %711 = vmatpush1.bf16.msra.mxu0 %v617
      %712 = vmatprep.subr.bf16.mxu0 0
      %713 = vmatpush1.bf16.msra.mxu0 %v618
      %714 = vmatprep.subr.bf16.mxu0 0
      %715 = vmatpush1.bf16.msra.mxu0 %v619
      %716 = vmatprep.mubr.bf16.mxu0 %v405
      %717 = vmatmul.mubr.bf16.gmra.mrb[0].mxu0 %v404
      %v718 = vpop.f32.mrb[0].mxu0
      %v719 = vadd.f32 %v338, %v718
      %v720 = vpop.f32.mrb[0].mxu0
      %v721 = vpop.f32.mrb[0].mxu0
      %v722 = vadd.f32 %v338, %v721
      %v723 = vpop.f32.mrb[0].mxu0
      %724 = vmatprep.mubr.bf16.mxu0 %v410
      %725 = vmatmul.mubr.bf16.gmra.mrb[0].mxu0 %v409
      %v726 = vpop.f32.mrb[0].mxu0
      %v727 = vadd.f32 %v338, %v726
      %v728 = vpop.f32.mrb[0].mxu0
      %v729 = vpop.f32.mrb[0].mxu0
      %v730 = vadd.f32 %v338, %v729
      %v731 = vpop.f32.mrb[0].mxu0
      %732 = vmatprep.mubr.bf16.mxu0 %v415
      %733 = vmatmul.mubr.bf16.gmra.mrb[0].mxu0 %v414
      %v734 = vpop.f32.mrb[0].mxu0
      %v735 = vadd.f32 %v338, %v734
      %v736 = vpop.f32.mrb[0].mxu0
      %v737 = vpop.f32.mrb[0].mxu0
      %v738 = vadd.f32 %v338, %v737
      %v739 = vpop.f32.mrb[0].mxu0
      %740 = vmatprep.mubr.bf16.mxu0 %v420
      %741 = vmatmul.mubr.bf16.gmra.mrb[0].mxu0 %v419
      %v742 = vpop.f32.mrb[0].mxu0
      %v743 = vadd.f32 %v338, %v742
      %v744 = vpop.f32.mrb[0].mxu0
      %v745 = vpop.f32.mrb[0].mxu0
      %v746 = vadd.f32 %v338, %v745
      %v747 = vpop.f32.mrb[0].mxu0
      %748 = vdwg.mxu0
      %749 = vmatprep.subr.bf16.mxu0 0
      %750 = vmatpush1.bf16.msra.mxu0 %v620
      %751 = vmatprep.subr.bf16.mxu0 0
      %752 = vmatpush1.bf16.msra.mxu0 %v621
      %753 = vmatprep.subr.bf16.mxu0 0
      %754 = vmatpush1.bf16.msra.mxu0 %v622
      %755 = vmatprep.subr.bf16.mxu0 0
      %756 = vmatpush1.bf16.msra.mxu0 %v623
      %757 = vmatprep.subr.bf16.mxu0 0
      %758 = vmatpush1.bf16.msra.mxu0 %v624
      %759 = vmatprep.subr.bf16.mxu0 0
      %760 = vmatpush1.bf16.msra.mxu0 %v625
      %761 = vmatprep.subr.bf16.mxu0 0
      %762 = vmatpush1.bf16.msra.mxu0 %v626
      %763 = vmatprep.subr.bf16.mxu0 0
      %764 = vmatpush1.bf16.msra.mxu0 %v627
      %765 = vmatprep.subr.bf16.mxu0 0
      %766 = vmatpush1.bf16.msra.mxu0 %v628
      %767 = vmatprep.subr.bf16.mxu0 0
      %768 = vmatpush1.bf16.msra.mxu0 %v629
      %769 = vmatprep.subr.bf16.mxu0 0
      %770 = vmatpush1.bf16.msra.mxu0 %v630
      %771 = vmatprep.subr.bf16.mxu0 0
      %772 = vmatpush1.bf16.msra.mxu0 %v631
      %773 = vmatprep.subr.bf16.mxu0 0
      %774 = vmatpush1.bf16.msra.mxu0 %v632
      %775 = vmatprep.subr.bf16.mxu0 0
      %776 = vmatpush1.bf16.msra.mxu0 %v633
      %777 = vmatprep.subr.bf16.mxu0 0
      %778 = vmatpush1.bf16.msra.mxu0 %v634
      %779 = vmatprep.subr.bf16.mxu0 0
      %780 = vmatpush1.bf16.msra.mxu0 %v635
      %781 = vmatprep.mubr.bf16.mxu0 %v407
      %782 = vmatmul.mubr.bf16.gmra.mrb[0].mxu0 %v406
      %v783 = vpop.f32.mrb[0].mxu0
      %v784 = vadd.f32 %v719, %v783
      %v785 = vpop.f32.mrb[0].mxu0
      %v786 = vpop.f32.mrb[0].mxu0
      %v787 = vadd.f32 %v722, %v786
      %v788 = vpop.f32.mrb[0].mxu0
      %789 = vmatprep.mubr.bf16.mxu0 %v412
      %790 = vmatmul.mubr.bf16.gmra.mrb[0].mxu0 %v411
      %v791 = vpop.f32.mrb[0].mxu0
      %v792 = vadd.f32 %v727, %v791
      %v793 = vpop.f32.mrb[0].mxu0
      %v794 = vpop.f32.mrb[0].mxu0
      %v795 = vadd.f32 %v730, %v794
      %v796 = vpop.f32.mrb[0].mxu0
      %797 = vmatprep.mubr.bf16.mxu0 %v417
      %798 = vmatmul.mubr.bf16.gmra.mrb[0].mxu0 %v416
      %v799 = vpop.f32.mrb[0].mxu0
      %v800 = vadd.f32 %v735, %v799
      %v801 = vpop.f32.mrb[0].mxu0
      %v802 = vpop.f32.mrb[0].mxu0
      %v803 = vadd.f32 %v738, %v802
      %v804 = vpop.f32.mrb[0].mxu0
      %805 = vmatprep.mubr.bf16.mxu0 %v422
      %806 = vmatmul.mubr.bf16.gmra.mrb[0].mxu0 %v421
      %v807 = vpop.f32.mrb[0].mxu0
      %v808 = vadd.f32 %v743, %v807
      %v809 = vpop.f32.mrb[0].mxu0
      %v810 = vpop.f32.mrb[0].mxu0
      %v811 = vadd.f32 %v746, %v810
      %v812 = vpop.f32.mrb[0].mxu0
      %813 = vdwg.mxu0
      %814 = vmatprep.subr.bf16.mxu0 0
      %815 = vmatpush1.bf16.msra.mxu0 %v636
      %816 = vmatprep.subr.bf16.mxu0 0
      %817 = vmatpush1.bf16.msra.mxu0 %v637
      %818 = vmatprep.subr.bf16.mxu0 0
      %819 = vmatpush1.bf16.msra.mxu0 %v638
      %820 = vmatprep.subr.bf16.mxu0 0
      %821 = vmatpush1.bf16.msra.mxu0 %v639
      %822 = vmatprep.subr.bf16.mxu0 0
      %823 = vmatpush1.bf16.msra.mxu0 %v640
      %824 = vmatprep.subr.bf16.mxu0 0
      %825 = vmatpush1.bf16.msra.mxu0 %v641
      %826 = vmatprep.subr.bf16.mxu0 0
      %827 = vmatpush1.bf16.msra.mxu0 %v642
      %828 = vmatprep.subr.bf16.mxu0 0
      %829 = vmatpush1.bf16.msra.mxu0 %v643
      %830 = vmatprep.subr.bf16.mxu0 0
      %831 = vmatpush1.bf16.msra.mxu0 0
      %832 = vmatprep.subr.bf16.mxu0 0
      %833 = vmatpush1.bf16.msra.mxu0 0
      %834 = vmatprep.subr.bf16.mxu0 0
      %835 = vmatpush1.bf16.msra.mxu0 0
      %836 = vmatprep.subr.bf16.mxu0 0
      %837 = vmatpush1.bf16.msra.mxu0 0
      %838 = vmatprep.subr.bf16.mxu0 0
      %839 = vmatpush1.bf16.msra.mxu0 0
      %840 = vmatprep.subr.bf16.mxu0 0
      %841 = vmatpush1.bf16.msra.mxu0 0
      %842 = vmatprep.subr.bf16.mxu0 0
      %843 = vmatpush1.bf16.msra.mxu0 0
      %844 = vmatprep.subr.bf16.mxu0 0
      %845 = vmatpush1.bf16.msra.mxu0 0
      %846 = vmatprep.mubr.bf16.mxu0 0
      %847 = vmatmul.mubr.bf16.gmra.mrb[0].mxu0 %v408
      %v848 = vpop.f32.mrb[0].mxu0
      %v849 = vadd.f32 %v784, %v848
      %v850 = vpop.f32.mrb[0].mxu0
      %v851 = vpop.f32.mrb[0].mxu0
      %v852 = vadd.f32 %v787, %v851
      %v853 = vpop.f32.mrb[0].mxu0
      %854 = vmatprep.mubr.bf16.mxu0 0
      %855 = vmatmul.mubr.bf16.gmra.mrb[0].mxu0 %v413
      %v856 = vpop.f32.mrb[0].mxu0
      %v857 = vadd.f32 %v792, %v856
      %v858 = vpop.f32.mrb[0].mxu0
      %v859 = vpop.f32.mrb[0].mxu0
      %v860 = vadd.f32 %v795, %v859
      %v861 = vpop.f32.mrb[0].mxu0
      %862 = vmatprep.mubr.bf16.mxu0 0
      %863 = vmatmul.mubr.bf16.gmra.mrb[0].mxu0 %v418
      %v864 = vpop.f32.mrb[0].mxu0
      %v865 = vadd.f32 %v800, %v864
      %v866 = vpop.f32.mrb[0].mxu0
      %v867 = vpop.f32.mrb[0].mxu0
      %v868 = vadd.f32 %v803, %v867
      %v869 = vpop.f32.mrb[0].mxu0
      %870 = vmatprep.mubr.bf16.mxu0 0
      %871 = vmatmul.mubr.bf16.gmra.mrb[0].mxu0 %v423
      %v872 = vpop.f32.mrb[0].mxu0
      %v873 = vadd.f32 %v808, %v872
      %v874 = vpop.f32.mrb[0].mxu0
      %v875 = vpop.f32.mrb[0].mxu0
      %v876 = vadd.f32 %v811, %v875
      %v877 = vpop.f32.mrb[0].mxu0
      %878 = vdwg.mxu0
      %v879 = vmax.f32 %v849, 0.0
      %v880 = vmax.f32 %v852, 0.0
      %v881 = vmax.f32 %v857, 0.0
      %v882 = vmax.f32 %v860, 0.0
      %v883 = vmax.f32 %v865, 0.0
      %v884 = vmax.f32 %v868, 0.0
      %v885 = vmax.f32 %v873, 0.0
      %v886 = vmax.f32 %v876, 0.0
      %v887 = vpack.c.bf16 %v880, %v879
      %v888 = vpack.c.bf16 %v882, %v881
      %v889 = vpack.c.bf16 %v884, %v883
      %v890 = vpack.c.bf16 %v886, %v885
      %v895 = vunpack.c.l.b16 %v887
      %v896 = vunpack.c.h.b16 %v887
      %v897 = vunpack.c.l.b16 %v888
      %v898 = vunpack.c.h.b16 %v888
      %v899 = vunpack.c.l.b16 %v889
      %v900 = vunpack.c.h.b16 %v889
      %v901 = vunpack.c.l.b16 %v890
      %v902 = vunpack.c.h.b16 %v890
      %v903 = vpack.c.b16 %v895, %v895
      %v904 = vpack.c.b16 %v896, %v896
      %v905 = vpack.c.b16 %v897, %v897
      %v906 = vpack.c.b16 %v898, %v898
      %v907 = vpack.c.b16 %v899, %v899
      %v908 = vpack.c.b16 %v900, %v900
      %v909 = vpack.c.b16 %v901, %v901
      %v910 = vpack.c.b16 %v902, %v902
      %919 = vst [vmem:[%s226] sm:$0xf] %v903
      %920 = vst [vmem:[%s226 + $0x4] sm:$0xf] %v904
      %921 = vst [vmem:[%s226 + $0x8] sm:$0xf] %v905
      %922 = vst [vmem:[%s226 + $0xc] sm:$0xf] %v906
      %923 = vst [vmem:[%s226 + $0x10] sm:$0xf] %v907
      %924 = vst [vmem:[%s226 + $0x14] sm:$0xf] %v908
      %925 = vst [vmem:[%s226 + $0x18] sm:$0xf] %v909
      %926 = vst [vmem:[%s226 + $0x1c] sm:$0xf] %v910
      %s927 = smul.u32 8, %s18
      %p928 = scmp.lt.s32.totalorder %s927, 15
      %s929 = scalar_select %p928, %s927, 15
      %p930 = scmp.lt.s32.totalorder %s19, 0
      %s931 = scalar_select %p930, %s19, 0
      %s932 = sadd.s32 %s931, %s929
      %s933 = smul.addr %s932, 4
      %s934 = scalar_lea.vmem %s3, %s933
      // Predicated region
      $region33: #{resnet_forward.7} parent=31 // pred_check
        %p935 = pneg %p124
      $region34: #{resnet_forward.7} parent=31 // pred_check_branch
        %937 = sbr.rel (%p935) target = $region36
      $region35: #{resnet_forward.7} parent=31 // pred_region
        %s938 = smul.u32 8, %s18
      $region36: #{resnet_forward.7} parent=31 // pred_fallthru
        _
    $region32: #{resnet_forward.7} parent=5 // pred_fallthru
      _
    %p939 = scmp.le.s32.totalorder 2, %s9
    // Predicated region
    $region37: #{resnet_forward.7} parent=5 // pred_check
      %p940 = pneg %p939
    $region38: #{resnet_forward.7} parent=5 // pred_check_branch
      %942 = sbr.rel (%p940) target = $region40
    $region39: #{resnet_forward.7} parent=5 // pred_region
      %s943 = ssub.s32 %s9, 2
      // Predicated region
      $region41: #{resnet_forward.7} parent=39 // pred_check
        %p944 = pneg %p130
      $region42: #{resnet_forward.7} parent=39 // pred_check_branch
        %946 = sbr.rel (%p944) target = $region44
      $region43: #{resnet_forward.7} parent=39 // pred_region
        %s947 = smul.u32 8, %s20
        %p948 = scmp.lt.s32.totalorder %s947, 15
        %s949 = scalar_select %p948, %s947, 15
        %p950 = scmp.lt.s32.totalorder %s21, 0
        %s951 = scalar_select %p950, %s21, 0
        %s952 = sadd.s32 %s951, %s949
        %s953 = smul.addr %s952, 4
        %s954 = scalar_lea.vmem %s3, %s953
      $region44: #{resnet_forward.7} parent=39 // pred_fallthru
        _
    $region40: #{resnet_forward.7} parent=5 // pred_fallthru
      _
  $region6: #{resnet_forward.7} parent=0 // loop_footer
    %s13 = sadd.s32 1, %s9
  $region7: #{resnet_forward.7} parent=0 // loop_footer_branch
    %8 = sbr.rel target = $region3
  $region8: #{resnet_forward.7} parent=0 // loop_exit
    _

// kernel: resnet_forward.8
$region0: #{resnet_forward.8}
  #allocation0 [shape = 'u32[]', space=smem, size = 0x4, offset = 0x4, fixed_abs, tag = 'smem constant byte address 0x4 - core index']
  #allocation1 [shape = 'u32[144,128]{1,0:T(1,128)}', space=vmem, size = 0x12000, scoped, tag = 'internal scratch']
  %s0 = inlined_call_operand.vmem [shape: bf16[128,640], index: 0, kind: input, shape index: {}]
  %s1 = inlined_call_operand.vmem [shape: bf16[640,128], index: 1, kind: input, shape index: {}]
  %s2 = inlined_call_operand.vmem [shape: f32[1,128], index: 2, kind: input, shape index: {}]
  %s3 = inlined_call_operand.vmem [shape: bf16[128,128], index: 3, kind: input, shape index: {}]
  %s4 = inlined_call_operand.vmem [shape: bf16[128,128], index: 4, kind: output, shape index: {}]
  %s5 = sld [smem:[#allocation0]]
  $region49: #{resnet_forward.8} parent=0
    _
  %s7 = ssub.s32 1, %s5
  %s8 = scalar_select 0, %s7, %s5
  loop: start=0, step=1, limit=4
  $region2: #{resnet_forward.8} parent=0 // loop_pre_header
    _
  $region3: #{resnet_forward.8} parent=0 // loop_header
    %s10 = sphi 0, %s14
    %p11 = scmp.ge.s32.totalorder %s10, 4
    %s17 = sphi 0, %s29
    %s18 = sphi 0, %s25
    %s19 = sphi 0, %s17
    %s20 = sphi 0, %s18
    %s21 = sphi 0, %s19
    %s22 = sphi 0, %s20
    %s32 = sphi 0, %s34
    %s35 = sphi 0, %s32
    %s36 = sphi 0, %s35
    %s52 = sphi 0, %s36
    %s58 = sphi 0, %s60
    %s61 = sphi 0, %s58
    %s62 = sphi 0, %s61
    %s78 = sphi 0, %s62
    %s84 = sphi 0, %s86
    %s87 = sphi 0, %s84
    %s88 = sphi 0, %s87
    %s104 = sphi 0, %s88
    %s112 = sphi 0, %s114
    %s115 = sphi 0, %s112
    %s116 = sphi 0, %s115
    %s132 = sphi 0, %s116
    %s140 = sphi 0, %s142
    %s143 = sphi 0, %s140
    %s144 = sphi 0, %s143
    %s160 = sphi 0, %s144
  $region4: #{resnet_forward.8} parent=0 // loop_header_branch
    %13 = sbr.rel (%p11) target = $region8
  $region5: #{resnet_forward.8} parent=0 // loop_body
    %s15 = ssub.s32 %s10, 1
    %s16 = ssub.s32 %s10, 2
    %s23 = sadd.s32 1, %s18
    %p24 = scmp.ge.s32.totalorder %s23, 1
    %s25 = scalar_select %p24, 0, %s23
    %s26 = sadd.s32 1, %s17
    %s27 = scalar_select %p24, %s26, %s17
    %p28 = scmp.ge.s32.totalorder %s27, 2
    %s29 = scalar_select %p28, 0, %s27
    %s30 = ssub.s32 %s17, %s29
    %p31 = scmp.eq.s32.totalorder %s30, 0
    %s33 = sadd.s32 %s32, 1
    %s34 = scalar_select %p31, %s32, %s33
    %p37 = pneg %p31
    %p38 = scmp.eq.s32.totalorder %s10, 1
    %p39 = por %p37, %p38
    %p40 = scmp.ne.s32.totalorder %s32, %s35
    %p41 = scmp.eq.s32.totalorder %s10, 0
    %p42 = por %p40, %p41
    %p43 = scmp.ne.s32.totalorder %s32, %s35
    %p44 = scmp.eq.s32.totalorder %s15, 1
    %p45 = por %p43, %p44
    %p46 = scmp.ne.s32.totalorder %s35, %s36
    %p47 = scmp.eq.s32.totalorder %s15, 0
    %p48 = por %p46, %p47
    %p49 = scmp.ne.s32.totalorder %s35, %s36
    %p50 = scmp.eq.s32.totalorder %s16, 1
    %p51 = por %p49, %p50
    %p53 = scmp.ne.s32.totalorder %s36, %s52
    %p54 = scmp.eq.s32.totalorder %s16, 0
    %p55 = por %p53, %p54
    %s56 = ssub.s32 %s18, %s25
    %p57 = scmp.eq.s32.totalorder %s56, 0
    %s59 = sadd.s32 %s58, 1
    %s60 = scalar_select %p57, %s58, %s59
    %p63 = pneg %p57
    %p64 = scmp.eq.s32.totalorder %s10, 1
    %p65 = por %p63, %p64
    %p66 = scmp.ne.s32.totalorder %s58, %s61
    %p67 = scmp.eq.s32.totalorder %s10, 0
    %p68 = por %p66, %p67
    %p69 = scmp.ne.s32.totalorder %s58, %s61
    %p70 = scmp.eq.s32.totalorder %s15, 1
    %p71 = por %p69, %p70
    %p72 = scmp.ne.s32.totalorder %s61, %s62
    %p73 = scmp.eq.s32.totalorder %s15, 0
    %p74 = por %p72, %p73
    %p75 = scmp.ne.s32.totalorder %s61, %s62
    %p76 = scmp.eq.s32.totalorder %s16, 1
    %p77 = por %p75, %p76
    %p79 = scmp.ne.s32.totalorder %s62, %s78
    %p80 = scmp.eq.s32.totalorder %s16, 0
    %p81 = por %p79, %p80
    %s82 = ssub.s32 %s18, %s25
    %p83 = scmp.eq.s32.totalorder %s82, 0
    %s85 = sadd.s32 %s84, 1
    %s86 = scalar_select %p83, %s84, %s85
    %p89 = pneg %p83
    %p90 = scmp.eq.s32.totalorder %s10, 1
    %p91 = por %p89, %p90
    %p92 = scmp.ne.s32.totalorder %s84, %s87
    %p93 = scmp.eq.s32.totalorder %s10, 0
    %p94 = por %p92, %p93
    %p95 = scmp.ne.s32.totalorder %s84, %s87
    %p96 = scmp.eq.s32.totalorder %s15, 1
    %p97 = por %p95, %p96
    %p98 = scmp.ne.s32.totalorder %s87, %s88
    %p99 = scmp.eq.s32.totalorder %s15, 0
    %p100 = por %p98, %p99
    %p101 = scmp.ne.s32.totalorder %s87, %s88
    %p102 = scmp.eq.s32.totalorder %s16, 1
    %p103 = por %p101, %p102
    %p105 = scmp.ne.s32.totalorder %s88, %s104
    %p106 = scmp.eq.s32.totalorder %s16, 0
    %p107 = por %p105, %p106
    %s108 = ssub.s32 %s17, %s29
    %s109 = ssub.s32 %s18, %s25
    %s110 = sor.u32 %s108, %s109
    %p111 = scmp.eq.s32.totalorder %s110, 0
    %s113 = sadd.s32 %s112, 1
    %s114 = scalar_select %p111, %s112, %s113
    %p117 = pneg %p111
    %p118 = scmp.eq.s32.totalorder %s10, 1
    %p119 = por %p117, %p118
    %p120 = scmp.ne.s32.totalorder %s112, %s115
    %p121 = scmp.eq.s32.totalorder %s10, 0
    %p122 = por %p120, %p121
    %p123 = scmp.ne.s32.totalorder %s112, %s115
    %p124 = scmp.eq.s32.totalorder %s15, 1
    %p125 = por %p123, %p124
    %p126 = scmp.ne.s32.totalorder %s115, %s116
    %p127 = scmp.eq.s32.totalorder %s15, 0
    %p128 = por %p126, %p127
    %p129 = scmp.ne.s32.totalorder %s115, %s116
    %p130 = scmp.eq.s32.totalorder %s16, 1
    %p131 = por %p129, %p130
    %p133 = scmp.ne.s32.totalorder %s116, %s132
    %p134 = scmp.eq.s32.totalorder %s16, 0
    %p135 = por %p133, %p134
    %s136 = ssub.s32 %s17, %s29
    %s137 = ssub.s32 %s18, %s25
    %s138 = sor.u32 %s136, %s137
    %p139 = scmp.eq.s32.totalorder %s138, 0
    %s141 = sadd.s32 %s140, 1
    %s142 = scalar_select %p139, %s140, %s141
    %p145 = pneg %p139
    %p146 = scmp.eq.s32.totalorder %s10, 1
    %p147 = por %p145, %p146
    %p148 = scmp.ne.s32.totalorder %s140, %s143
    %p149 = scmp.eq.s32.totalorder %s10, 0
    %p150 = por %p148, %p149
    %p151 = scmp.ne.s32.totalorder %s140, %s143
    %p152 = scmp.eq.s32.totalorder %s15, 1
    %p153 = por %p151, %p152
    %p154 = scmp.ne.s32.totalorder %s143, %s144
    %p155 = scmp.eq.s32.totalorder %s15, 0
    %p156 = por %p154, %p155
    %p157 = scmp.ne.s32.totalorder %s143, %s144
    %p158 = scmp.eq.s32.totalorder %s16, 1
    %p159 = por %p157, %p158
    %p161 = scmp.ne.s32.totalorder %s144, %s160
    %p162 = scmp.eq.s32.totalorder %s16, 0
    %p163 = por %p161, %p162
    %p164 = scmp.le.s32.totalorder 1, %s10
    %p165 = scmp.lt.s32.totalorder %s10, 3
    %p166 = pnand %p164, %p165
    %p167 = pneg %p166
    // Predicated region
    $region9: #{resnet_forward.8} parent=5 // pred_check
      _
    $region10: #{resnet_forward.8} parent=5 // pred_check_branch
      %169 = sbr.rel (%p166) target = $region12
    $region11: #{resnet_forward.8} parent=5 // pred_region
      %s170 = ssub.s32 %s10, 1
      // Predicated region
      $region13: #{resnet_forward.8} parent=11 // pred_check
        %p171 = pneg %p74
      $region14: #{resnet_forward.8} parent=11 // pred_check_branch
        %173 = sbr.rel (%p171) target = $region16
      $region15: #{resnet_forward.8} parent=11 // pred_region
        %p174 = scmp.lt.s32.totalorder %s20, 0
        %s175 = scalar_select %p174, %s20, 0
        %s176 = smul.addr %s175, 4
        %s177 = scalar_lea.vmem %s1, %s176
      $region16: #{resnet_forward.8} parent=11 // pred_fallthru
        _
      // Predicated region
      $region17: #{resnet_forward.8} parent=11 // pred_check
        %p178 = pneg %p100
      $region18: #{resnet_forward.8} parent=11 // pred_check_branch
        %180 = sbr.rel (%p178) target = $region20
      $region19: #{resnet_forward.8} parent=11 // pred_region
        %p181 = scmp.lt.s32.totalorder %s20, 0
        %s182 = scalar_select %p181, %s20, 0
        %s183 = scalar_lea.vmem %s2, %s182
      $region20: #{resnet_forward.8} parent=11 // pred_fallthru
        _
    $region12: #{resnet_forward.8} parent=5 // pred_fallthru
      _
    %p184 = scmp.lt.s32.totalorder %s10, 2
    // Predicated region
    $region21: #{resnet_forward.8} parent=5 // pred_check
      %p185 = pneg %p184
    $region22: #{resnet_forward.8} parent=5 // pred_check_branch
      %187 = sbr.rel (%p185) target = $region24
    $region23: #{resnet_forward.8} parent=5 // pred_region
      // Predicated region
      $region25: #{resnet_forward.8} parent=23 // pred_check
        %p188 = pneg %p42
      $region26: #{resnet_forward.8} parent=23 // pred_check_branch
        %190 = sbr.rel (%p188) target = $region28
      $region27: #{resnet_forward.8} parent=23 // pred_region
        %s191 = smul.u32 8, %s17
        %p192 = scmp.lt.s32.totalorder %s191, 15
        %s193 = scalar_select %p192, %s191, 15
        %s194 = smul.addr %s193, 5
        %s195 = smul.addr %s194, 4
        %s196 = scalar_lea.vmem %s0, %s195
        %s197 = smul.u32 8, %s17
      $region28: #{resnet_forward.8} parent=23 // pred_fallthru
        _
      // Predicated region
      $region29: #{resnet_forward.8} parent=23 // pred_check
        %p198 = pneg %p122
      $region30: #{resnet_forward.8} parent=23 // pred_check_branch
        %200 = sbr.rel (%p198) target = $region32
      $region31: #{resnet_forward.8} parent=23 // pred_region
        %s201 = smul.u32 8, %s17
        %p202 = scmp.lt.s32.totalorder %s201, 15
        %s203 = scalar_select %p202, %s201, 15
        %p204 = scmp.lt.s32.totalorder %s18, 0
        %s205 = scalar_select %p204, %s18, 0
        %s206 = sadd.s32 %s205, %s203
        %s207 = smul.addr %s206, 4
        %s208 = scalar_lea.vmem %s3, %s207
        %s209 = smul.u32 8, %s17
      $region32: #{resnet_forward.8} parent=23 // pred_fallthru
        _
    $region24: #{resnet_forward.8} parent=5 // pred_fallthru
      _
    %p210 = scmp.le.s32.totalorder 1, %s10
    %p211 = scmp.lt.s32.totalorder %s10, 3
    %p212 = pnand %p210, %p211
    %p213 = pneg %p212
    // Predicated region
    $region33: #{resnet_forward.8} parent=5 // pred_check
      _
    $region34: #{resnet_forward.8} parent=5 // pred_check_branch
      %215 = sbr.rel (%p212) target = $region36
    $region35: #{resnet_forward.8} parent=5 // pred_region
      %s216 = ssub.s32 %s10, 1
      %s217 = smul.u32 8, %s19
      %p218 = scmp.lt.s32.totalorder %s217, 15
      %s219 = scalar_select %p218, %s217, 15
      %s220 = smul.addr %s219, 5
      %s221 = smul.addr %s220, 4
      %s222 = scalar_lea.vmem %s0, %s221
      %p223 = pneg %p48
      %p224 = pneg %p45
      %p225 = scmp.lt.s32.totalorder %s20, 0
      %s226 = scalar_select %p225, %s20, 0
      %s227 = smul.addr %s226, 4
      %s228 = scalar_lea.vmem %s1, %s227
      %p229 = pneg %p74
      %p230 = pneg %p71
      %p231 = scmp.lt.s32.totalorder %s20, 0
      %s232 = scalar_select %p231, %s20, 0
      %s233 = scalar_lea.vmem %s2, %s232
      %p234 = pneg %p100
      %p235 = pneg %p97
      %s236 = smul.u32 8, %s19
      %p237 = scmp.lt.s32.totalorder %s236, 15
      %s238 = scalar_select %p237, %s236, 15
      %p239 = scmp.lt.s32.totalorder %s20, 0
      %s240 = scalar_select %p239, %s20, 0
      %s241 = sadd.s32 %s240, %s238
      %s242 = smul.addr %s241, 4
      %s243 = scalar_lea.vmem %s3, %s242
      %p244 = pneg %p128
      %p245 = pneg %p125
      %p246 = pneg %p156
      %p247 = pneg %p153
      %s248 = smul.u32 8, %s19
      %p249 = scmp.lt.s32.totalorder %s248, 15
      %s250 = scalar_select %p249, %s248, 15
      %p251 = scmp.lt.s32.totalorder %s20, 0
      %s252 = scalar_select %p251, %s20, 0
      %s253 = sadd.s32 %s252, %s250
      %s254 = smul.addr %s253, 4
      %s255 = scalar_lea.vmem %s4, %s254
      %s256 = smul.u32 8, %s19
      %p257 = scmp.lt.s32.totalorder %s256, 15
      %s258 = scalar_select %p257, %s256, 15
      %s259 = smul.addr %s258, 5
      %s260 = smul.addr %s259, 4
      %s261 = scalar_lea.vmem %s0, %s260
      %s262 = smul.u32 8, %s19
      %p263 = scmp.lt.s32.totalorder %s20, 0
      %s264 = scalar_select %p263, %s20, 0
      %s265 = smul.addr %s264, 4
      %s266 = scalar_lea.vmem %s1, %s265
      %p267 = scmp.lt.s32.totalorder %s20, 0
      %s268 = scalar_select %p267, %s20, 0
      %s269 = scalar_lea.vmem %s2, %s268
      %s270 = smul.u32 8, %s19
      %p271 = scmp.lt.s32.totalorder %s270, 15
      %s272 = scalar_select %p271, %s270, 15
      %p273 = scmp.lt.s32.totalorder %s20, 0
      %s274 = scalar_select %p273, %s20, 0
      %s275 = sadd.s32 %s274, %s272
      %s276 = smul.addr %s275, 4
      %s277 = scalar_lea.vmem %s3, %s276
      %s278 = smul.u32 8, %s19
      %s279 = smul.u32 8, %s19
      %p280 = scmp.lt.s32.totalorder %s279, 15
      %s281 = scalar_select %p280, %s279, 15
      %p282 = scmp.lt.s32.totalorder %s20, 0
      %s283 = scalar_select %p282, %s20, 0
      %s284 = sadd.s32 %s283, %s281
      %s285 = smul.addr %s284, 4
      %s286 = scalar_lea.vmem %s4, %s285
      %s287 = smul.u32 8, %s19
      %v289 = vld [vmem:[%s261] sm:$0xff]
      %v290 = vld [vmem:[%s261 + $0x8] sm:$0xff]
      %v291 = vld [vmem:[%s261 + $0x10] sm:$0xf]
      %v292 = vld [vmem:[%s261 + $0x14] sm:$0xff]
      %v293 = vld [vmem:[%s261 + $0x1c] sm:$0xff]
      %v294 = vld [vmem:[%s261 + $0x24] sm:$0xf]
      %v295 = vld [vmem:[%s261 + $0x28] sm:$0xff]
      %v296 = vld [vmem:[%s261 + $0x30] sm:$0xff]
      %v297 = vld [vmem:[%s261 + $0x38] sm:$0xf]
      %v298 = vld [vmem:[%s261 + $0x3c] sm:$0xff]
      %v299 = vld [vmem:[%s261 + $0x44] sm:$0xff]
      %v300 = vld [vmem:[%s261 + $0x4c] sm:$0xf]
      %v301 = vld [vmem:[%s261 + $0x50] sm:$0xff]
      %v302 = vld [vmem:[%s261 + $0x58] sm:$0xff]
      %v303 = vld [vmem:[%s261 + $0x60] sm:$0xf]
      %v304 = vld [vmem:[%s261 + $0x64] sm:$0xff]
      %v305 = vld [vmem:[%s261 + $0x6c] sm:$0xff]
      %v306 = vld [vmem:[%s261 + $0x74] sm:$0xf]
      %v307 = vld [vmem:[%s261 + $0x78] sm:$0xff]
      %v308 = vld [vmem:[%s261 + $0x80] sm:$0xff]
      %v309 = vld [vmem:[%s261 + $0x88] sm:$0xf]
      %v310 = vld [vmem:[%s261 + $0x8c] sm:$0xff]
      %v311 = vld [vmem:[%s261 + $0x94] sm:$0xff]
      %v312 = vld [vmem:[%s261 + $0x9c] sm:$0xf]
      %v313 = vld [vmem:[%s266] sm:$0xf]
      %v314 = vld [vmem:[%s266 + $0x4] sm:$0xf]
      %v315 = vld [vmem:[%s266 + $0x8] sm:$0xf]
      %v316 = vld [vmem:[%s266 + $0xc] sm:$0xf]
      %v317 = vld [vmem:[%s266 + $0x10] sm:$0xf]
      %v318 = vld [vmem:[%s266 + $0x14] sm:$0xf]
      %v319 = vld [vmem:[%s266 + $0x18] sm:$0xf]
      %v320 = vld [vmem:[%s266 + $0x1c] sm:$0xf]
      %v321 = vld [vmem:[%s266 + $0x20] sm:$0xf]
      %v322 = vld [vmem:[%s266 + $0x24] sm:$0xf]
      %v323 = vld [vmem:[%s266 + $0x28] sm:$0xf]
      %v324 = vld [vmem:[%s266 + $0x2c] sm:$0xf]
      %v325 = vld [vmem:[%s266 + $0x30] sm:$0xf]
      %v326 = vld [vmem:[%s266 + $0x34] sm:$0xf]
      %v327 = vld [vmem:[%s266 + $0x38] sm:$0xf]
      %v328 = vld [vmem:[%s266 + $0x3c] sm:$0xf]
      %v329 = vld [vmem:[%s266 + $0x40] sm:$0xf]
      %v330 = vld [vmem:[%s266 + $0x44] sm:$0xf]
      %v331 = vld [vmem:[%s266 + $0x48] sm:$0xf]
      %v332 = vld [vmem:[%s266 + $0x4c] sm:$0xf]
      %v333 = vld [vmem:[%s266 + $0x50] sm:$0xf]
      %v334 = vld [vmem:[%s266 + $0x54] sm:$0xf]
      %v335 = vld [vmem:[%s266 + $0x58] sm:$0xf]
      %v336 = vld [vmem:[%s266 + $0x5c] sm:$0xf]
      %v337 = vld [vmem:[%s266 + $0x60] sm:$0xf]
      %v338 = vld [vmem:[%s266 + $0x64] sm:$0xf]
      %v339 = vld [vmem:[%s266 + $0x68] sm:$0xf]
      %v340 = vld [vmem:[%s266 + $0x6c] sm:$0xf]
      %v341 = vld [vmem:[%s266 + $0x70] sm:$0xf]
      %v342 = vld [vmem:[%s266 + $0x74] sm:$0xf]
      %v343 = vld [vmem:[%s266 + $0x78] sm:$0xf]
      %v344 = vld [vmem:[%s266 + $0x7c] sm:$0xf]
      %v345 = vld [vmem:[%s266 + $0x80] sm:$0xf]
      %v346 = vld [vmem:[%s266 + $0x84] sm:$0xf]
      %v347 = vld [vmem:[%s266 + $0x88] sm:$0xf]
      %v348 = vld [vmem:[%s266 + $0x8c] sm:$0xf]
      %v349 = vld [vmem:[%s266 + $0x90] sm:$0xf]
      %v350 = vld [vmem:[%s266 + $0x94] sm:$0xf]
      %v351 = vld [vmem:[%s266 + $0x98] sm:$0xf]
      %v352 = vld [vmem:[%s266 + $0x9c] sm:$0xf]
      %v353 = vld [vmem:[%s266 + $0xa0] sm:$0xf]
      %v354 = vld [vmem:[%s266 + $0xa4] sm:$0xf]
      %v355 = vld [vmem:[%s266 + $0xa8] sm:$0xf]
      %v356 = vld [vmem:[%s266 + $0xac] sm:$0xf]
      %v357 = vld [vmem:[%s266 + $0xb0] sm:$0xf]
      %v358 = vld [vmem:[%s266 + $0xb4] sm:$0xf]
      %v359 = vld [vmem:[%s266 + $0xb8] sm:$0xf]
      %v360 = vld [vmem:[%s266 + $0xbc] sm:$0xf]
      %v361 = vld [vmem:[%s266 + $0xc0] sm:$0xf]
      %v362 = vld [vmem:[%s266 + $0xc4] sm:$0xf]
      %v363 = vld [vmem:[%s266 + $0xc8] sm:$0xf]
      %v364 = vld [vmem:[%s266 + $0xcc] sm:$0xf]
      %v365 = vld [vmem:[%s266 + $0xd0] sm:$0xf]
      %v366 = vld [vmem:[%s266 + $0xd4] sm:$0xf]
      %v367 = vld [vmem:[%s266 + $0xd8] sm:$0xf]
      %v368 = vld [vmem:[%s266 + $0xdc] sm:$0xf]
      %v369 = vld [vmem:[%s266 + $0xe0] sm:$0xf]
      %v370 = vld [vmem:[%s266 + $0xe4] sm:$0xf]
      %v371 = vld [vmem:[%s266 + $0xe8] sm:$0xf]
      %v372 = vld [vmem:[%s266 + $0xec] sm:$0xf]
      %v373 = vld [vmem:[%s266 + $0xf0] sm:$0xf]
      %v374 = vld [vmem:[%s266 + $0xf4] sm:$0xf]
      %v375 = vld [vmem:[%s266 + $0xf8] sm:$0xf]
      %v376 = vld [vmem:[%s266 + $0xfc] sm:$0xf]
      %v377 = vld [vmem:[%s266 + $0x100] sm:$0xf]
      %v378 = vld [vmem:[%s266 + $0x104] sm:$0xf]
      %v379 = vld [vmem:[%s266 + $0x108] sm:$0xf]
      %v380 = vld [vmem:[%s266 + $0x10c] sm:$0xf]
      %v381 = vld [vmem:[%s266 + $0x110] sm:$0xf]
      %v382 = vld [vmem:[%s266 + $0x114] sm:$0xf]
      %v383 = vld [vmem:[%s266 + $0x118] sm:$0xf]
      %v384 = vld [vmem:[%s266 + $0x11c] sm:$0xf]
      %v385 = vld [vmem:[%s266 + $0x120] sm:$0xf]
      %v386 = vld [vmem:[%s266 + $0x124] sm:$0xf]
      %v387 = vld [vmem:[%s266 + $0x128] sm:$0xf]
      %v388 = vld [vmem:[%s266 + $0x12c] sm:$0xf]
      %v389 = vld [vmem:[%s266 + $0x130] sm:$0xf]
      %v390 = vld [vmem:[%s266 + $0x134] sm:$0xf]
      %v391 = vld [vmem:[%s266 + $0x138] sm:$0xf]
      %v392 = vld [vmem:[%s266 + $0x13c] sm:$0xf]
      %v393 = vld [vmem:[%s269] sm:$0x1]
      %v395 = vlaneseq
      %v396 = vshrl.u32 %v395, 7
      %v397 = vsub.s32 0, %v396
      %v398 = vrot.slane %v393, %v397
      %v424 = vunpack.c.l.b16 %v289
      %v425 = vunpack.c.h.b16 %v289
      %v426 = vunpack.c.l.b16 %v290
      %v427 = vunpack.c.h.b16 %v290
      %v428 = vunpack.c.l.b16 %v291
      %v429 = vunpack.c.l.b16 %v292
      %v430 = vunpack.c.h.b16 %v292
      %v431 = vunpack.c.l.b16 %v293
      %v432 = vunpack.c.h.b16 %v293
      %v433 = vunpack.c.l.b16 %v294
      %v434 = vunpack.c.l.b16 %v295
      %v435 = vunpack.c.h.b16 %v295
      %v436 = vunpack.c.l.b16 %v296
      %v437 = vunpack.c.h.b16 %v296
      %v438 = vunpack.c.l.b16 %v297
      %v439 = vunpack.c.l.b16 %v298
      %v440 = vunpack.c.h.b16 %v298
      %v441 = vunpack.c.l.b16 %v299
      %v442 = vunpack.c.h.b16 %v299
      %v443 = vunpack.c.l.b16 %v300
      %v444 = vunpack.c.l.b16 %v301
      %v445 = vunpack.c.h.b16 %v301
      %v446 = vunpack.c.l.b16 %v302
      %v447 = vunpack.c.h.b16 %v302
      %v448 = vunpack.c.l.b16 %v303
      %v449 = vunpack.c.l.b16 %v304
      %v450 = vunpack.c.h.b16 %v304
      %v451 = vunpack.c.l.b16 %v305
      %v452 = vunpack.c.h.b16 %v305
      %v453 = vunpack.c.l.b16 %v306
      %v454 = vunpack.c.l.b16 %v307
      %v455 = vunpack.c.h.b16 %v307
      %v456 = vunpack.c.l.b16 %v308
      %v457 = vunpack.c.h.b16 %v308
      %v458 = vunpack.c.l.b16 %v309
      %v459 = vunpack.c.l.b16 %v310
      %v460 = vunpack.c.h.b16 %v310
      %v461 = vunpack.c.l.b16 %v311
      %v462 = vunpack.c.h.b16 %v311
      %v463 = vunpack.c.l.b16 %v312
      %v464 = vpack.c.b16 %v429, %v424
      %v465 = vpack.c.b16 %v430, %v425
      %v466 = vpack.c.b16 %v431, %v426
      %v467 = vpack.c.b16 %v432, %v427
      %v468 = vpack.c.b16 %v433, %v428
      %v469 = vpack.c.b16 %v439, %v434
      %v470 = vpack.c.b16 %v440, %v435
      %v471 = vpack.c.b16 %v441, %v436
      %v472 = vpack.c.b16 %v442, %v437
      %v473 = vpack.c.b16 %v443, %v438
      %v474 = vpack.c.b16 %v449, %v444
      %v475 = vpack.c.b16 %v450, %v445
      %v476 = vpack.c.b16 %v451, %v446
      %v477 = vpack.c.b16 %v452, %v447
      %v478 = vpack.c.b16 %v453, %v448
      %v479 = vpack.c.b16 %v459, %v454
      %v480 = vpack.c.b16 %v460, %v455
      %v481 = vpack.c.b16 %v461, %v456
      %v482 = vpack.c.b16 %v462, %v457
      %v483 = vpack.c.b16 %v463, %v458
      %v584 = vunpack.c.l.b16 %v313
      %v585 = vunpack.c.l.b16 %v314
      %v586 = vunpack.c.l.b16 %v315
      %v587 = vunpack.c.l.b16 %v316
      %v588 = vunpack.c.l.b16 %v317
      %v589 = vunpack.c.l.b16 %v318
      %v590 = vunpack.c.l.b16 %v319
      %v591 = vunpack.c.l.b16 %v320
      %v592 = vunpack.c.l.b16 %v321
      %v593 = vunpack.c.l.b16 %v322
      %v594 = vunpack.c.l.b16 %v323
      %v595 = vunpack.c.l.b16 %v324
      %v596 = vunpack.c.l.b16 %v325
      %v597 = vunpack.c.l.b16 %v326
      %v598 = vunpack.c.l.b16 %v327
      %v599 = vunpack.c.l.b16 %v328
      %v600 = vunpack.c.l.b16 %v329
      %v601 = vunpack.c.l.b16 %v330
      %v602 = vunpack.c.l.b16 %v331
      %v603 = vunpack.c.l.b16 %v332
      %v604 = vunpack.c.l.b16 %v333
      %v605 = vunpack.c.l.b16 %v334
      %v606 = vunpack.c.l.b16 %v335
      %v607 = vunpack.c.l.b16 %v336
      %v608 = vunpack.c.l.b16 %v337
      %v609 = vunpack.c.l.b16 %v338
      %v610 = vunpack.c.l.b16 %v339
      %v611 = vunpack.c.l.b16 %v340
      %v612 = vunpack.c.l.b16 %v341
      %v613 = vunpack.c.l.b16 %v342
      %v614 = vunpack.c.l.b16 %v343
      %v615 = vunpack.c.l.b16 %v344
      %v616 = vunpack.c.l.b16 %v345
      %v617 = vunpack.c.l.b16 %v346
      %v618 = vunpack.c.l.b16 %v347
      %v619 = vunpack.c.l.b16 %v348
      %v620 = vunpack.c.l.b16 %v349
      %v621 = vunpack.c.l.b16 %v350
      %v622 = vunpack.c.l.b16 %v351
      %v623 = vunpack.c.l.b16 %v352
      %v624 = vunpack.c.l.b16 %v353
      %v625 = vunpack.c.l.b16 %v354
      %v626 = vunpack.c.l.b16 %v355
      %v627 = vunpack.c.l.b16 %v356
      %v628 = vunpack.c.l.b16 %v357
      %v629 = vunpack.c.l.b16 %v358
      %v630 = vunpack.c.l.b16 %v359
      %v631 = vunpack.c.l.b16 %v360
      %v632 = vunpack.c.l.b16 %v361
      %v633 = vunpack.c.l.b16 %v362
      %v634 = vunpack.c.l.b16 %v363
      %v635 = vunpack.c.l.b16 %v364
      %v636 = vunpack.c.l.b16 %v365
      %v637 = vunpack.c.l.b16 %v366
      %v638 = vunpack.c.l.b16 %v367
      %v639 = vunpack.c.l.b16 %v368
      %v640 = vunpack.c.l.b16 %v369
      %v641 = vunpack.c.l.b16 %v370
      %v642 = vunpack.c.l.b16 %v371
      %v643 = vunpack.c.l.b16 %v372
      %v644 = vunpack.c.l.b16 %v373
      %v645 = vunpack.c.l.b16 %v374
      %v646 = vunpack.c.l.b16 %v375
      %v647 = vunpack.c.l.b16 %v376
      %v648 = vunpack.c.l.b16 %v377
      %v649 = vunpack.c.l.b16 %v378
      %v650 = vunpack.c.l.b16 %v379
      %v651 = vunpack.c.l.b16 %v380
      %v652 = vunpack.c.l.b16 %v381
      %v653 = vunpack.c.l.b16 %v382
      %v654 = vunpack.c.l.b16 %v383
      %v655 = vunpack.c.l.b16 %v384
      %v656 = vunpack.c.l.b16 %v385
      %v657 = vunpack.c.l.b16 %v386
      %v658 = vunpack.c.l.b16 %v387
      %v659 = vunpack.c.l.b16 %v388
      %v660 = vunpack.c.l.b16 %v389
      %v661 = vunpack.c.l.b16 %v390
      %v662 = vunpack.c.l.b16 %v391
      %v663 = vunpack.c.l.b16 %v392
      %v664 = vpack.c.b16 %v585, %v584
      %v665 = vpack.c.b16 %v587, %v586
      %v666 = vpack.c.b16 %v589, %v588
      %v667 = vpack.c.b16 %v591, %v590
      %v668 = vpack.c.b16 %v593, %v592
      %v669 = vpack.c.b16 %v595, %v594
      %v670 = vpack.c.b16 %v597, %v596
      %v671 = vpack.c.b16 %v599, %v598
      %v672 = vpack.c.b16 %v601, %v600
      %v673 = vpack.c.b16 %v603, %v602
      %v674 = vpack.c.b16 %v605, %v604
      %v675 = vpack.c.b16 %v607, %v606
      %v676 = vpack.c.b16 %v609, %v608
      %v677 = vpack.c.b16 %v611, %v610
      %v678 = vpack.c.b16 %v613, %v612
      %v679 = vpack.c.b16 %v615, %v614
      %v680 = vpack.c.b16 %v617, %v616
      %v681 = vpack.c.b16 %v619, %v618
      %v682 = vpack.c.b16 %v621, %v620
      %v683 = vpack.c.b16 %v623, %v622
      %v684 = vpack.c.b16 %v625, %v624
      %v685 = vpack.c.b16 %v627, %v626
      %v686 = vpack.c.b16 %v629, %v628
      %v687 = vpack.c.b16 %v631, %v630
      %v688 = vpack.c.b16 %v633, %v632
      %v689 = vpack.c.b16 %v635, %v634
      %v690 = vpack.c.b16 %v637, %v636
      %v691 = vpack.c.b16 %v639, %v638
      %v692 = vpack.c.b16 %v641, %v640
      %v693 = vpack.c.b16 %v643, %v642
      %v694 = vpack.c.b16 %v645, %v644
      %v695 = vpack.c.b16 %v647, %v646
      %v696 = vpack.c.b16 %v649, %v648
      %v697 = vpack.c.b16 %v651, %v650
      %v698 = vpack.c.b16 %v653, %v652
      %v699 = vpack.c.b16 %v655, %v654
      %v700 = vpack.c.b16 %v657, %v656
      %v701 = vpack.c.b16 %v659, %v658
      %v702 = vpack.c.b16 %v661, %v660
      %v703 = vpack.c.b16 %v663, %v662
      %744 = vmatprep.subr.bf16.mxu0 0
      %745 = vmatpush1.bf16.msra.mxu0 %v664
      %746 = vmatprep.subr.bf16.mxu0 0
      %747 = vmatpush1.bf16.msra.mxu0 %v665
      %748 = vmatprep.subr.bf16.mxu0 0
      %749 = vmatpush1.bf16.msra.mxu0 %v666
      %750 = vmatprep.subr.bf16.mxu0 0
      %751 = vmatpush1.bf16.msra.mxu0 %v667
      %752 = vmatprep.subr.bf16.mxu0 0
      %753 = vmatpush1.bf16.msra.mxu0 %v668
      %754 = vmatprep.subr.bf16.mxu0 0
      %755 = vmatpush1.bf16.msra.mxu0 %v669
      %756 = vmatprep.subr.bf16.mxu0 0
      %757 = vmatpush1.bf16.msra.mxu0 %v670
      %758 = vmatprep.subr.bf16.mxu0 0
      %759 = vmatpush1.bf16.msra.mxu0 %v671
      %760 = vmatprep.subr.bf16.mxu0 0
      %761 = vmatpush1.bf16.msra.mxu0 %v672
      %762 = vmatprep.subr.bf16.mxu0 0
      %763 = vmatpush1.bf16.msra.mxu0 %v673
      %764 = vmatprep.subr.bf16.mxu0 0
      %765 = vmatpush1.bf16.msra.mxu0 %v674
      %766 = vmatprep.subr.bf16.mxu0 0
      %767 = vmatpush1.bf16.msra.mxu0 %v675
      %768 = vmatprep.subr.bf16.mxu0 0
      %769 = vmatpush1.bf16.msra.mxu0 %v676
      %770 = vmatprep.subr.bf16.mxu0 0
      %771 = vmatpush1.bf16.msra.mxu0 %v677
      %772 = vmatprep.subr.bf16.mxu0 0
      %773 = vmatpush1.bf16.msra.mxu0 %v678
      %774 = vmatprep.subr.bf16.mxu0 0
      %775 = vmatpush1.bf16.msra.mxu0 %v679
      %776 = vmatprep.mubr.bf16.mxu0 %v465
      %777 = vmatmul.mubr.bf16.gmra.mrb[0].mxu0 %v464
      %v778 = vpop.f32.mrb[0].mxu0
      %v779 = vadd.f32 %v398, %v778
      %v780 = vpop.f32.mrb[0].mxu0
      %v781 = vpop.f32.mrb[0].mxu0
      %v782 = vadd.f32 %v398, %v781
      %v783 = vpop.f32.mrb[0].mxu0
      %784 = vmatprep.mubr.bf16.mxu0 %v470
      %785 = vmatmul.mubr.bf16.gmra.mrb[0].mxu0 %v469
      %v786 = vpop.f32.mrb[0].mxu0
      %v787 = vadd.f32 %v398, %v786
      %v788 = vpop.f32.mrb[0].mxu0
      %v789 = vpop.f32.mrb[0].mxu0
      %v790 = vadd.f32 %v398, %v789
      %v791 = vpop.f32.mrb[0].mxu0
      %792 = vmatprep.mubr.bf16.mxu0 %v475
      %793 = vmatmul.mubr.bf16.gmra.mrb[0].mxu0 %v474
      %v794 = vpop.f32.mrb[0].mxu0
      %v795 = vadd.f32 %v398, %v794
      %v796 = vpop.f32.mrb[0].mxu0
      %v797 = vpop.f32.mrb[0].mxu0
      %v798 = vadd.f32 %v398, %v797
      %v799 = vpop.f32.mrb[0].mxu0
      %800 = vmatprep.mubr.bf16.mxu0 %v480
      %801 = vmatmul.mubr.bf16.gmra.mrb[0].mxu0 %v479
      %v802 = vpop.f32.mrb[0].mxu0
      %v803 = vadd.f32 %v398, %v802
      %v804 = vpop.f32.mrb[0].mxu0
      %v805 = vpop.f32.mrb[0].mxu0
      %v806 = vadd.f32 %v398, %v805
      %v807 = vpop.f32.mrb[0].mxu0
      %808 = vdwg.mxu0
      %809 = vmatprep.subr.bf16.mxu0 0
      %810 = vmatpush1.bf16.msra.mxu0 %v680
      %811 = vmatprep.subr.bf16.mxu0 0
      %812 = vmatpush1.bf16.msra.mxu0 %v681
      %813 = vmatprep.subr.bf16.mxu0 0
      %814 = vmatpush1.bf16.msra.mxu0 %v682
      %815 = vmatprep.subr.bf16.mxu0 0
      %816 = vmatpush1.bf16.msra.mxu0 %v683
      %817 = vmatprep.subr.bf16.mxu0 0
      %818 = vmatpush1.bf16.msra.mxu0 %v684
      %819 = vmatprep.subr.bf16.mxu0 0
      %820 = vmatpush1.bf16.msra.mxu0 %v685
      %821 = vmatprep.subr.bf16.mxu0 0
      %822 = vmatpush1.bf16.msra.mxu0 %v686
      %823 = vmatprep.subr.bf16.mxu0 0
      %824 = vmatpush1.bf16.msra.mxu0 %v687
      %825 = vmatprep.subr.bf16.mxu0 0
      %826 = vmatpush1.bf16.msra.mxu0 %v688
      %827 = vmatprep.subr.bf16.mxu0 0
      %828 = vmatpush1.bf16.msra.mxu0 %v689
      %829 = vmatprep.subr.bf16.mxu0 0
      %830 = vmatpush1.bf16.msra.mxu0 %v690
      %831 = vmatprep.subr.bf16.mxu0 0
      %832 = vmatpush1.bf16.msra.mxu0 %v691
      %833 = vmatprep.subr.bf16.mxu0 0
      %834 = vmatpush1.bf16.msra.mxu0 %v692
      %835 = vmatprep.subr.bf16.mxu0 0
      %836 = vmatpush1.bf16.msra.mxu0 %v693
      %837 = vmatprep.subr.bf16.mxu0 0
      %838 = vmatpush1.bf16.msra.mxu0 %v694
      %839 = vmatprep.subr.bf16.mxu0 0
      %840 = vmatpush1.bf16.msra.mxu0 %v695
      %841 = vmatprep.mubr.bf16.mxu0 %v467
      %842 = vmatmul.mubr.bf16.gmra.mrb[0].mxu0 %v466
      %v843 = vpop.f32.mrb[0].mxu0
      %v844 = vadd.f32 %v779, %v843
      %v845 = vpop.f32.mrb[0].mxu0
      %v846 = vpop.f32.mrb[0].mxu0
      %v847 = vadd.f32 %v782, %v846
      %v848 = vpop.f32.mrb[0].mxu0
      %849 = vmatprep.mubr.bf16.mxu0 %v472
      %850 = vmatmul.mubr.bf16.gmra.mrb[0].mxu0 %v471
      %v851 = vpop.f32.mrb[0].mxu0
      %v852 = vadd.f32 %v787, %v851
      %v853 = vpop.f32.mrb[0].mxu0
      %v854 = vpop.f32.mrb[0].mxu0
      %v855 = vadd.f32 %v790, %v854
      %v856 = vpop.f32.mrb[0].mxu0
      %857 = vmatprep.mubr.bf16.mxu0 %v477
      %858 = vmatmul.mubr.bf16.gmra.mrb[0].mxu0 %v476
      %v859 = vpop.f32.mrb[0].mxu0
      %v860 = vadd.f32 %v795, %v859
      %v861 = vpop.f32.mrb[0].mxu0
      %v862 = vpop.f32.mrb[0].mxu0
      %v863 = vadd.f32 %v798, %v862
      %v864 = vpop.f32.mrb[0].mxu0
      %865 = vmatprep.mubr.bf16.mxu0 %v482
      %866 = vmatmul.mubr.bf16.gmra.mrb[0].mxu0 %v481
      %v867 = vpop.f32.mrb[0].mxu0
      %v868 = vadd.f32 %v803, %v867
      %v869 = vpop.f32.mrb[0].mxu0
      %v870 = vpop.f32.mrb[0].mxu0
      %v871 = vadd.f32 %v806, %v870
      %v872 = vpop.f32.mrb[0].mxu0
      %873 = vdwg.mxu0
      %874 = vmatprep.subr.bf16.mxu0 0
      %875 = vmatpush1.bf16.msra.mxu0 %v696
      %876 = vmatprep.subr.bf16.mxu0 0
      %877 = vmatpush1.bf16.msra.mxu0 %v697
      %878 = vmatprep.subr.bf16.mxu0 0
      %879 = vmatpush1.bf16.msra.mxu0 %v698
      %880 = vmatprep.subr.bf16.mxu0 0
      %881 = vmatpush1.bf16.msra.mxu0 %v699
      %882 = vmatprep.subr.bf16.mxu0 0
      %883 = vmatpush1.bf16.msra.mxu0 %v700
      %884 = vmatprep.subr.bf16.mxu0 0
      %885 = vmatpush1.bf16.msra.mxu0 %v701
      %886 = vmatprep.subr.bf16.mxu0 0
      %887 = vmatpush1.bf16.msra.mxu0 %v702
      %888 = vmatprep.subr.bf16.mxu0 0
      %889 = vmatpush1.bf16.msra.mxu0 %v703
      %890 = vmatprep.subr.bf16.mxu0 0
      %891 = vmatpush1.bf16.msra.mxu0 0
      %892 = vmatprep.subr.bf16.mxu0 0
      %893 = vmatpush1.bf16.msra.mxu0 0
      %894 = vmatprep.subr.bf16.mxu0 0
      %895 = vmatpush1.bf16.msra.mxu0 0
      %896 = vmatprep.subr.bf16.mxu0 0
      %897 = vmatpush1.bf16.msra.mxu0 0
      %898 = vmatprep.subr.bf16.mxu0 0
      %899 = vmatpush1.bf16.msra.mxu0 0
      %900 = vmatprep.subr.bf16.mxu0 0
      %901 = vmatpush1.bf16.msra.mxu0 0
      %902 = vmatprep.subr.bf16.mxu0 0
      %903 = vmatpush1.bf16.msra.mxu0 0
      %904 = vmatprep.subr.bf16.mxu0 0
      %905 = vmatpush1.bf16.msra.mxu0 0
      %906 = vmatprep.mubr.bf16.mxu0 0
      %907 = vmatmul.mubr.bf16.gmra.mrb[0].mxu0 %v468
      %v908 = vpop.f32.mrb[0].mxu0
      %v909 = vadd.f32 %v844, %v908
      %v910 = vpop.f32.mrb[0].mxu0
      %v911 = vpop.f32.mrb[0].mxu0
      %v912 = vadd.f32 %v847, %v911
      %v913 = vpop.f32.mrb[0].mxu0
      %914 = vmatprep.mubr.bf16.mxu0 0
      %915 = vmatmul.mubr.bf16.gmra.mrb[0].mxu0 %v473
      %v916 = vpop.f32.mrb[0].mxu0
      %v917 = vadd.f32 %v852, %v916
      %v918 = vpop.f32.mrb[0].mxu0
      %v919 = vpop.f32.mrb[0].mxu0
      %v920 = vadd.f32 %v855, %v919
      %v921 = vpop.f32.mrb[0].mxu0
      %922 = vmatprep.mubr.bf16.mxu0 0
      %923 = vmatmul.mubr.bf16.gmra.mrb[0].mxu0 %v478
      %v924 = vpop.f32.mrb[0].mxu0
      %v925 = vadd.f32 %v860, %v924
      %v926 = vpop.f32.mrb[0].mxu0
      %v927 = vpop.f32.mrb[0].mxu0
      %v928 = vadd.f32 %v863, %v927
      %v929 = vpop.f32.mrb[0].mxu0
      %930 = vmatprep.mubr.bf16.mxu0 0
      %931 = vmatmul.mubr.bf16.gmra.mrb[0].mxu0 %v483
      %v932 = vpop.f32.mrb[0].mxu0
      %v933 = vadd.f32 %v868, %v932
      %v934 = vpop.f32.mrb[0].mxu0
      %v935 = vpop.f32.mrb[0].mxu0
      %v936 = vadd.f32 %v871, %v935
      %v937 = vpop.f32.mrb[0].mxu0
      %938 = vdwg.mxu0
      %v939 = vld [vmem:[%s277] sm:$0xf]
      %v940 = vld [vmem:[%s277 + $0x4] sm:$0xf]
      %v941 = vld [vmem:[%s277 + $0x8] sm:$0xf]
      %v942 = vld [vmem:[%s277 + $0xc] sm:$0xf]
      %v943 = vld [vmem:[%s277 + $0x10] sm:$0xf]
      %v944 = vld [vmem:[%s277 + $0x14] sm:$0xf]
      %v945 = vld [vmem:[%s277 + $0x18] sm:$0xf]
      %v946 = vld [vmem:[%s277 + $0x1c] sm:$0xf]
      %v947 = vunpack.c.l.bf16 %v939
      %v948 = vunpack.c.l.bf16 %v940
      %v949 = vunpack.c.l.bf16 %v941
      %v950 = vunpack.c.l.bf16 %v942
      %v951 = vunpack.c.l.bf16 %v943
      %v952 = vunpack.c.l.bf16 %v944
      %v953 = vunpack.c.l.bf16 %v945
      %v954 = vunpack.c.l.bf16 %v946
      %v955 = vadd.f32 %v909, %v947
      %v956 = vadd.f32 %v912, %v948
      %v957 = vadd.f32 %v917, %v949
      %v958 = vadd.f32 %v920, %v950
      %v959 = vadd.f32 %v925, %v951
      %v960 = vadd.f32 %v928, %v952
      %v961 = vadd.f32 %v933, %v953
      %v962 = vadd.f32 %v936, %v954
      %v963 = vmax.f32 %v955, 0.0
      %v964 = vmax.f32 %v956, 0.0
      %v965 = vmax.f32 %v957, 0.0
      %v966 = vmax.f32 %v958, 0.0
      %v967 = vmax.f32 %v959, 0.0
      %v968 = vmax.f32 %v960, 0.0
      %v969 = vmax.f32 %v961, 0.0
      %v970 = vmax.f32 %v962, 0.0
      %v971 = vpack.c.bf16 %v964, %v963
      %v972 = vpack.c.bf16 %v966, %v965
      %v973 = vpack.c.bf16 %v968, %v967
      %v974 = vpack.c.bf16 %v970, %v969
      %v979 = vunpack.c.l.b16 %v971
      %v980 = vunpack.c.h.b16 %v971
      %v981 = vunpack.c.l.b16 %v972
      %v982 = vunpack.c.h.b16 %v972
      %v983 = vunpack.c.l.b16 %v973
      %v984 = vunpack.c.h.b16 %v973
      %v985 = vunpack.c.l.b16 %v974
      %v986 = vunpack.c.h.b16 %v974
      %v987 = vpack.c.b16 %v979, %v979
      %v988 = vpack.c.b16 %v980, %v980
      %v989 = vpack.c.b16 %v981, %v981
      %v990 = vpack.c.b16 %v982, %v982
      %v991 = vpack.c.b16 %v983, %v983
      %v992 = vpack.c.b16 %v984, %v984
      %v993 = vpack.c.b16 %v985, %v985
      %v994 = vpack.c.b16 %v986, %v986
      %1003 = vst [vmem:[%s286] sm:$0xf] %v987
      %1004 = vst [vmem:[%s286 + $0x4] sm:$0xf] %v988
      %1005 = vst [vmem:[%s286 + $0x8] sm:$0xf] %v989
      %1006 = vst [vmem:[%s286 + $0xc] sm:$0xf] %v990
      %1007 = vst [vmem:[%s286 + $0x10] sm:$0xf] %v991
      %1008 = vst [vmem:[%s286 + $0x14] sm:$0xf] %v992
      %1009 = vst [vmem:[%s286 + $0x18] sm:$0xf] %v993
      %1010 = vst [vmem:[%s286 + $0x1c] sm:$0xf] %v994
      %s1011 = smul.u32 8, %s19
      %p1012 = scmp.lt.s32.totalorder %s1011, 15
      %s1013 = scalar_select %p1012, %s1011, 15
      %p1014 = scmp.lt.s32.totalorder %s20, 0
      %s1015 = scalar_select %p1014, %s20, 0
      %s1016 = sadd.s32 %s1015, %s1013
      %s1017 = smul.addr %s1016, 4
      %s1018 = scalar_lea.vmem %s4, %s1017
      // Predicated region
      $region37: #{resnet_forward.8} parent=35 // pred_check
        %p1019 = pneg %p153
      $region38: #{resnet_forward.8} parent=35 // pred_check_branch
        %1021 = sbr.rel (%p1019) target = $region40
      $region39: #{resnet_forward.8} parent=35 // pred_region
        %s1022 = smul.u32 8, %s19
      $region40: #{resnet_forward.8} parent=35 // pred_fallthru
        _
    $region36: #{resnet_forward.8} parent=5 // pred_fallthru
      _
    %p1023 = scmp.le.s32.totalorder 2, %s10
    // Predicated region
    $region41: #{resnet_forward.8} parent=5 // pred_check
      %p1024 = pneg %p1023
    $region42: #{resnet_forward.8} parent=5 // pred_check_branch
      %1026 = sbr.rel (%p1024) target = $region44
    $region43: #{resnet_forward.8} parent=5 // pred_region
      %s1027 = ssub.s32 %s10, 2
      // Predicated region
      $region45: #{resnet_forward.8} parent=43 // pred_check
        %p1028 = pneg %p159
      $region46: #{resnet_forward.8} parent=43 // pred_check_branch
        %1030 = sbr.rel (%p1028) target = $region48
      $region47: #{resnet_forward.8} parent=43 // pred_region
        %s1031 = smul.u32 8, %s21
        %p1032 = scmp.lt.s32.totalorder %s1031, 15
        %s1033 = scalar_select %p1032, %s1031, 15
        %p1034 = scmp.lt.s32.totalorder %s22, 0
        %s1035 = scalar_select %p1034, %s22, 0
        %s1036 = sadd.s32 %s1035, %s1033
        %s1037 = smul.addr %s1036, 4
        %s1038 = scalar_lea.vmem %s4, %s1037
      $region48: #{resnet_forward.8} parent=43 // pred_fallthru
        _
    $region44: #{resnet_forward.8} parent=5 // pred_fallthru
      _
  $region6: #{resnet_forward.8} parent=0 // loop_footer
    %s14 = sadd.s32 1, %s10
  $region7: #{resnet_forward.8} parent=0 // loop_footer_branch
    %9 = sbr.rel target = $region3
  $region8: #{resnet_forward.8} parent=0 // loop_exit
    _

// kernel: resnet_forward.9
$region0: #{resnet_forward.9}
  #allocation0 [shape = 'u32[]', space=smem, size = 0x4, offset = 0x4, fixed_abs, tag = 'smem constant byte address 0x4 - core index']
  #allocation1 [shape = 'u32[144,128]{1,0:T(1,128)}', space=vmem, size = 0x12000, scoped, tag = 'internal scratch']
  %s0 = inlined_call_operand.vmem [shape: bf16[32,640], index: 0, kind: input, shape index: {}]
  %s1 = inlined_call_operand.vmem [shape: bf16[640,128], index: 1, kind: input, shape index: {}]
  %s2 = inlined_call_operand.vmem [shape: f32[1,128], index: 2, kind: input, shape index: {}]
  %s3 = inlined_call_operand.vmem [shape: bf16[32,128], index: 3, kind: output, shape index: {}]
  %s4 = sld [smem:[#allocation0]]
  $region45: #{resnet_forward.9} parent=0
    _
  %s6 = ssub.s32 1, %s4
  %s7 = scalar_select 0, %s6, %s4
  loop: start=0, step=1, limit=4
  $region2: #{resnet_forward.9} parent=0 // loop_pre_header
    _
  $region3: #{resnet_forward.9} parent=0 // loop_header
    %s9 = sphi 0, %s13
    %p10 = scmp.ge.s32.totalorder %s9, 4
    %s16 = sphi 0, %s28
    %s17 = sphi 0, %s24
    %s18 = sphi 0, %s16
    %s19 = sphi 0, %s17
    %s20 = sphi 0, %s18
    %s21 = sphi 0, %s19
    %s31 = sphi 0, %s33
    %s34 = sphi 0, %s31
    %s35 = sphi 0, %s34
    %s51 = sphi 0, %s35
    %s57 = sphi 0, %s59
    %s60 = sphi 0, %s57
    %s61 = sphi 0, %s60
    %s77 = sphi 0, %s61
    %s83 = sphi 0, %s85
    %s86 = sphi 0, %s83
    %s87 = sphi 0, %s86
    %s103 = sphi 0, %s87
    %s111 = sphi 0, %s113
    %s114 = sphi 0, %s111
    %s115 = sphi 0, %s114
    %s131 = sphi 0, %s115
  $region4: #{resnet_forward.9} parent=0 // loop_header_branch
    %12 = sbr.rel (%p10) target = $region8
  $region5: #{resnet_forward.9} parent=0 // loop_body
    %s14 = ssub.s32 %s9, 1
    %s15 = ssub.s32 %s9, 2
    %s22 = sadd.s32 1, %s17
    %p23 = scmp.ge.s32.totalorder %s22, 1
    %s24 = scalar_select %p23, 0, %s22
    %s25 = sadd.s32 1, %s16
    %s26 = scalar_select %p23, %s25, %s16
    %p27 = scmp.ge.s32.totalorder %s26, 2
    %s28 = scalar_select %p27, 0, %s26
    %s29 = ssub.s32 %s16, %s28
    %p30 = scmp.eq.s32.totalorder %s29, 0
    %s32 = sadd.s32 %s31, 1
    %s33 = scalar_select %p30, %s31, %s32
    %p36 = pneg %p30
    %p37 = scmp.eq.s32.totalorder %s9, 1
    %p38 = por %p36, %p37
    %p39 = scmp.ne.s32.totalorder %s31, %s34
    %p40 = scmp.eq.s32.totalorder %s9, 0
    %p41 = por %p39, %p40
    %p42 = scmp.ne.s32.totalorder %s31, %s34
    %p43 = scmp.eq.s32.totalorder %s14, 1
    %p44 = por %p42, %p43
    %p45 = scmp.ne.s32.totalorder %s34, %s35
    %p46 = scmp.eq.s32.totalorder %s14, 0
    %p47 = por %p45, %p46
    %p48 = scmp.ne.s32.totalorder %s34, %s35
    %p49 = scmp.eq.s32.totalorder %s15, 1
    %p50 = por %p48, %p49
    %p52 = scmp.ne.s32.totalorder %s35, %s51
    %p53 = scmp.eq.s32.totalorder %s15, 0
    %p54 = por %p52, %p53
    %s55 = ssub.s32 %s17, %s24
    %p56 = scmp.eq.s32.totalorder %s55, 0
    %s58 = sadd.s32 %s57, 1
    %s59 = scalar_select %p56, %s57, %s58
    %p62 = pneg %p56
    %p63 = scmp.eq.s32.totalorder %s9, 1
    %p64 = por %p62, %p63
    %p65 = scmp.ne.s32.totalorder %s57, %s60
    %p66 = scmp.eq.s32.totalorder %s9, 0
    %p67 = por %p65, %p66
    %p68 = scmp.ne.s32.totalorder %s57, %s60
    %p69 = scmp.eq.s32.totalorder %s14, 1
    %p70 = por %p68, %p69
    %p71 = scmp.ne.s32.totalorder %s60, %s61
    %p72 = scmp.eq.s32.totalorder %s14, 0
    %p73 = por %p71, %p72
    %p74 = scmp.ne.s32.totalorder %s60, %s61
    %p75 = scmp.eq.s32.totalorder %s15, 1
    %p76 = por %p74, %p75
    %p78 = scmp.ne.s32.totalorder %s61, %s77
    %p79 = scmp.eq.s32.totalorder %s15, 0
    %p80 = por %p78, %p79
    %s81 = ssub.s32 %s17, %s24
    %p82 = scmp.eq.s32.totalorder %s81, 0
    %s84 = sadd.s32 %s83, 1
    %s85 = scalar_select %p82, %s83, %s84
    %p88 = pneg %p82
    %p89 = scmp.eq.s32.totalorder %s9, 1
    %p90 = por %p88, %p89
    %p91 = scmp.ne.s32.totalorder %s83, %s86
    %p92 = scmp.eq.s32.totalorder %s9, 0
    %p93 = por %p91, %p92
    %p94 = scmp.ne.s32.totalorder %s83, %s86
    %p95 = scmp.eq.s32.totalorder %s14, 1
    %p96 = por %p94, %p95
    %p97 = scmp.ne.s32.totalorder %s86, %s87
    %p98 = scmp.eq.s32.totalorder %s14, 0
    %p99 = por %p97, %p98
    %p100 = scmp.ne.s32.totalorder %s86, %s87
    %p101 = scmp.eq.s32.totalorder %s15, 1
    %p102 = por %p100, %p101
    %p104 = scmp.ne.s32.totalorder %s87, %s103
    %p105 = scmp.eq.s32.totalorder %s15, 0
    %p106 = por %p104, %p105
    %s107 = ssub.s32 %s16, %s28
    %s108 = ssub.s32 %s17, %s24
    %s109 = sor.u32 %s107, %s108
    %p110 = scmp.eq.s32.totalorder %s109, 0
    %s112 = sadd.s32 %s111, 1
    %s113 = scalar_select %p110, %s111, %s112
    %p116 = pneg %p110
    %p117 = scmp.eq.s32.totalorder %s9, 1
    %p118 = por %p116, %p117
    %p119 = scmp.ne.s32.totalorder %s111, %s114
    %p120 = scmp.eq.s32.totalorder %s9, 0
    %p121 = por %p119, %p120
    %p122 = scmp.ne.s32.totalorder %s111, %s114
    %p123 = scmp.eq.s32.totalorder %s14, 1
    %p124 = por %p122, %p123
    %p125 = scmp.ne.s32.totalorder %s114, %s115
    %p126 = scmp.eq.s32.totalorder %s14, 0
    %p127 = por %p125, %p126
    %p128 = scmp.ne.s32.totalorder %s114, %s115
    %p129 = scmp.eq.s32.totalorder %s15, 1
    %p130 = por %p128, %p129
    %p132 = scmp.ne.s32.totalorder %s115, %s131
    %p133 = scmp.eq.s32.totalorder %s15, 0
    %p134 = por %p132, %p133
    %p135 = scmp.le.s32.totalorder 1, %s9
    %p136 = scmp.lt.s32.totalorder %s9, 3
    %p137 = pnand %p135, %p136
    %p138 = pneg %p137
    // Predicated region
    $region9: #{resnet_forward.9} parent=5 // pred_check
      _
    $region10: #{resnet_forward.9} parent=5 // pred_check_branch
      %140 = sbr.rel (%p137) target = $region12
    $region11: #{resnet_forward.9} parent=5 // pred_region
      %s141 = ssub.s32 %s9, 1
      // Predicated region
      $region13: #{resnet_forward.9} parent=11 // pred_check
        %p142 = pneg %p73
      $region14: #{resnet_forward.9} parent=11 // pred_check_branch
        %144 = sbr.rel (%p142) target = $region16
      $region15: #{resnet_forward.9} parent=11 // pred_region
        %p145 = scmp.lt.s32.totalorder %s19, 0
        %s146 = scalar_select %p145, %s19, 0
        %s147 = smul.addr %s146, 4
        %s148 = scalar_lea.vmem %s1, %s147
      $region16: #{resnet_forward.9} parent=11 // pred_fallthru
        _
      // Predicated region
      $region17: #{resnet_forward.9} parent=11 // pred_check
        %p149 = pneg %p99
      $region18: #{resnet_forward.9} parent=11 // pred_check_branch
        %151 = sbr.rel (%p149) target = $region20
      $region19: #{resnet_forward.9} parent=11 // pred_region
        %p152 = scmp.lt.s32.totalorder %s19, 0
        %s153 = scalar_select %p152, %s19, 0
        %s154 = scalar_lea.vmem %s2, %s153
      $region20: #{resnet_forward.9} parent=11 // pred_fallthru
        _
    $region12: #{resnet_forward.9} parent=5 // pred_fallthru
      _
    %p155 = scmp.lt.s32.totalorder %s9, 2
    // Predicated region
    $region21: #{resnet_forward.9} parent=5 // pred_check
      %p156 = pneg %p155
    $region22: #{resnet_forward.9} parent=5 // pred_check_branch
      %158 = sbr.rel (%p156) target = $region24
    $region23: #{resnet_forward.9} parent=5 // pred_region
      // Predicated region
      $region25: #{resnet_forward.9} parent=23 // pred_check
        %p159 = pneg %p41
      $region26: #{resnet_forward.9} parent=23 // pred_check_branch
        %161 = sbr.rel (%p159) target = $region28
      $region27: #{resnet_forward.9} parent=23 // pred_region
        %s162 = smul.u32 2, %s16
        %p163 = scmp.lt.s32.totalorder %s162, 3
        %s164 = scalar_select %p163, %s162, 3
        %s165 = smul.addr %s164, 5
        %s166 = smul.addr %s165, 4
        %s167 = scalar_lea.vmem %s0, %s166
        %s168 = smul.u32 2, %s16
      $region28: #{resnet_forward.9} parent=23 // pred_fallthru
        _
    $region24: #{resnet_forward.9} parent=5 // pred_fallthru
      _
    %p169 = scmp.le.s32.totalorder 1, %s9
    %p170 = scmp.lt.s32.totalorder %s9, 3
    %p171 = pnand %p169, %p170
    %p172 = pneg %p171
    // Predicated region
    $region29: #{resnet_forward.9} parent=5 // pred_check
      _
    $region30: #{resnet_forward.9} parent=5 // pred_check_branch
      %174 = sbr.rel (%p171) target = $region32
    $region31: #{resnet_forward.9} parent=5 // pred_region
      %s175 = ssub.s32 %s9, 1
      %s176 = smul.u32 2, %s18
      %p177 = scmp.lt.s32.totalorder %s176, 3
      %s178 = scalar_select %p177, %s176, 3
      %s179 = smul.addr %s178, 5
      %s180 = smul.addr %s179, 4
      %s181 = scalar_lea.vmem %s0, %s180
      %p182 = pneg %p47
      %p183 = pneg %p44
      %p184 = scmp.lt.s32.totalorder %s19, 0
      %s185 = scalar_select %p184, %s19, 0
      %s186 = smul.addr %s185, 4
      %s187 = scalar_lea.vmem %s1, %s186
      %p188 = pneg %p73
      %p189 = pneg %p70
      %p190 = scmp.lt.s32.totalorder %s19, 0
      %s191 = scalar_select %p190, %s19, 0
      %s192 = scalar_lea.vmem %s2, %s191
      %p193 = pneg %p99
      %p194 = pneg %p96
      %p195 = pneg %p127
      %p196 = pneg %p124
      %s197 = smul.u32 2, %s18
      %p198 = scmp.lt.s32.totalorder %s197, 3
      %s199 = scalar_select %p198, %s197, 3
      %p200 = scmp.lt.s32.totalorder %s19, 0
      %s201 = scalar_select %p200, %s19, 0
      %s202 = sadd.s32 %s201, %s199
      %s203 = smul.addr %s202, 4
      %s204 = scalar_lea.vmem %s3, %s203
      %s205 = smul.u32 2, %s18
      %p206 = scmp.lt.s32.totalorder %s205, 3
      %s207 = scalar_select %p206, %s205, 3
      %s208 = smul.addr %s207, 5
      %s209 = smul.addr %s208, 4
      %s210 = scalar_lea.vmem %s0, %s209
      %s211 = smul.u32 2, %s18
      %p212 = scmp.lt.s32.totalorder %s19, 0
      %s213 = scalar_select %p212, %s19, 0
      %s214 = smul.addr %s213, 4
      %s215 = scalar_lea.vmem %s1, %s214
      %p216 = scmp.lt.s32.totalorder %s19, 0
      %s217 = scalar_select %p216, %s19, 0
      %s218 = scalar_lea.vmem %s2, %s217
      %s219 = smul.u32 2, %s18
      %p220 = scmp.lt.s32.totalorder %s219, 3
      %s221 = scalar_select %p220, %s219, 3
      %p222 = scmp.lt.s32.totalorder %s19, 0
      %s223 = scalar_select %p222, %s19, 0
      %s224 = sadd.s32 %s223, %s221
      %s225 = smul.addr %s224, 4
      %s226 = scalar_lea.vmem %s3, %s225
      %s227 = smul.u32 2, %s18
      %v229 = vld [vmem:[%s210] sm:$0xff]
      %v230 = vld [vmem:[%s210 + $0x8] sm:$0xff]
      %v231 = vld [vmem:[%s210 + $0x10] sm:$0xf]
      %v232 = vld [vmem:[%s210 + $0x14] sm:$0xff]
      %v233 = vld [vmem:[%s210 + $0x1c] sm:$0xff]
      %v234 = vld [vmem:[%s210 + $0x24] sm:$0xf]
      %v235 = vld [vmem:[%s215] sm:$0xf]
      %v236 = vld [vmem:[%s215 + $0x4] sm:$0xf]
      %v237 = vld [vmem:[%s215 + $0x8] sm:$0xf]
      %v238 = vld [vmem:[%s215 + $0xc] sm:$0xf]
      %v239 = vld [vmem:[%s215 + $0x10] sm:$0xf]
      %v240 = vld [vmem:[%s215 + $0x14] sm:$0xf]
      %v241 = vld [vmem:[%s215 + $0x18] sm:$0xf]
      %v242 = vld [vmem:[%s215 + $0x1c] sm:$0xf]
      %v243 = vld [vmem:[%s215 + $0x20] sm:$0xf]
      %v244 = vld [vmem:[%s215 + $0x24] sm:$0xf]
      %v245 = vld [vmem:[%s215 + $0x28] sm:$0xf]
      %v246 = vld [vmem:[%s215 + $0x2c] sm:$0xf]
      %v247 = vld [vmem:[%s215 + $0x30] sm:$0xf]
      %v248 = vld [vmem:[%s215 + $0x34] sm:$0xf]
      %v249 = vld [vmem:[%s215 + $0x38] sm:$0xf]
      %v250 = vld [vmem:[%s215 + $0x3c] sm:$0xf]
      %v251 = vld [vmem:[%s215 + $0x40] sm:$0xf]
      %v252 = vld [vmem:[%s215 + $0x44] sm:$0xf]
      %v253 = vld [vmem:[%s215 + $0x48] sm:$0xf]
      %v254 = vld [vmem:[%s215 + $0x4c] sm:$0xf]
      %v255 = vld [vmem:[%s215 + $0x50] sm:$0xf]
      %v256 = vld [vmem:[%s215 + $0x54] sm:$0xf]
      %v257 = vld [vmem:[%s215 + $0x58] sm:$0xf]
      %v258 = vld [vmem:[%s215 + $0x5c] sm:$0xf]
      %v259 = vld [vmem:[%s215 + $0x60] sm:$0xf]
      %v260 = vld [vmem:[%s215 + $0x64] sm:$0xf]
      %v261 = vld [vmem:[%s215 + $0x68] sm:$0xf]
      %v262 = vld [vmem:[%s215 + $0x6c] sm:$0xf]
      %v263 = vld [vmem:[%s215 + $0x70] sm:$0xf]
      %v264 = vld [vmem:[%s215 + $0x74] sm:$0xf]
      %v265 = vld [vmem:[%s215 + $0x78] sm:$0xf]
      %v266 = vld [vmem:[%s215 + $0x7c] sm:$0xf]
      %v267 = vld [vmem:[%s215 + $0x80] sm:$0xf]
      %v268 = vld [vmem:[%s215 + $0x84] sm:$0xf]
      %v269 = vld [vmem:[%s215 + $0x88] sm:$0xf]
      %v270 = vld [vmem:[%s215 + $0x8c] sm:$0xf]
      %v271 = vld [vmem:[%s215 + $0x90] sm:$0xf]
      %v272 = vld [vmem:[%s215 + $0x94] sm:$0xf]
      %v273 = vld [vmem:[%s215 + $0x98] sm:$0xf]
      %v274 = vld [vmem:[%s215 + $0x9c] sm:$0xf]
      %v275 = vld [vmem:[%s215 + $0xa0] sm:$0xf]
      %v276 = vld [vmem:[%s215 + $0xa4] sm:$0xf]
      %v277 = vld [vmem:[%s215 + $0xa8] sm:$0xf]
      %v278 = vld [vmem:[%s215 + $0xac] sm:$0xf]
      %v279 = vld [vmem:[%s215 + $0xb0] sm:$0xf]
      %v280 = vld [vmem:[%s215 + $0xb4] sm:$0xf]
      %v281 = vld [vmem:[%s215 + $0xb8] sm:$0xf]
      %v282 = vld [vmem:[%s215 + $0xbc] sm:$0xf]
      %v283 = vld [vmem:[%s215 + $0xc0] sm:$0xf]
      %v284 = vld [vmem:[%s215 + $0xc4] sm:$0xf]
      %v285 = vld [vmem:[%s215 + $0xc8] sm:$0xf]
      %v286 = vld [vmem:[%s215 + $0xcc] sm:$0xf]
      %v287 = vld [vmem:[%s215 + $0xd0] sm:$0xf]
      %v288 = vld [vmem:[%s215 + $0xd4] sm:$0xf]
      %v289 = vld [vmem:[%s215 + $0xd8] sm:$0xf]
      %v290 = vld [vmem:[%s215 + $0xdc] sm:$0xf]
      %v291 = vld [vmem:[%s215 + $0xe0] sm:$0xf]
      %v292 = vld [vmem:[%s215 + $0xe4] sm:$0xf]
      %v293 = vld [vmem:[%s215 + $0xe8] sm:$0xf]
      %v294 = vld [vmem:[%s215 + $0xec] sm:$0xf]
      %v295 = vld [vmem:[%s215 + $0xf0] sm:$0xf]
      %v296 = vld [vmem:[%s215 + $0xf4] sm:$0xf]
      %v297 = vld [vmem:[%s215 + $0xf8] sm:$0xf]
      %v298 = vld [vmem:[%s215 + $0xfc] sm:$0xf]
      %v299 = vld [vmem:[%s215 + $0x100] sm:$0xf]
      %v300 = vld [vmem:[%s215 + $0x104] sm:$0xf]
      %v301 = vld [vmem:[%s215 + $0x108] sm:$0xf]
      %v302 = vld [vmem:[%s215 + $0x10c] sm:$0xf]
      %v303 = vld [vmem:[%s215 + $0x110] sm:$0xf]
      %v304 = vld [vmem:[%s215 + $0x114] sm:$0xf]
      %v305 = vld [vmem:[%s215 + $0x118] sm:$0xf]
      %v306 = vld [vmem:[%s215 + $0x11c] sm:$0xf]
      %v307 = vld [vmem:[%s215 + $0x120] sm:$0xf]
      %v308 = vld [vmem:[%s215 + $0x124] sm:$0xf]
      %v309 = vld [vmem:[%s215 + $0x128] sm:$0xf]
      %v310 = vld [vmem:[%s215 + $0x12c] sm:$0xf]
      %v311 = vld [vmem:[%s215 + $0x130] sm:$0xf]
      %v312 = vld [vmem:[%s215 + $0x134] sm:$0xf]
      %v313 = vld [vmem:[%s215 + $0x138] sm:$0xf]
      %v314 = vld [vmem:[%s215 + $0x13c] sm:$0xf]
      %v315 = vld [vmem:[%s218] sm:$0x1]
      %v317 = vlaneseq
      %v318 = vshrl.u32 %v317, 7
      %v319 = vsub.s32 0, %v318
      %v320 = vrot.slane %v315, %v319
      %v328 = vunpack.c.l.b16 %v229
      %v329 = vunpack.c.h.b16 %v229
      %v330 = vunpack.c.l.b16 %v230
      %v331 = vunpack.c.h.b16 %v230
      %v332 = vunpack.c.l.b16 %v231
      %v333 = vunpack.c.l.b16 %v232
      %v334 = vunpack.c.h.b16 %v232
      %v335 = vunpack.c.l.b16 %v233
      %v336 = vunpack.c.h.b16 %v233
      %v337 = vunpack.c.l.b16 %v234
      %v338 = vpack.c.b16 %v333, %v328
      %v339 = vpack.c.b16 %v334, %v329
      %v340 = vpack.c.b16 %v335, %v330
      %v341 = vpack.c.b16 %v336, %v331
      %v342 = vpack.c.b16 %v337, %v332
      %v428 = vunpack.c.l.b16 %v235
      %v429 = vunpack.c.l.b16 %v236
      %v430 = vunpack.c.l.b16 %v237
      %v431 = vunpack.c.l.b16 %v238
      %v432 = vunpack.c.l.b16 %v239
      %v433 = vunpack.c.l.b16 %v240
      %v434 = vunpack.c.l.b16 %v241
      %v435 = vunpack.c.l.b16 %v242
      %v436 = vunpack.c.l.b16 %v243
      %v437 = vunpack.c.l.b16 %v244
      %v438 = vunpack.c.l.b16 %v245
      %v439 = vunpack.c.l.b16 %v246
      %v440 = vunpack.c.l.b16 %v247
      %v441 = vunpack.c.l.b16 %v248
      %v442 = vunpack.c.l.b16 %v249
      %v443 = vunpack.c.l.b16 %v250
      %v444 = vunpack.c.l.b16 %v251
      %v445 = vunpack.c.l.b16 %v252
      %v446 = vunpack.c.l.b16 %v253
      %v447 = vunpack.c.l.b16 %v254
      %v448 = vunpack.c.l.b16 %v255
      %v449 = vunpack.c.l.b16 %v256
      %v450 = vunpack.c.l.b16 %v257
      %v451 = vunpack.c.l.b16 %v258
      %v452 = vunpack.c.l.b16 %v259
      %v453 = vunpack.c.l.b16 %v260
      %v454 = vunpack.c.l.b16 %v261
      %v455 = vunpack.c.l.b16 %v262
      %v456 = vunpack.c.l.b16 %v263
      %v457 = vunpack.c.l.b16 %v264
      %v458 = vunpack.c.l.b16 %v265
      %v459 = vunpack.c.l.b16 %v266
      %v460 = vunpack.c.l.b16 %v267
      %v461 = vunpack.c.l.b16 %v268
      %v462 = vunpack.c.l.b16 %v269
      %v463 = vunpack.c.l.b16 %v270
      %v464 = vunpack.c.l.b16 %v271
      %v465 = vunpack.c.l.b16 %v272
      %v466 = vunpack.c.l.b16 %v273
      %v467 = vunpack.c.l.b16 %v274
      %v468 = vunpack.c.l.b16 %v275
      %v469 = vunpack.c.l.b16 %v276
      %v470 = vunpack.c.l.b16 %v277
      %v471 = vunpack.c.l.b16 %v278
      %v472 = vunpack.c.l.b16 %v279
      %v473 = vunpack.c.l.b16 %v280
      %v474 = vunpack.c.l.b16 %v281
      %v475 = vunpack.c.l.b16 %v282
      %v476 = vunpack.c.l.b16 %v283
      %v477 = vunpack.c.l.b16 %v284
      %v478 = vunpack.c.l.b16 %v285
      %v479 = vunpack.c.l.b16 %v286
      %v480 = vunpack.c.l.b16 %v287
      %v481 = vunpack.c.l.b16 %v288
      %v482 = vunpack.c.l.b16 %v289
      %v483 = vunpack.c.l.b16 %v290
      %v484 = vunpack.c.l.b16 %v291
      %v485 = vunpack.c.l.b16 %v292
      %v486 = vunpack.c.l.b16 %v293
      %v487 = vunpack.c.l.b16 %v294
      %v488 = vunpack.c.l.b16 %v295
      %v489 = vunpack.c.l.b16 %v296
      %v490 = vunpack.c.l.b16 %v297
      %v491 = vunpack.c.l.b16 %v298
      %v492 = vunpack.c.l.b16 %v299
      %v493 = vunpack.c.l.b16 %v300
      %v494 = vunpack.c.l.b16 %v301
      %v495 = vunpack.c.l.b16 %v302
      %v496 = vunpack.c.l.b16 %v303
      %v497 = vunpack.c.l.b16 %v304
      %v498 = vunpack.c.l.b16 %v305
      %v499 = vunpack.c.l.b16 %v306
      %v500 = vunpack.c.l.b16 %v307
      %v501 = vunpack.c.l.b16 %v308
      %v502 = vunpack.c.l.b16 %v309
      %v503 = vunpack.c.l.b16 %v310
      %v504 = vunpack.c.l.b16 %v311
      %v505 = vunpack.c.l.b16 %v312
      %v506 = vunpack.c.l.b16 %v313
      %v507 = vunpack.c.l.b16 %v314
      %v508 = vpack.c.b16 %v429, %v428
      %v509 = vpack.c.b16 %v431, %v430
      %v510 = vpack.c.b16 %v433, %v432
      %v511 = vpack.c.b16 %v435, %v434
      %v512 = vpack.c.b16 %v437, %v436
      %v513 = vpack.c.b16 %v439, %v438
      %v514 = vpack.c.b16 %v441, %v440
      %v515 = vpack.c.b16 %v443, %v442
      %v516 = vpack.c.b16 %v445, %v444
      %v517 = vpack.c.b16 %v447, %v446
      %v518 = vpack.c.b16 %v449, %v448
      %v519 = vpack.c.b16 %v451, %v450
      %v520 = vpack.c.b16 %v453, %v452
      %v521 = vpack.c.b16 %v455, %v454
      %v522 = vpack.c.b16 %v457, %v456
      %v523 = vpack.c.b16 %v459, %v458
      %v524 = vpack.c.b16 %v461, %v460
      %v525 = vpack.c.b16 %v463, %v462
      %v526 = vpack.c.b16 %v465, %v464
      %v527 = vpack.c.b16 %v467, %v466
      %v528 = vpack.c.b16 %v469, %v468
      %v529 = vpack.c.b16 %v471, %v470
      %v530 = vpack.c.b16 %v473, %v472
      %v531 = vpack.c.b16 %v475, %v474
      %v532 = vpack.c.b16 %v477, %v476
      %v533 = vpack.c.b16 %v479, %v478
      %v534 = vpack.c.b16 %v481, %v480
      %v535 = vpack.c.b16 %v483, %v482
      %v536 = vpack.c.b16 %v485, %v484
      %v537 = vpack.c.b16 %v487, %v486
      %v538 = vpack.c.b16 %v489, %v488
      %v539 = vpack.c.b16 %v491, %v490
      %v540 = vpack.c.b16 %v493, %v492
      %v541 = vpack.c.b16 %v495, %v494
      %v542 = vpack.c.b16 %v497, %v496
      %v543 = vpack.c.b16 %v499, %v498
      %v544 = vpack.c.b16 %v501, %v500
      %v545 = vpack.c.b16 %v503, %v502
      %v546 = vpack.c.b16 %v505, %v504
      %v547 = vpack.c.b16 %v507, %v506
      %588 = vmatprep.subr.bf16.mxu0 0
      %589 = vmatpush1.bf16.msra.mxu0 %v508
      %590 = vmatprep.subr.bf16.mxu0 0
      %591 = vmatpush1.bf16.msra.mxu0 %v509
      %592 = vmatprep.subr.bf16.mxu0 0
      %593 = vmatpush1.bf16.msra.mxu0 %v510
      %594 = vmatprep.subr.bf16.mxu0 0
      %595 = vmatpush1.bf16.msra.mxu0 %v511
      %596 = vmatprep.subr.bf16.mxu0 0
      %597 = vmatpush1.bf16.msra.mxu0 %v512
      %598 = vmatprep.subr.bf16.mxu0 0
      %599 = vmatpush1.bf16.msra.mxu0 %v513
      %600 = vmatprep.subr.bf16.mxu0 0
      %601 = vmatpush1.bf16.msra.mxu0 %v514
      %602 = vmatprep.subr.bf16.mxu0 0
      %603 = vmatpush1.bf16.msra.mxu0 %v515
      %604 = vmatprep.subr.bf16.mxu0 0
      %605 = vmatpush1.bf16.msra.mxu0 %v516
      %606 = vmatprep.subr.bf16.mxu0 0
      %607 = vmatpush1.bf16.msra.mxu0 %v517
      %608 = vmatprep.subr.bf16.mxu0 0
      %609 = vmatpush1.bf16.msra.mxu0 %v518
      %610 = vmatprep.subr.bf16.mxu0 0
      %611 = vmatpush1.bf16.msra.mxu0 %v519
      %612 = vmatprep.subr.bf16.mxu0 0
      %613 = vmatpush1.bf16.msra.mxu0 %v520
      %614 = vmatprep.subr.bf16.mxu0 0
      %615 = vmatpush1.bf16.msra.mxu0 %v521
      %616 = vmatprep.subr.bf16.mxu0 0
      %617 = vmatpush1.bf16.msra.mxu0 %v522
      %618 = vmatprep.subr.bf16.mxu0 0
      %619 = vmatpush1.bf16.msra.mxu0 %v523
      %620 = vmatprep.mubr.bf16.mxu0 %v339
      %621 = vmatmul.mubr.bf16.gmra.mrb[0].mxu0 %v338
      %v622 = vpop.f32.mrb[0].mxu0
      %v623 = vadd.f32 %v320, %v622
      %v624 = vpop.f32.mrb[0].mxu0
      %v625 = vpop.f32.mrb[0].mxu0
      %v626 = vadd.f32 %v320, %v625
      %v627 = vpop.f32.mrb[0].mxu0
      %628 = vdwg.mxu0
      %629 = vmatprep.subr.bf16.mxu0 0
      %630 = vmatpush1.bf16.msra.mxu0 %v524
      %631 = vmatprep.subr.bf16.mxu0 0
      %632 = vmatpush1.bf16.msra.mxu0 %v525
      %633 = vmatprep.subr.bf16.mxu0 0
      %634 = vmatpush1.bf16.msra.mxu0 %v526
      %635 = vmatprep.subr.bf16.mxu0 0
      %636 = vmatpush1.bf16.msra.mxu0 %v527
      %637 = vmatprep.subr.bf16.mxu0 0
      %638 = vmatpush1.bf16.msra.mxu0 %v528
      %639 = vmatprep.subr.bf16.mxu0 0
      %640 = vmatpush1.bf16.msra.mxu0 %v529
      %641 = vmatprep.subr.bf16.mxu0 0
      %642 = vmatpush1.bf16.msra.mxu0 %v530
      %643 = vmatprep.subr.bf16.mxu0 0
      %644 = vmatpush1.bf16.msra.mxu0 %v531
      %645 = vmatprep.subr.bf16.mxu0 0
      %646 = vmatpush1.bf16.msra.mxu0 %v532
      %647 = vmatprep.subr.bf16.mxu0 0
      %648 = vmatpush1.bf16.msra.mxu0 %v533
      %649 = vmatprep.subr.bf16.mxu0 0
      %650 = vmatpush1.bf16.msra.mxu0 %v534
      %651 = vmatprep.subr.bf16.mxu0 0
      %652 = vmatpush1.bf16.msra.mxu0 %v535
      %653 = vmatprep.subr.bf16.mxu0 0
      %654 = vmatpush1.bf16.msra.mxu0 %v536
      %655 = vmatprep.subr.bf16.mxu0 0
      %656 = vmatpush1.bf16.msra.mxu0 %v537
      %657 = vmatprep.subr.bf16.mxu0 0
      %658 = vmatpush1.bf16.msra.mxu0 %v538
      %659 = vmatprep.subr.bf16.mxu0 0
      %660 = vmatpush1.bf16.msra.mxu0 %v539
      %661 = vmatprep.mubr.bf16.mxu0 %v341
      %662 = vmatmul.mubr.bf16.gmra.mrb[0].mxu0 %v340
      %v663 = vpop.f32.mrb[0].mxu0
      %v664 = vadd.f32 %v623, %v663
      %v665 = vpop.f32.mrb[0].mxu0
      %v666 = vpop.f32.mrb[0].mxu0
      %v667 = vadd.f32 %v626, %v666
      %v668 = vpop.f32.mrb[0].mxu0
      %669 = vdwg.mxu0
      %670 = vmatprep.subr.bf16.mxu0 0
      %671 = vmatpush1.bf16.msra.mxu0 %v540
      %672 = vmatprep.subr.bf16.mxu0 0
      %673 = vmatpush1.bf16.msra.mxu0 %v541
      %674 = vmatprep.subr.bf16.mxu0 0
      %675 = vmatpush1.bf16.msra.mxu0 %v542
      %676 = vmatprep.subr.bf16.mxu0 0
      %677 = vmatpush1.bf16.msra.mxu0 %v543
      %678 = vmatprep.subr.bf16.mxu0 0
      %679 = vmatpush1.bf16.msra.mxu0 %v544
      %680 = vmatprep.subr.bf16.mxu0 0
      %681 = vmatpush1.bf16.msra.mxu0 %v545
      %682 = vmatprep.subr.bf16.mxu0 0
      %683 = vmatpush1.bf16.msra.mxu0 %v546
      %684 = vmatprep.subr.bf16.mxu0 0
      %685 = vmatpush1.bf16.msra.mxu0 %v547
      %686 = vmatprep.subr.bf16.mxu0 0
      %687 = vmatpush1.bf16.msra.mxu0 0
      %688 = vmatprep.subr.bf16.mxu0 0
      %689 = vmatpush1.bf16.msra.mxu0 0
      %690 = vmatprep.subr.bf16.mxu0 0
      %691 = vmatpush1.bf16.msra.mxu0 0
      %692 = vmatprep.subr.bf16.mxu0 0
      %693 = vmatpush1.bf16.msra.mxu0 0
      %694 = vmatprep.subr.bf16.mxu0 0
      %695 = vmatpush1.bf16.msra.mxu0 0
      %696 = vmatprep.subr.bf16.mxu0 0
      %697 = vmatpush1.bf16.msra.mxu0 0
      %698 = vmatprep.subr.bf16.mxu0 0
      %699 = vmatpush1.bf16.msra.mxu0 0
      %700 = vmatprep.subr.bf16.mxu0 0
      %701 = vmatpush1.bf16.msra.mxu0 0
      %702 = vmatprep.mubr.bf16.mxu0 0
      %703 = vmatmul.mubr.bf16.gmra.mrb[0].mxu0 %v342
      %v704 = vpop.f32.mrb[0].mxu0
      %v705 = vadd.f32 %v664, %v704
      %v706 = vpop.f32.mrb[0].mxu0
      %v707 = vpop.f32.mrb[0].mxu0
      %v708 = vadd.f32 %v667, %v707
      %v709 = vpop.f32.mrb[0].mxu0
      %710 = vdwg.mxu0
      %v711 = vmax.f32 %v705, 0.0
      %v712 = vmax.f32 %v708, 0.0
      %v713 = vpack.c.bf16 %v712, %v711
      %v715 = vunpack.c.l.b16 %v713
      %v716 = vunpack.c.h.b16 %v713
      %v717 = vpack.c.b16 %v715, %v715
      %v718 = vpack.c.b16 %v716, %v716
      %721 = vst [vmem:[%s226] sm:$0xf] %v717
      %722 = vst [vmem:[%s226 + $0x4] sm:$0xf] %v718
      %s723 = smul.u32 2, %s18
      %p724 = scmp.lt.s32.totalorder %s723, 3
      %s725 = scalar_select %p724, %s723, 3
      %p726 = scmp.lt.s32.totalorder %s19, 0
      %s727 = scalar_select %p726, %s19, 0
      %s728 = sadd.s32 %s727, %s725
      %s729 = smul.addr %s728, 4
      %s730 = scalar_lea.vmem %s3, %s729
      // Predicated region
      $region33: #{resnet_forward.9} parent=31 // pred_check
        %p731 = pneg %p124
      $region34: #{resnet_forward.9} parent=31 // pred_check_branch
        %733 = sbr.rel (%p731) target = $region36
      $region35: #{resnet_forward.9} parent=31 // pred_region
        %s734 = smul.u32 2, %s18
      $region36: #{resnet_forward.9} parent=31 // pred_fallthru
        _
    $region32: #{resnet_forward.9} parent=5 // pred_fallthru
      _
    %p735 = scmp.le.s32.totalorder 2, %s9
    // Predicated region
    $region37: #{resnet_forward.9} parent=5 // pred_check
      %p736 = pneg %p735
    $region38: #{resnet_forward.9} parent=5 // pred_check_branch
      %738 = sbr.rel (%p736) target = $region40
    $region39: #{resnet_forward.9} parent=5 // pred_region
      %s739 = ssub.s32 %s9, 2
      // Predicated region
      $region41: #{resnet_forward.9} parent=39 // pred_check
        %p740 = pneg %p130
      $region42: #{resnet_forward.9} parent=39 // pred_check_branch
        %742 = sbr.rel (%p740) target = $region44
      $region43: #{resnet_forward.9} parent=39 // pred_region
        %s743 = smul.u32 2, %s20
        %p744 = scmp.lt.s32.totalorder %s743, 3
        %s745 = scalar_select %p744, %s743, 3
        %p746 = scmp.lt.s32.totalorder %s21, 0
        %s747 = scalar_select %p746, %s21, 0
        %s748 = sadd.s32 %s747, %s745
        %s749 = smul.addr %s748, 4
        %s750 = scalar_lea.vmem %s3, %s749
      $region44: #{resnet_forward.9} parent=39 // pred_fallthru
        _
    $region40: #{resnet_forward.9} parent=5 // pred_fallthru
      _
  $region6: #{resnet_forward.9} parent=0 // loop_footer
    %s13 = sadd.s32 1, %s9
  $region7: #{resnet_forward.9} parent=0 // loop_footer_branch
    %8 = sbr.rel target = $region3
  $region8: #{resnet_forward.9} parent=0 // loop_exit
    _

// kernel: resnet_forward.10
$region0: #{resnet_forward.10}
  #allocation0 [shape = 'u32[]', space=smem, size = 0x4, offset = 0x4, fixed_abs, tag = 'smem constant byte address 0x4 - core index']
  #allocation1 [shape = 'u32[144,128]{1,0:T(1,128)}', space=vmem, size = 0x12000, scoped, tag = 'internal scratch']
  %s0 = inlined_call_operand.vmem [shape: bf16[32,128], index: 0, kind: input, shape index: {}]
  %s1 = inlined_call_operand.vmem [shape: bf16[128,128], index: 1, kind: input, shape index: {}]
  %s2 = inlined_call_operand.vmem [shape: f32[1,128], index: 2, kind: input, shape index: {}]
  %s3 = inlined_call_operand.vmem [shape: bf16[32,128], index: 3, kind: output, shape index: {}]
  %s4 = sld [smem:[#allocation0]]
  $region45: #{resnet_forward.10} parent=0
    _
  %s6 = ssub.s32 1, %s4
  %s7 = scalar_select 0, %s6, %s4
  loop: start=0, step=1, limit=4
  $region2: #{resnet_forward.10} parent=0 // loop_pre_header
    _
  $region3: #{resnet_forward.10} parent=0 // loop_header
    %s9 = sphi 0, %s13
    %p10 = scmp.ge.s32.totalorder %s9, 4
    %s16 = sphi 0, %s28
    %s17 = sphi 0, %s24
    %s18 = sphi 0, %s16
    %s19 = sphi 0, %s17
    %s20 = sphi 0, %s18
    %s21 = sphi 0, %s19
    %s31 = sphi 0, %s33
    %s34 = sphi 0, %s31
    %s35 = sphi 0, %s34
    %s51 = sphi 0, %s35
    %s57 = sphi 0, %s59
    %s60 = sphi 0, %s57
    %s61 = sphi 0, %s60
    %s77 = sphi 0, %s61
    %s83 = sphi 0, %s85
    %s86 = sphi 0, %s83
    %s87 = sphi 0, %s86
    %s103 = sphi 0, %s87
    %s111 = sphi 0, %s113
    %s114 = sphi 0, %s111
    %s115 = sphi 0, %s114
    %s131 = sphi 0, %s115
  $region4: #{resnet_forward.10} parent=0 // loop_header_branch
    %12 = sbr.rel (%p10) target = $region8
  $region5: #{resnet_forward.10} parent=0 // loop_body
    %s14 = ssub.s32 %s9, 1
    %s15 = ssub.s32 %s9, 2
    %s22 = sadd.s32 1, %s17
    %p23 = scmp.ge.s32.totalorder %s22, 1
    %s24 = scalar_select %p23, 0, %s22
    %s25 = sadd.s32 1, %s16
    %s26 = scalar_select %p23, %s25, %s16
    %p27 = scmp.ge.s32.totalorder %s26, 2
    %s28 = scalar_select %p27, 0, %s26
    %s29 = ssub.s32 %s16, %s28
    %p30 = scmp.eq.s32.totalorder %s29, 0
    %s32 = sadd.s32 %s31, 1
    %s33 = scalar_select %p30, %s31, %s32
    %p36 = pneg %p30
    %p37 = scmp.eq.s32.totalorder %s9, 1
    %p38 = por %p36, %p37
    %p39 = scmp.ne.s32.totalorder %s31, %s34
    %p40 = scmp.eq.s32.totalorder %s9, 0
    %p41 = por %p39, %p40
    %p42 = scmp.ne.s32.totalorder %s31, %s34
    %p43 = scmp.eq.s32.totalorder %s14, 1
    %p44 = por %p42, %p43
    %p45 = scmp.ne.s32.totalorder %s34, %s35
    %p46 = scmp.eq.s32.totalorder %s14, 0
    %p47 = por %p45, %p46
    %p48 = scmp.ne.s32.totalorder %s34, %s35
    %p49 = scmp.eq.s32.totalorder %s15, 1
    %p50 = por %p48, %p49
    %p52 = scmp.ne.s32.totalorder %s35, %s51
    %p53 = scmp.eq.s32.totalorder %s15, 0
    %p54 = por %p52, %p53
    %s55 = ssub.s32 %s17, %s24
    %p56 = scmp.eq.s32.totalorder %s55, 0
    %s58 = sadd.s32 %s57, 1
    %s59 = scalar_select %p56, %s57, %s58
    %p62 = pneg %p56
    %p63 = scmp.eq.s32.totalorder %s9, 1
    %p64 = por %p62, %p63
    %p65 = scmp.ne.s32.totalorder %s57, %s60
    %p66 = scmp.eq.s32.totalorder %s9, 0
    %p67 = por %p65, %p66
    %p68 = scmp.ne.s32.totalorder %s57, %s60
    %p69 = scmp.eq.s32.totalorder %s14, 1
    %p70 = por %p68, %p69
    %p71 = scmp.ne.s32.totalorder %s60, %s61
    %p72 = scmp.eq.s32.totalorder %s14, 0
    %p73 = por %p71, %p72
    %p74 = scmp.ne.s32.totalorder %s60, %s61
    %p75 = scmp.eq.s32.totalorder %s15, 1
    %p76 = por %p74, %p75
    %p78 = scmp.ne.s32.totalorder %s61, %s77
    %p79 = scmp.eq.s32.totalorder %s15, 0
    %p80 = por %p78, %p79
    %s81 = ssub.s32 %s17, %s24
    %p82 = scmp.eq.s32.totalorder %s81, 0
    %s84 = sadd.s32 %s83, 1
    %s85 = scalar_select %p82, %s83, %s84
    %p88 = pneg %p82
    %p89 = scmp.eq.s32.totalorder %s9, 1
    %p90 = por %p88, %p89
    %p91 = scmp.ne.s32.totalorder %s83, %s86
    %p92 = scmp.eq.s32.totalorder %s9, 0
    %p93 = por %p91, %p92
    %p94 = scmp.ne.s32.totalorder %s83, %s86
    %p95 = scmp.eq.s32.totalorder %s14, 1
    %p96 = por %p94, %p95
    %p97 = scmp.ne.s32.totalorder %s86, %s87
    %p98 = scmp.eq.s32.totalorder %s14, 0
    %p99 = por %p97, %p98
    %p100 = scmp.ne.s32.totalorder %s86, %s87
    %p101 = scmp.eq.s32.totalorder %s15, 1
    %p102 = por %p100, %p101
    %p104 = scmp.ne.s32.totalorder %s87, %s103
    %p105 = scmp.eq.s32.totalorder %s15, 0
    %p106 = por %p104, %p105
    %s107 = ssub.s32 %s16, %s28
    %s108 = ssub.s32 %s17, %s24
    %s109 = sor.u32 %s107, %s108
    %p110 = scmp.eq.s32.totalorder %s109, 0
    %s112 = sadd.s32 %s111, 1
    %s113 = scalar_select %p110, %s111, %s112
    %p116 = pneg %p110
    %p117 = scmp.eq.s32.totalorder %s9, 1
    %p118 = por %p116, %p117
    %p119 = scmp.ne.s32.totalorder %s111, %s114
    %p120 = scmp.eq.s32.totalorder %s9, 0
    %p121 = por %p119, %p120
    %p122 = scmp.ne.s32.totalorder %s111, %s114
    %p123 = scmp.eq.s32.totalorder %s14, 1
    %p124 = por %p122, %p123
    %p125 = scmp.ne.s32.totalorder %s114, %s115
    %p126 = scmp.eq.s32.totalorder %s14, 0
    %p127 = por %p125, %p126
    %p128 = scmp.ne.s32.totalorder %s114, %s115
    %p129 = scmp.eq.s32.totalorder %s15, 1
    %p130 = por %p128, %p129
    %p132 = scmp.ne.s32.totalorder %s115, %s131
    %p133 = scmp.eq.s32.totalorder %s15, 0
    %p134 = por %p132, %p133
    %p135 = scmp.le.s32.totalorder 1, %s9
    %p136 = scmp.lt.s32.totalorder %s9, 3
    %p137 = pnand %p135, %p136
    %p138 = pneg %p137
    // Predicated region
    $region9: #{resnet_forward.10} parent=5 // pred_check
      _
    $region10: #{resnet_forward.10} parent=5 // pred_check_branch
      %140 = sbr.rel (%p137) target = $region12
    $region11: #{resnet_forward.10} parent=5 // pred_region
      %s141 = ssub.s32 %s9, 1
      // Predicated region
      $region13: #{resnet_forward.10} parent=11 // pred_check
        %p142 = pneg %p73
      $region14: #{resnet_forward.10} parent=11 // pred_check_branch
        %144 = sbr.rel (%p142) target = $region16
      $region15: #{resnet_forward.10} parent=11 // pred_region
        %p145 = scmp.lt.s32.totalorder %s19, 0
        %s146 = scalar_select %p145, %s19, 0
        %s147 = smul.addr %s146, 4
        %s148 = scalar_lea.vmem %s1, %s147
      $region16: #{resnet_forward.10} parent=11 // pred_fallthru
        _
      // Predicated region
      $region17: #{resnet_forward.10} parent=11 // pred_check
        %p149 = pneg %p99
      $region18: #{resnet_forward.10} parent=11 // pred_check_branch
        %151 = sbr.rel (%p149) target = $region20
      $region19: #{resnet_forward.10} parent=11 // pred_region
        %p152 = scmp.lt.s32.totalorder %s19, 0
        %s153 = scalar_select %p152, %s19, 0
        %s154 = scalar_lea.vmem %s2, %s153
      $region20: #{resnet_forward.10} parent=11 // pred_fallthru
        _
    $region12: #{resnet_forward.10} parent=5 // pred_fallthru
      _
    %p155 = scmp.lt.s32.totalorder %s9, 2
    // Predicated region
    $region21: #{resnet_forward.10} parent=5 // pred_check
      %p156 = pneg %p155
    $region22: #{resnet_forward.10} parent=5 // pred_check_branch
      %158 = sbr.rel (%p156) target = $region24
    $region23: #{resnet_forward.10} parent=5 // pred_region
      // Predicated region
      $region25: #{resnet_forward.10} parent=23 // pred_check
        %p159 = pneg %p41
      $region26: #{resnet_forward.10} parent=23 // pred_check_branch
        %161 = sbr.rel (%p159) target = $region28
      $region27: #{resnet_forward.10} parent=23 // pred_region
        %s162 = smul.u32 2, %s16
        %p163 = scmp.lt.s32.totalorder %s162, 3
        %s164 = scalar_select %p163, %s162, 3
        %s165 = smul.addr %s164, 4
        %s166 = scalar_lea.vmem %s0, %s165
        %s167 = smul.u32 2, %s16
      $region28: #{resnet_forward.10} parent=23 // pred_fallthru
        _
    $region24: #{resnet_forward.10} parent=5 // pred_fallthru
      _
    %p168 = scmp.le.s32.totalorder 1, %s9
    %p169 = scmp.lt.s32.totalorder %s9, 3
    %p170 = pnand %p168, %p169
    %p171 = pneg %p170
    // Predicated region
    $region29: #{resnet_forward.10} parent=5 // pred_check
      _
    $region30: #{resnet_forward.10} parent=5 // pred_check_branch
      %173 = sbr.rel (%p170) target = $region32
    $region31: #{resnet_forward.10} parent=5 // pred_region
      %s174 = ssub.s32 %s9, 1
      %s175 = smul.u32 2, %s18
      %p176 = scmp.lt.s32.totalorder %s175, 3
      %s177 = scalar_select %p176, %s175, 3
      %s178 = smul.addr %s177, 4
      %s179 = scalar_lea.vmem %s0, %s178
      %p180 = pneg %p47
      %p181 = pneg %p44
      %p182 = scmp.lt.s32.totalorder %s19, 0
      %s183 = scalar_select %p182, %s19, 0
      %s184 = smul.addr %s183, 4
      %s185 = scalar_lea.vmem %s1, %s184
      %p186 = pneg %p73
      %p187 = pneg %p70
      %p188 = scmp.lt.s32.totalorder %s19, 0
      %s189 = scalar_select %p188, %s19, 0
      %s190 = scalar_lea.vmem %s2, %s189
      %p191 = pneg %p99
      %p192 = pneg %p96
      %p193 = pneg %p127
      %p194 = pneg %p124
      %s195 = smul.u32 2, %s18
      %p196 = scmp.lt.s32.totalorder %s195, 3
      %s197 = scalar_select %p196, %s195, 3
      %p198 = scmp.lt.s32.totalorder %s19, 0
      %s199 = scalar_select %p198, %s19, 0
      %s200 = sadd.s32 %s199, %s197
      %s201 = smul.addr %s200, 4
      %s202 = scalar_lea.vmem %s3, %s201
      %s203 = smul.u32 2, %s18
      %p204 = scmp.lt.s32.totalorder %s203, 3
      %s205 = scalar_select %p204, %s203, 3
      %s206 = smul.addr %s205, 4
      %s207 = scalar_lea.vmem %s0, %s206
      %s208 = smul.u32 2, %s18
      %p209 = scmp.lt.s32.totalorder %s19, 0
      %s210 = scalar_select %p209, %s19, 0
      %s211 = smul.addr %s210, 4
      %s212 = scalar_lea.vmem %s1, %s211
      %p213 = scmp.lt.s32.totalorder %s19, 0
      %s214 = scalar_select %p213, %s19, 0
      %s215 = scalar_lea.vmem %s2, %s214
      %s216 = smul.u32 2, %s18
      %p217 = scmp.lt.s32.totalorder %s216, 3
      %s218 = scalar_select %p217, %s216, 3
      %p219 = scmp.lt.s32.totalorder %s19, 0
      %s220 = scalar_select %p219, %s19, 0
      %s221 = sadd.s32 %s220, %s218
      %s222 = smul.addr %s221, 4
      %s223 = scalar_lea.vmem %s3, %s222
      %s224 = smul.u32 2, %s18
      %v226 = vld [vmem:[%s207] sm:$0xf]
      %v227 = vld [vmem:[%s207 + $0x4] sm:$0xf]
      %v228 = vld [vmem:[%s212] sm:$0xf]
      %v229 = vld [vmem:[%s212 + $0x4] sm:$0xf]
      %v230 = vld [vmem:[%s212 + $0x8] sm:$0xf]
      %v231 = vld [vmem:[%s212 + $0xc] sm:$0xf]
      %v232 = vld [vmem:[%s212 + $0x10] sm:$0xf]
      %v233 = vld [vmem:[%s212 + $0x14] sm:$0xf]
      %v234 = vld [vmem:[%s212 + $0x18] sm:$0xf]
      %v235 = vld [vmem:[%s212 + $0x1c] sm:$0xf]
      %v236 = vld [vmem:[%s212 + $0x20] sm:$0xf]
      %v237 = vld [vmem:[%s212 + $0x24] sm:$0xf]
      %v238 = vld [vmem:[%s212 + $0x28] sm:$0xf]
      %v239 = vld [vmem:[%s212 + $0x2c] sm:$0xf]
      %v240 = vld [vmem:[%s212 + $0x30] sm:$0xf]
      %v241 = vld [vmem:[%s212 + $0x34] sm:$0xf]
      %v242 = vld [vmem:[%s212 + $0x38] sm:$0xf]
      %v243 = vld [vmem:[%s212 + $0x3c] sm:$0xf]
      %v244 = vld [vmem:[%s215] sm:$0x1]
      %v246 = vlaneseq
      %v247 = vshrl.u32 %v246, 7
      %v248 = vsub.s32 0, %v247
      %v249 = vrot.slane %v244, %v248
      %v253 = vunpack.c.l.b16 %v226
      %v254 = vunpack.c.l.b16 %v227
      %v255 = vpack.c.b16 %v254, %v253
      %v273 = vunpack.c.l.b16 %v228
      %v274 = vunpack.c.l.b16 %v229
      %v275 = vunpack.c.l.b16 %v230
      %v276 = vunpack.c.l.b16 %v231
      %v277 = vunpack.c.l.b16 %v232
      %v278 = vunpack.c.l.b16 %v233
      %v279 = vunpack.c.l.b16 %v234
      %v280 = vunpack.c.l.b16 %v235
      %v281 = vunpack.c.l.b16 %v236
      %v282 = vunpack.c.l.b16 %v237
      %v283 = vunpack.c.l.b16 %v238
      %v284 = vunpack.c.l.b16 %v239
      %v285 = vunpack.c.l.b16 %v240
      %v286 = vunpack.c.l.b16 %v241
      %v287 = vunpack.c.l.b16 %v242
      %v288 = vunpack.c.l.b16 %v243
      %v289 = vpack.c.b16 %v274, %v273
      %v290 = vpack.c.b16 %v276, %v275
      %v291 = vpack.c.b16 %v278, %v277
      %v292 = vpack.c.b16 %v280, %v279
      %v293 = vpack.c.b16 %v282, %v281
      %v294 = vpack.c.b16 %v284, %v283
      %v295 = vpack.c.b16 %v286, %v285
      %v296 = vpack.c.b16 %v288, %v287
      %305 = vmatprep.subr.bf16.mxu0 0
      %306 = vmatpush1.bf16.msra.mxu0 %v289
      %307 = vmatprep.subr.bf16.mxu0 0
      %308 = vmatpush1.bf16.msra.mxu0 %v290
      %309 = vmatprep.subr.bf16.mxu0 0
      %310 = vmatpush1.bf16.msra.mxu0 %v291
      %311 = vmatprep.subr.bf16.mxu0 0
      %312 = vmatpush1.bf16.msra.mxu0 %v292
      %313 = vmatprep.subr.bf16.mxu0 0
      %314 = vmatpush1.bf16.msra.mxu0 %v293
      %315 = vmatprep.subr.bf16.mxu0 0
      %316 = vmatpush1.bf16.msra.mxu0 %v294
      %317 = vmatprep.subr.bf16.mxu0 0
      %318 = vmatpush1.bf16.msra.mxu0 %v295
      %319 = vmatprep.subr.bf16.mxu0 0
      %320 = vmatpush1.bf16.msra.mxu0 %v296
      %321 = vmatprep.subr.bf16.mxu0 0
      %322 = vmatpush1.bf16.msra.mxu0 0
      %323 = vmatprep.subr.bf16.mxu0 0
      %324 = vmatpush1.bf16.msra.mxu0 0
      %325 = vmatprep.subr.bf16.mxu0 0
      %326 = vmatpush1.bf16.msra.mxu0 0
      %327 = vmatprep.subr.bf16.mxu0 0
      %328 = vmatpush1.bf16.msra.mxu0 0
      %329 = vmatprep.subr.bf16.mxu0 0
      %330 = vmatpush1.bf16.msra.mxu0 0
      %331 = vmatprep.subr.bf16.mxu0 0
      %332 = vmatpush1.bf16.msra.mxu0 0
      %333 = vmatprep.subr.bf16.mxu0 0
      %334 = vmatpush1.bf16.msra.mxu0 0
      %335 = vmatprep.subr.bf16.mxu0 0
      %336 = vmatpush1.bf16.msra.mxu0 0
      %337 = vmatprep.mubr.bf16.mxu0 0
      %338 = vmatmul.mubr.bf16.gmra.mrb[0].mxu0 %v255
      %v339 = vpop.f32.mrb[0].mxu0
      %v340 = vadd.f32 %v249, %v339
      %v341 = vpop.f32.mrb[0].mxu0
      %v342 = vpop.f32.mrb[0].mxu0
      %v343 = vadd.f32 %v249, %v342
      %v344 = vpop.f32.mrb[0].mxu0
      %345 = vdwg.mxu0
      %v346 = vpack.c.bf16 %v343, %v340
      %v348 = vunpack.c.l.b16 %v346
      %v349 = vunpack.c.h.b16 %v346
      %v350 = vpack.c.b16 %v348, %v348
      %v351 = vpack.c.b16 %v349, %v349
      %354 = vst [vmem:[%s223] sm:$0xf] %v350
      %355 = vst [vmem:[%s223 + $0x4] sm:$0xf] %v351
      %s356 = smul.u32 2, %s18
      %p357 = scmp.lt.s32.totalorder %s356, 3
      %s358 = scalar_select %p357, %s356, 3
      %p359 = scmp.lt.s32.totalorder %s19, 0
      %s360 = scalar_select %p359, %s19, 0
      %s361 = sadd.s32 %s360, %s358
      %s362 = smul.addr %s361, 4
      %s363 = scalar_lea.vmem %s3, %s362
      // Predicated region
      $region33: #{resnet_forward.10} parent=31 // pred_check
        %p364 = pneg %p124
      $region34: #{resnet_forward.10} parent=31 // pred_check_branch
        %366 = sbr.rel (%p364) target = $region36
      $region35: #{resnet_forward.10} parent=31 // pred_region
        %s367 = smul.u32 2, %s18
      $region36: #{resnet_forward.10} parent=31 // pred_fallthru
        _
    $region32: #{resnet_forward.10} parent=5 // pred_fallthru
      _
    %p368 = scmp.le.s32.totalorder 2, %s9
    // Predicated region
    $region37: #{resnet_forward.10} parent=5 // pred_check
      %p369 = pneg %p368
    $region38: #{resnet_forward.10} parent=5 // pred_check_branch
      %371 = sbr.rel (%p369) target = $region40
    $region39: #{resnet_forward.10} parent=5 // pred_region
      %s372 = ssub.s32 %s9, 2
      // Predicated region
      $region41: #{resnet_forward.10} parent=39 // pred_check
        %p373 = pneg %p130
      $region42: #{resnet_forward.10} parent=39 // pred_check_branch
        %375 = sbr.rel (%p373) target = $region44
      $region43: #{resnet_forward.10} parent=39 // pred_region
        %s376 = smul.u32 2, %s20
        %p377 = scmp.lt.s32.totalorder %s376, 3
        %s378 = scalar_select %p377, %s376, 3
        %p379 = scmp.lt.s32.totalorder %s21, 0
        %s380 = scalar_select %p379, %s21, 0
        %s381 = sadd.s32 %s380, %s378
        %s382 = smul.addr %s381, 4
        %s383 = scalar_lea.vmem %s3, %s382
      $region44: #{resnet_forward.10} parent=39 // pred_fallthru
        _
    $region40: #{resnet_forward.10} parent=5 // pred_fallthru
      _
  $region6: #{resnet_forward.10} parent=0 // loop_footer
    %s13 = sadd.s32 1, %s9
  $region7: #{resnet_forward.10} parent=0 // loop_footer_branch
    %8 = sbr.rel target = $region3
  $region8: #{resnet_forward.10} parent=0 // loop_exit
    _

// kernel: resnet_forward.11
$region0: #{resnet_forward.11}
  #allocation0 [shape = 'u32[]', space=smem, size = 0x4, offset = 0x4, fixed_abs, tag = 'smem constant byte address 0x4 - core index']
  #allocation1 [shape = 'u32[144,128]{1,0:T(1,128)}', space=vmem, size = 0x12000, scoped, tag = 'internal scratch']
  %s0 = inlined_call_operand.vmem [shape: bf16[32,1152], index: 0, kind: input, shape index: {}]
  %s1 = inlined_call_operand.vmem [shape: bf16[1152,128], index: 1, kind: input, shape index: {}]
  %s2 = inlined_call_operand.vmem [shape: f32[1,128], index: 2, kind: input, shape index: {}]
  %s3 = inlined_call_operand.vmem [shape: bf16[32,128], index: 3, kind: input, shape index: {}]
  %s4 = inlined_call_operand.vmem [shape: bf16[32,128], index: 4, kind: output, shape index: {}]
  %s5 = sld [smem:[#allocation0]]
  $region49: #{resnet_forward.11} parent=0
    _
  %s7 = ssub.s32 1, %s5
  %s8 = scalar_select 0, %s7, %s5
  loop: start=0, step=1, limit=4
  $region2: #{resnet_forward.11} parent=0 // loop_pre_header
    _
  $region3: #{resnet_forward.11} parent=0 // loop_header
    %s10 = sphi 0, %s14
    %p11 = scmp.ge.s32.totalorder %s10, 4
    %s17 = sphi 0, %s29
    %s18 = sphi 0, %s25
    %s19 = sphi 0, %s17
    %s20 = sphi 0, %s18
    %s21 = sphi 0, %s19
    %s22 = sphi 0, %s20
    %s32 = sphi 0, %s34
    %s35 = sphi 0, %s32
    %s36 = sphi 0, %s35
    %s52 = sphi 0, %s36
    %s58 = sphi 0, %s60
    %s61 = sphi 0, %s58
    %s62 = sphi 0, %s61
    %s78 = sphi 0, %s62
    %s84 = sphi 0, %s86
    %s87 = sphi 0, %s84
    %s88 = sphi 0, %s87
    %s104 = sphi 0, %s88
    %s112 = sphi 0, %s114
    %s115 = sphi 0, %s112
    %s116 = sphi 0, %s115
    %s132 = sphi 0, %s116
    %s140 = sphi 0, %s142
    %s143 = sphi 0, %s140
    %s144 = sphi 0, %s143
    %s160 = sphi 0, %s144
  $region4: #{resnet_forward.11} parent=0 // loop_header_branch
    %13 = sbr.rel (%p11) target = $region8
  $region5: #{resnet_forward.11} parent=0 // loop_body
    %s15 = ssub.s32 %s10, 1
    %s16 = ssub.s32 %s10, 2
    %s23 = sadd.s32 1, %s18
    %p24 = scmp.ge.s32.totalorder %s23, 1
    %s25 = scalar_select %p24, 0, %s23
    %s26 = sadd.s32 1, %s17
    %s27 = scalar_select %p24, %s26, %s17
    %p28 = scmp.ge.s32.totalorder %s27, 2
    %s29 = scalar_select %p28, 0, %s27
    %s30 = ssub.s32 %s17, %s29
    %p31 = scmp.eq.s32.totalorder %s30, 0
    %s33 = sadd.s32 %s32, 1
    %s34 = scalar_select %p31, %s32, %s33
    %p37 = pneg %p31
    %p38 = scmp.eq.s32.totalorder %s10, 1
    %p39 = por %p37, %p38
    %p40 = scmp.ne.s32.totalorder %s32, %s35
    %p41 = scmp.eq.s32.totalorder %s10, 0
    %p42 = por %p40, %p41
    %p43 = scmp.ne.s32.totalorder %s32, %s35
    %p44 = scmp.eq.s32.totalorder %s15, 1
    %p45 = por %p43, %p44
    %p46 = scmp.ne.s32.totalorder %s35, %s36
    %p47 = scmp.eq.s32.totalorder %s15, 0
    %p48 = por %p46, %p47
    %p49 = scmp.ne.s32.totalorder %s35, %s36
    %p50 = scmp.eq.s32.totalorder %s16, 1
    %p51 = por %p49, %p50
    %p53 = scmp.ne.s32.totalorder %s36, %s52
    %p54 = scmp.eq.s32.totalorder %s16, 0
    %p55 = por %p53, %p54
    %s56 = ssub.s32 %s18, %s25
    %p57 = scmp.eq.s32.totalorder %s56, 0
    %s59 = sadd.s32 %s58, 1
    %s60 = scalar_select %p57, %s58, %s59
    %p63 = pneg %p57
    %p64 = scmp.eq.s32.totalorder %s10, 1
    %p65 = por %p63, %p64
    %p66 = scmp.ne.s32.totalorder %s58, %s61
    %p67 = scmp.eq.s32.totalorder %s10, 0
    %p68 = por %p66, %p67
    %p69 = scmp.ne.s32.totalorder %s58, %s61
    %p70 = scmp.eq.s32.totalorder %s15, 1
    %p71 = por %p69, %p70
    %p72 = scmp.ne.s32.totalorder %s61, %s62
    %p73 = scmp.eq.s32.totalorder %s15, 0
    %p74 = por %p72, %p73
    %p75 = scmp.ne.s32.totalorder %s61, %s62
    %p76 = scmp.eq.s32.totalorder %s16, 1
    %p77 = por %p75, %p76
    %p79 = scmp.ne.s32.totalorder %s62, %s78
    %p80 = scmp.eq.s32.totalorder %s16, 0
    %p81 = por %p79, %p80
    %s82 = ssub.s32 %s18, %s25
    %p83 = scmp.eq.s32.totalorder %s82, 0
    %s85 = sadd.s32 %s84, 1
    %s86 = scalar_select %p83, %s84, %s85
    %p89 = pneg %p83
    %p90 = scmp.eq.s32.totalorder %s10, 1
    %p91 = por %p89, %p90
    %p92 = scmp.ne.s32.totalorder %s84, %s87
    %p93 = scmp.eq.s32.totalorder %s10, 0
    %p94 = por %p92, %p93
    %p95 = scmp.ne.s32.totalorder %s84, %s87
    %p96 = scmp.eq.s32.totalorder %s15, 1
    %p97 = por %p95, %p96
    %p98 = scmp.ne.s32.totalorder %s87, %s88
    %p99 = scmp.eq.s32.totalorder %s15, 0
    %p100 = por %p98, %p99
    %p101 = scmp.ne.s32.totalorder %s87, %s88
    %p102 = scmp.eq.s32.totalorder %s16, 1
    %p103 = por %p101, %p102
    %p105 = scmp.ne.s32.totalorder %s88, %s104
    %p106 = scmp.eq.s32.totalorder %s16, 0
    %p107 = por %p105, %p106
    %s108 = ssub.s32 %s17, %s29
    %s109 = ssub.s32 %s18, %s25
    %s110 = sor.u32 %s108, %s109
    %p111 = scmp.eq.s32.totalorder %s110, 0
    %s113 = sadd.s32 %s112, 1
    %s114 = scalar_select %p111, %s112, %s113
    %p117 = pneg %p111
    %p118 = scmp.eq.s32.totalorder %s10, 1
    %p119 = por %p117, %p118
    %p120 = scmp.ne.s32.totalorder %s112, %s115
    %p121 = scmp.eq.s32.totalorder %s10, 0
    %p122 = por %p120, %p121
    %p123 = scmp.ne.s32.totalorder %s112, %s115
    %p124 = scmp.eq.s32.totalorder %s15, 1
    %p125 = por %p123, %p124
    %p126 = scmp.ne.s32.totalorder %s115, %s116
    %p127 = scmp.eq.s32.totalorder %s15, 0
    %p128 = por %p126, %p127
    %p129 = scmp.ne.s32.totalorder %s115, %s116
    %p130 = scmp.eq.s32.totalorder %s16, 1
    %p131 = por %p129, %p130
    %p133 = scmp.ne.s32.totalorder %s116, %s132
    %p134 = scmp.eq.s32.totalorder %s16, 0
    %p135 = por %p133, %p134
    %s136 = ssub.s32 %s17, %s29
    %s137 = ssub.s32 %s18, %s25
    %s138 = sor.u32 %s136, %s137
    %p139 = scmp.eq.s32.totalorder %s138, 0
    %s141 = sadd.s32 %s140, 1
    %s142 = scalar_select %p139, %s140, %s141
    %p145 = pneg %p139
    %p146 = scmp.eq.s32.totalorder %s10, 1
    %p147 = por %p145, %p146
    %p148 = scmp.ne.s32.totalorder %s140, %s143
    %p149 = scmp.eq.s32.totalorder %s10, 0
    %p150 = por %p148, %p149
    %p151 = scmp.ne.s32.totalorder %s140, %s143
    %p152 = scmp.eq.s32.totalorder %s15, 1
    %p153 = por %p151, %p152
    %p154 = scmp.ne.s32.totalorder %s143, %s144
    %p155 = scmp.eq.s32.totalorder %s15, 0
    %p156 = por %p154, %p155
    %p157 = scmp.ne.s32.totalorder %s143, %s144
    %p158 = scmp.eq.s32.totalorder %s16, 1
    %p159 = por %p157, %p158
    %p161 = scmp.ne.s32.totalorder %s144, %s160
    %p162 = scmp.eq.s32.totalorder %s16, 0
    %p163 = por %p161, %p162
    %p164 = scmp.le.s32.totalorder 1, %s10
    %p165 = scmp.lt.s32.totalorder %s10, 3
    %p166 = pnand %p164, %p165
    %p167 = pneg %p166
    // Predicated region
    $region9: #{resnet_forward.11} parent=5 // pred_check
      _
    $region10: #{resnet_forward.11} parent=5 // pred_check_branch
      %169 = sbr.rel (%p166) target = $region12
    $region11: #{resnet_forward.11} parent=5 // pred_region
      %s170 = ssub.s32 %s10, 1
      // Predicated region
      $region13: #{resnet_forward.11} parent=11 // pred_check
        %p171 = pneg %p74
      $region14: #{resnet_forward.11} parent=11 // pred_check_branch
        %173 = sbr.rel (%p171) target = $region16
      $region15: #{resnet_forward.11} parent=11 // pred_region
        %p174 = scmp.lt.s32.totalorder %s20, 0
        %s175 = scalar_select %p174, %s20, 0
        %s176 = smul.addr %s175, 4
        %s177 = scalar_lea.vmem %s1, %s176
      $region16: #{resnet_forward.11} parent=11 // pred_fallthru
        _
      // Predicated region
      $region17: #{resnet_forward.11} parent=11 // pred_check
        %p178 = pneg %p100
      $region18: #{resnet_forward.11} parent=11 // pred_check_branch
        %180 = sbr.rel (%p178) target = $region20
      $region19: #{resnet_forward.11} parent=11 // pred_region
        %p181 = scmp.lt.s32.totalorder %s20, 0
        %s182 = scalar_select %p181, %s20, 0
        %s183 = scalar_lea.vmem %s2, %s182
      $region20: #{resnet_forward.11} parent=11 // pred_fallthru
        _
    $region12: #{resnet_forward.11} parent=5 // pred_fallthru
      _
    %p184 = scmp.lt.s32.totalorder %s10, 2
    // Predicated region
    $region21: #{resnet_forward.11} parent=5 // pred_check
      %p185 = pneg %p184
    $region22: #{resnet_forward.11} parent=5 // pred_check_branch
      %187 = sbr.rel (%p185) target = $region24
    $region23: #{resnet_forward.11} parent=5 // pred_region
      // Predicated region
      $region25: #{resnet_forward.11} parent=23 // pred_check
        %p188 = pneg %p42
      $region26: #{resnet_forward.11} parent=23 // pred_check_branch
        %190 = sbr.rel (%p188) target = $region28
      $region27: #{resnet_forward.11} parent=23 // pred_region
        %s191 = smul.u32 2, %s17
        %p192 = scmp.lt.s32.totalorder %s191, 3
        %s193 = scalar_select %p192, %s191, 3
        %s194 = smul.addr %s193, 9
        %s195 = smul.addr %s194, 4
        %s196 = scalar_lea.vmem %s0, %s195
        %s197 = smul.u32 2, %s17
      $region28: #{resnet_forward.11} parent=23 // pred_fallthru
        _
      // Predicated region
      $region29: #{resnet_forward.11} parent=23 // pred_check
        %p198 = pneg %p122
      $region30: #{resnet_forward.11} parent=23 // pred_check_branch
        %200 = sbr.rel (%p198) target = $region32
      $region31: #{resnet_forward.11} parent=23 // pred_region
        %s201 = smul.u32 2, %s17
        %p202 = scmp.lt.s32.totalorder %s201, 3
        %s203 = scalar_select %p202, %s201, 3
        %p204 = scmp.lt.s32.totalorder %s18, 0
        %s205 = scalar_select %p204, %s18, 0
        %s206 = sadd.s32 %s205, %s203
        %s207 = smul.addr %s206, 4
        %s208 = scalar_lea.vmem %s3, %s207
        %s209 = smul.u32 2, %s17
      $region32: #{resnet_forward.11} parent=23 // pred_fallthru
        _
    $region24: #{resnet_forward.11} parent=5 // pred_fallthru
      _
    %p210 = scmp.le.s32.totalorder 1, %s10
    %p211 = scmp.lt.s32.totalorder %s10, 3
    %p212 = pnand %p210, %p211
    %p213 = pneg %p212
    // Predicated region
    $region33: #{resnet_forward.11} parent=5 // pred_check
      _
    $region34: #{resnet_forward.11} parent=5 // pred_check_branch
      %215 = sbr.rel (%p212) target = $region36
    $region35: #{resnet_forward.11} parent=5 // pred_region
      %s216 = ssub.s32 %s10, 1
      %s217 = smul.u32 2, %s19
      %p218 = scmp.lt.s32.totalorder %s217, 3
      %s219 = scalar_select %p218, %s217, 3
      %s220 = smul.addr %s219, 9
      %s221 = smul.addr %s220, 4
      %s222 = scalar_lea.vmem %s0, %s221
      %p223 = pneg %p48
      %p224 = pneg %p45
      %p225 = scmp.lt.s32.totalorder %s20, 0
      %s226 = scalar_select %p225, %s20, 0
      %s227 = smul.addr %s226, 4
      %s228 = scalar_lea.vmem %s1, %s227
      %p229 = pneg %p74
      %p230 = pneg %p71
      %p231 = scmp.lt.s32.totalorder %s20, 0
      %s232 = scalar_select %p231, %s20, 0
      %s233 = scalar_lea.vmem %s2, %s232
      %p234 = pneg %p100
      %p235 = pneg %p97
      %s236 = smul.u32 2, %s19
      %p237 = scmp.lt.s32.totalorder %s236, 3
      %s238 = scalar_select %p237, %s236, 3
      %p239 = scmp.lt.s32.totalorder %s20, 0
      %s240 = scalar_select %p239, %s20, 0
      %s241 = sadd.s32 %s240, %s238
      %s242 = smul.addr %s241, 4
      %s243 = scalar_lea.vmem %s3, %s242
      %p244 = pneg %p128
      %p245 = pneg %p125
      %p246 = pneg %p156
      %p247 = pneg %p153
      %s248 = smul.u32 2, %s19
      %p249 = scmp.lt.s32.totalorder %s248, 3
      %s250 = scalar_select %p249, %s248, 3
      %p251 = scmp.lt.s32.totalorder %s20, 0
      %s252 = scalar_select %p251, %s20, 0
      %s253 = sadd.s32 %s252, %s250
      %s254 = smul.addr %s253, 4
      %s255 = scalar_lea.vmem %s4, %s254
      %s256 = smul.u32 2, %s19
      %p257 = scmp.lt.s32.totalorder %s256, 3
      %s258 = scalar_select %p257, %s256, 3
      %s259 = smul.addr %s258, 9
      %s260 = smul.addr %s259, 4
      %s261 = scalar_lea.vmem %s0, %s260
      %s262 = smul.u32 2, %s19
      %p263 = scmp.lt.s32.totalorder %s20, 0
      %s264 = scalar_select %p263, %s20, 0
      %s265 = smul.addr %s264, 4
      %s266 = scalar_lea.vmem %s1, %s265
      %p267 = scmp.lt.s32.totalorder %s20, 0
      %s268 = scalar_select %p267, %s20, 0
      %s269 = scalar_lea.vmem %s2, %s268
      %s270 = smul.u32 2, %s19
      %p271 = scmp.lt.s32.totalorder %s270, 3
      %s272 = scalar_select %p271, %s270, 3
      %p273 = scmp.lt.s32.totalorder %s20, 0
      %s274 = scalar_select %p273, %s20, 0
      %s275 = sadd.s32 %s274, %s272
      %s276 = smul.addr %s275, 4
      %s277 = scalar_lea.vmem %s3, %s276
      %s278 = smul.u32 2, %s19
      %s279 = smul.u32 2, %s19
      %p280 = scmp.lt.s32.totalorder %s279, 3
      %s281 = scalar_select %p280, %s279, 3
      %p282 = scmp.lt.s32.totalorder %s20, 0
      %s283 = scalar_select %p282, %s20, 0
      %s284 = sadd.s32 %s283, %s281
      %s285 = smul.addr %s284, 4
      %s286 = scalar_lea.vmem %s4, %s285
      %s287 = smul.u32 2, %s19
      %v289 = vld [vmem:[%s261] sm:$0xff]
      %v290 = vld [vmem:[%s261 + $0x8] sm:$0xff]
      %v291 = vld [vmem:[%s261 + $0x10] sm:$0xff]
      %v292 = vld [vmem:[%s261 + $0x18] sm:$0xff]
      %v293 = vld [vmem:[%s261 + $0x20] sm:$0xf]
      %v294 = vld [vmem:[%s261 + $0x24] sm:$0xff]
      %v295 = vld [vmem:[%s261 + $0x2c] sm:$0xff]
      %v296 = vld [vmem:[%s261 + $0x34] sm:$0xff]
      %v297 = vld [vmem:[%s261 + $0x3c] sm:$0xff]
      %v298 = vld [vmem:[%s261 + $0x44] sm:$0xf]
      %v299 = vld [vmem:[%s266] sm:$0xf]
      %v300 = vld [vmem:[%s266 + $0x4] sm:$0xf]
      %v301 = vld [vmem:[%s266 + $0x8] sm:$0xf]
      %v302 = vld [vmem:[%s266 + $0xc] sm:$0xf]
      %v303 = vld [vmem:[%s266 + $0x10] sm:$0xf]
      %v304 = vld [vmem:[%s266 + $0x14] sm:$0xf]
      %v305 = vld [vmem:[%s266 + $0x18] sm:$0xf]
      %v306 = vld [vmem:[%s266 + $0x1c] sm:$0xf]
      %v307 = vld [vmem:[%s266 + $0x20] sm:$0xf]
      %v308 = vld [vmem:[%s266 + $0x24] sm:$0xf]
      %v309 = vld [vmem:[%s266 + $0x28] sm:$0xf]
      %v310 = vld [vmem:[%s266 + $0x2c] sm:$0xf]
      %v311 = vld [vmem:[%s266 + $0x30] sm:$0xf]
      %v312 = vld [vmem:[%s266 + $0x34] sm:$0xf]
      %v313 = vld [vmem:[%s266 + $0x38] sm:$0xf]
      %v314 = vld [vmem:[%s266 + $0x3c] sm:$0xf]
      %v315 = vld [vmem:[%s266 + $0x40] sm:$0xf]
      %v316 = vld [vmem:[%s266 + $0x44] sm:$0xf]
      %v317 = vld [vmem:[%s266 + $0x48] sm:$0xf]
      %v318 = vld [vmem:[%s266 + $0x4c] sm:$0xf]
      %v319 = vld [vmem:[%s266 + $0x50] sm:$0xf]
      %v320 = vld [vmem:[%s266 + $0x54] sm:$0xf]
      %v321 = vld [vmem:[%s266 + $0x58] sm:$0xf]
      %v322 = vld [vmem:[%s266 + $0x5c] sm:$0xf]
      %v323 = vld [vmem:[%s266 + $0x60] sm:$0xf]
      %v324 = vld [vmem:[%s266 + $0x64] sm:$0xf]
      %v325 = vld [vmem:[%s266 + $0x68] sm:$0xf]
      %v326 = vld [vmem:[%s266 + $0x6c] sm:$0xf]
      %v327 = vld [vmem:[%s266 + $0x70] sm:$0xf]
      %v328 = vld [vmem:[%s266 + $0x74] sm:$0xf]
      %v329 = vld [vmem:[%s266 + $0x78] sm:$0xf]
      %v330 = vld [vmem:[%s266 + $0x7c] sm:$0xf]
      %v331 = vld [vmem:[%s266 + $0x80] sm:$0xf]
      %v332 = vld [vmem:[%s266 + $0x84] sm:$0xf]
      %v333 = vld [vmem:[%s266 + $0x88] sm:$0xf]
      %v334 = vld [vmem:[%s266 + $0x8c] sm:$0xf]
      %v335 = vld [vmem:[%s266 + $0x90] sm:$0xf]
      %v336 = vld [vmem:[%s266 + $0x94] sm:$0xf]
      %v337 = vld [vmem:[%s266 + $0x98] sm:$0xf]
      %v338 = vld [vmem:[%s266 + $0x9c] sm:$0xf]
      %v339 = vld [vmem:[%s266 + $0xa0] sm:$0xf]
      %v340 = vld [vmem:[%s266 + $0xa4] sm:$0xf]
      %v341 = vld [vmem:[%s266 + $0xa8] sm:$0xf]
      %v342 = vld [vmem:[%s266 + $0xac] sm:$0xf]
      %v343 = vld [vmem:[%s266 + $0xb0] sm:$0xf]
      %v344 = vld [vmem:[%s266 + $0xb4] sm:$0xf]
      %v345 = vld [vmem:[%s266 + $0xb8] sm:$0xf]
      %v346 = vld [vmem:[%s266 + $0xbc] sm:$0xf]
      %v347 = vld [vmem:[%s266 + $0xc0] sm:$0xf]
      %v348 = vld [vmem:[%s266 + $0xc4] sm:$0xf]
      %v349 = vld [vmem:[%s266 + $0xc8] sm:$0xf]
      %v350 = vld [vmem:[%s266 + $0xcc] sm:$0xf]
      %v351 = vld [vmem:[%s266 + $0xd0] sm:$0xf]
      %v352 = vld [vmem:[%s266 + $0xd4] sm:$0xf]
      %v353 = vld [vmem:[%s266 + $0xd8] sm:$0xf]
      %v354 = vld [vmem:[%s266 + $0xdc] sm:$0xf]
      %v355 = vld [vmem:[%s266 + $0xe0] sm:$0xf]
      %v356 = vld [vmem:[%s266 + $0xe4] sm:$0xf]
      %v357 = vld [vmem:[%s266 + $0xe8] sm:$0xf]
      %v358 = vld [vmem:[%s266 + $0xec] sm:$0xf]
      %v359 = vld [vmem:[%s266 + $0xf0] sm:$0xf]
      %v360 = vld [vmem:[%s266 + $0xf4] sm:$0xf]
      %v361 = vld [vmem:[%s266 + $0xf8] sm:$0xf]
      %v362 = vld [vmem:[%s266 + $0xfc] sm:$0xf]
      %v363 = vld [vmem:[%s266 + $0x100] sm:$0xf]
      %v364 = vld [vmem:[%s266 + $0x104] sm:$0xf]
      %v365 = vld [vmem:[%s266 + $0x108] sm:$0xf]
      %v366 = vld [vmem:[%s266 + $0x10c] sm:$0xf]
      %v367 = vld [vmem:[%s266 + $0x110] sm:$0xf]
      %v368 = vld [vmem:[%s266 + $0x114] sm:$0xf]
      %v369 = vld [vmem:[%s266 + $0x118] sm:$0xf]
      %v370 = vld [vmem:[%s266 + $0x11c] sm:$0xf]
      %v371 = vld [vmem:[%s266 + $0x120] sm:$0xf]
      %v372 = vld [vmem:[%s266 + $0x124] sm:$0xf]
      %v373 = vld [vmem:[%s266 + $0x128] sm:$0xf]
      %v374 = vld [vmem:[%s266 + $0x12c] sm:$0xf]
      %v375 = vld [vmem:[%s266 + $0x130] sm:$0xf]
      %v376 = vld [vmem:[%s266 + $0x134] sm:$0xf]
      %v377 = vld [vmem:[%s266 + $0x138] sm:$0xf]
      %v378 = vld [vmem:[%s266 + $0x13c] sm:$0xf]
      %v379 = vld [vmem:[%s266 + $0x140] sm:$0xf]
      %v380 = vld [vmem:[%s266 + $0x144] sm:$0xf]
      %v381 = vld [vmem:[%s266 + $0x148] sm:$0xf]
      %v382 = vld [vmem:[%s266 + $0x14c] sm:$0xf]
      %v383 = vld [vmem:[%s266 + $0x150] sm:$0xf]
      %v384 = vld [vmem:[%s266 + $0x154] sm:$0xf]
      %v385 = vld [vmem:[%s266 + $0x158] sm:$0xf]
      %v386 = vld [vmem:[%s266 + $0x15c] sm:$0xf]
      %v387 = vld [vmem:[%s266 + $0x160] sm:$0xf]
      %v388 = vld [vmem:[%s266 + $0x164] sm:$0xf]
      %v389 = vld [vmem:[%s266 + $0x168] sm:$0xf]
      %v390 = vld [vmem:[%s266 + $0x16c] sm:$0xf]
      %v391 = vld [vmem:[%s266 + $0x170] sm:$0xf]
      %v392 = vld [vmem:[%s266 + $0x174] sm:$0xf]
      %v393 = vld [vmem:[%s266 + $0x178] sm:$0xf]
      %v394 = vld [vmem:[%s266 + $0x17c] sm:$0xf]
      %v395 = vld [vmem:[%s266 + $0x180] sm:$0xf]
      %v396 = vld [vmem:[%s266 + $0x184] sm:$0xf]
      %v397 = vld [vmem:[%s266 + $0x188] sm:$0xf]
      %v398 = vld [vmem:[%s266 + $0x18c] sm:$0xf]
      %v399 = vld [vmem:[%s266 + $0x190] sm:$0xf]
      %v400 = vld [vmem:[%s266 + $0x194] sm:$0xf]
      %v401 = vld [vmem:[%s266 + $0x198] sm:$0xf]
      %v402 = vld [vmem:[%s266 + $0x19c] sm:$0xf]
      %v403 = vld [vmem:[%s266 + $0x1a0] sm:$0xf]
      %v404 = vld [vmem:[%s266 + $0x1a4] sm:$0xf]
      %v405 = vld [vmem:[%s266 + $0x1a8] sm:$0xf]
      %v406 = vld [vmem:[%s266 + $0x1ac] sm:$0xf]
      %v407 = vld [vmem:[%s266 + $0x1b0] sm:$0xf]
      %v408 = vld [vmem:[%s266 + $0x1b4] sm:$0xf]
      %v409 = vld [vmem:[%s266 + $0x1b8] sm:$0xf]
      %v410 = vld [vmem:[%s266 + $0x1bc] sm:$0xf]
      %v411 = vld [vmem:[%s266 + $0x1c0] sm:$0xf]
      %v412 = vld [vmem:[%s266 + $0x1c4] sm:$0xf]
      %v413 = vld [vmem:[%s266 + $0x1c8] sm:$0xf]
      %v414 = vld [vmem:[%s266 + $0x1cc] sm:$0xf]
      %v415 = vld [vmem:[%s266 + $0x1d0] sm:$0xf]
      %v416 = vld [vmem:[%s266 + $0x1d4] sm:$0xf]
      %v417 = vld [vmem:[%s266 + $0x1d8] sm:$0xf]
      %v418 = vld [vmem:[%s266 + $0x1dc] sm:$0xf]
      %v419 = vld [vmem:[%s266 + $0x1e0] sm:$0xf]
      %v420 = vld [vmem:[%s266 + $0x1e4] sm:$0xf]
      %v421 = vld [vmem:[%s266 + $0x1e8] sm:$0xf]
      %v422 = vld [vmem:[%s266 + $0x1ec] sm:$0xf]
      %v423 = vld [vmem:[%s266 + $0x1f0] sm:$0xf]
      %v424 = vld [vmem:[%s266 + $0x1f4] sm:$0xf]
      %v425 = vld [vmem:[%s266 + $0x1f8] sm:$0xf]
      %v426 = vld [vmem:[%s266 + $0x1fc] sm:$0xf]
      %v427 = vld [vmem:[%s266 + $0x200] sm:$0xf]
      %v428 = vld [vmem:[%s266 + $0x204] sm:$0xf]
      %v429 = vld [vmem:[%s266 + $0x208] sm:$0xf]
      %v430 = vld [vmem:[%s266 + $0x20c] sm:$0xf]
      %v431 = vld [vmem:[%s266 + $0x210] sm:$0xf]
      %v432 = vld [vmem:[%s266 + $0x214] sm:$0xf]
      %v433 = vld [vmem:[%s266 + $0x218] sm:$0xf]
      %v434 = vld [vmem:[%s266 + $0x21c] sm:$0xf]
      %v435 = vld [vmem:[%s266 + $0x220] sm:$0xf]
      %v436 = vld [vmem:[%s266 + $0x224] sm:$0xf]
      %v437 = vld [vmem:[%s266 + $0x228] sm:$0xf]
      %v438 = vld [vmem:[%s266 + $0x22c] sm:$0xf]
      %v439 = vld [vmem:[%s266 + $0x230] sm:$0xf]
      %v440 = vld [vmem:[%s266 + $0x234] sm:$0xf]
      %v441 = vld [vmem:[%s266 + $0x238] sm:$0xf]
      %v442 = vld [vmem:[%s266 + $0x23c] sm:$0xf]
      %v443 = vld [vmem:[%s269] sm:$0x1]
      %v445 = vlaneseq
      %v446 = vshrl.u32 %v445, 7
      %v447 = vsub.s32 0, %v446
      %v448 = vrot.slane %v443, %v447
      %v460 = vunpack.c.l.b16 %v289
      %v461 = vunpack.c.h.b16 %v289
      %v462 = vunpack.c.l.b16 %v290
      %v463 = vunpack.c.h.b16 %v290
      %v464 = vunpack.c.l.b16 %v291
      %v465 = vunpack.c.h.b16 %v291
      %v466 = vunpack.c.l.b16 %v292
      %v467 = vunpack.c.h.b16 %v292
      %v468 = vunpack.c.l.b16 %v293
      %v469 = vunpack.c.l.b16 %v294
      %v470 = vunpack.c.h.b16 %v294
      %v471 = vunpack.c.l.b16 %v295
      %v472 = vunpack.c.h.b16 %v295
      %v473 = vunpack.c.l.b16 %v296
      %v474 = vunpack.c.h.b16 %v296
      %v475 = vunpack.c.l.b16 %v297
      %v476 = vunpack.c.h.b16 %v297
      %v477 = vunpack.c.l.b16 %v298
      %v478 = vpack.c.b16 %v469, %v460
      %v479 = vpack.c.b16 %v470, %v461
      %v480 = vpack.c.b16 %v471, %v462
      %v481 = vpack.c.b16 %v472, %v463
      %v482 = vpack.c.b16 %v473, %v464
      %v483 = vpack.c.b16 %v474, %v465
      %v484 = vpack.c.b16 %v475, %v466
      %v485 = vpack.c.b16 %v476, %v467
      %v486 = vpack.c.b16 %v477, %v468
      %v640 = vunpack.c.l.b16 %v299
      %v641 = vunpack.c.l.b16 %v300
      %v642 = vunpack.c.l.b16 %v301
      %v643 = vunpack.c.l.b16 %v302
      %v644 = vunpack.c.l.b16 %v303
      %v645 = vunpack.c.l.b16 %v304
      %v646 = vunpack.c.l.b16 %v305
      %v647 = vunpack.c.l.b16 %v306
      %v648 = vunpack.c.l.b16 %v307
      %v649 = vunpack.c.l.b16 %v308
      %v650 = vunpack.c.l.b16 %v309
      %v651 = vunpack.c.l.b16 %v310
      %v652 = vunpack.c.l.b16 %v311
      %v653 = vunpack.c.l.b16 %v312
      %v654 = vunpack.c.l.b16 %v313
      %v655 = vunpack.c.l.b16 %v314
      %v656 = vunpack.c.l.b16 %v315
      %v657 = vunpack.c.l.b16 %v316
      %v658 = vunpack.c.l.b16 %v317
      %v659 = vunpack.c.l.b16 %v318
      %v660 = vunpack.c.l.b16 %v319
      %v661 = vunpack.c.l.b16 %v320
      %v662 = vunpack.c.l.b16 %v321
      %v663 = vunpack.c.l.b16 %v322
      %v664 = vunpack.c.l.b16 %v323
      %v665 = vunpack.c.l.b16 %v324
      %v666 = vunpack.c.l.b16 %v325
      %v667 = vunpack.c.l.b16 %v326
      %v668 = vunpack.c.l.b16 %v327
      %v669 = vunpack.c.l.b16 %v328
      %v670 = vunpack.c.l.b16 %v329
      %v671 = vunpack.c.l.b16 %v330
      %v672 = vunpack.c.l.b16 %v331
      %v673 = vunpack.c.l.b16 %v332
      %v674 = vunpack.c.l.b16 %v333
      %v675 = vunpack.c.l.b16 %v334
      %v676 = vunpack.c.l.b16 %v335
      %v677 = vunpack.c.l.b16 %v336
      %v678 = vunpack.c.l.b16 %v337
      %v679 = vunpack.c.l.b16 %v338
      %v680 = vunpack.c.l.b16 %v339
      %v681 = vunpack.c.l.b16 %v340
      %v682 = vunpack.c.l.b16 %v341
      %v683 = vunpack.c.l.b16 %v342
      %v684 = vunpack.c.l.b16 %v343
      %v685 = vunpack.c.l.b16 %v344
      %v686 = vunpack.c.l.b16 %v345
      %v687 = vunpack.c.l.b16 %v346
      %v688 = vunpack.c.l.b16 %v347
      %v689 = vunpack.c.l.b16 %v348
      %v690 = vunpack.c.l.b16 %v349
      %v691 = vunpack.c.l.b16 %v350
      %v692 = vunpack.c.l.b16 %v351
      %v693 = vunpack.c.l.b16 %v352
      %v694 = vunpack.c.l.b16 %v353
      %v695 = vunpack.c.l.b16 %v354
      %v696 = vunpack.c.l.b16 %v355
      %v697 = vunpack.c.l.b16 %v356
      %v698 = vunpack.c.l.b16 %v357
      %v699 = vunpack.c.l.b16 %v358
      %v700 = vunpack.c.l.b16 %v359
      %v701 = vunpack.c.l.b16 %v360
      %v702 = vunpack.c.l.b16 %v361
      %v703 = vunpack.c.l.b16 %v362
      %v704 = vunpack.c.l.b16 %v363
      %v705 = vunpack.c.l.b16 %v364
      %v706 = vunpack.c.l.b16 %v365
      %v707 = vunpack.c.l.b16 %v366
      %v708 = vunpack.c.l.b16 %v367
      %v709 = vunpack.c.l.b16 %v368
      %v710 = vunpack.c.l.b16 %v369
      %v711 = vunpack.c.l.b16 %v370
      %v712 = vunpack.c.l.b16 %v371
      %v713 = vunpack.c.l.b16 %v372
      %v714 = vunpack.c.l.b16 %v373
      %v715 = vunpack.c.l.b16 %v374
      %v716 = vunpack.c.l.b16 %v375
      %v717 = vunpack.c.l.b16 %v376
      %v718 = vunpack.c.l.b16 %v377
      %v719 = vunpack.c.l.b16 %v378
      %v720 = vunpack.c.l.b16 %v379
      %v721 = vunpack.c.l.b16 %v380
      %v722 = vunpack.c.l.b16 %v381
      %v723 = vunpack.c.l.b16 %v382
      %v724 = vunpack.c.l.b16 %v383
      %v725 = vunpack.c.l.b16 %v384
      %v726 = vunpack.c.l.b16 %v385
      %v727 = vunpack.c.l.b16 %v386
      %v728 = vunpack.c.l.b16 %v387
      %v729 = vunpack.c.l.b16 %v388
      %v730 = vunpack.c.l.b16 %v389
      %v731 = vunpack.c.l.b16 %v390
      %v732 = vunpack.c.l.b16 %v391
      %v733 = vunpack.c.l.b16 %v392
      %v734 = vunpack.c.l.b16 %v393
      %v735 = vunpack.c.l.b16 %v394
      %v736 = vunpack.c.l.b16 %v395
      %v737 = vunpack.c.l.b16 %v396
      %v738 = vunpack.c.l.b16 %v397
      %v739 = vunpack.c.l.b16 %v398
      %v740 = vunpack.c.l.b16 %v399
      %v741 = vunpack.c.l.b16 %v400
      %v742 = vunpack.c.l.b16 %v401
      %v743 = vunpack.c.l.b16 %v402
      %v744 = vunpack.c.l.b16 %v403
      %v745 = vunpack.c.l.b16 %v404
      %v746 = vunpack.c.l.b16 %v405
      %v747 = vunpack.c.l.b16 %v406
      %v748 = vunpack.c.l.b16 %v407
      %v749 = vunpack.c.l.b16 %v408
      %v750 = vunpack.c.l.b16 %v409
      %v751 = vunpack.c.l.b16 %v410
      %v752 = vunpack.c.l.b16 %v411
      %v753 = vunpack.c.l.b16 %v412
      %v754 = vunpack.c.l.b16 %v413
      %v755 = vunpack.c.l.b16 %v414
      %v756 = vunpack.c.l.b16 %v415
      %v757 = vunpack.c.l.b16 %v416
      %v758 = vunpack.c.l.b16 %v417
      %v759 = vunpack.c.l.b16 %v418
      %v760 = vunpack.c.l.b16 %v419
      %v761 = vunpack.c.l.b16 %v420
      %v762 = vunpack.c.l.b16 %v421
      %v763 = vunpack.c.l.b16 %v422
      %v764 = vunpack.c.l.b16 %v423
      %v765 = vunpack.c.l.b16 %v424
      %v766 = vunpack.c.l.b16 %v425
      %v767 = vunpack.c.l.b16 %v426
      %v768 = vunpack.c.l.b16 %v427
      %v769 = vunpack.c.l.b16 %v428
      %v770 = vunpack.c.l.b16 %v429
      %v771 = vunpack.c.l.b16 %v430
      %v772 = vunpack.c.l.b16 %v431
      %v773 = vunpack.c.l.b16 %v432
      %v774 = vunpack.c.l.b16 %v433
      %v775 = vunpack.c.l.b16 %v434
      %v776 = vunpack.c.l.b16 %v435
      %v777 = vunpack.c.l.b16 %v436
      %v778 = vunpack.c.l.b16 %v437
      %v779 = vunpack.c.l.b16 %v438
      %v780 = vunpack.c.l.b16 %v439
      %v781 = vunpack.c.l.b16 %v440
      %v782 = vunpack.c.l.b16 %v441
      %v783 = vunpack.c.l.b16 %v442
      %v784 = vpack.c.b16 %v641, %v640
      %v785 = vpack.c.b16 %v643, %v642
      %v786 = vpack.c.b16 %v645, %v644
      %v787 = vpack.c.b16 %v647, %v646
      %v788 = vpack.c.b16 %v649, %v648
      %v789 = vpack.c.b16 %v651, %v650
      %v790 = vpack.c.b16 %v653, %v652
      %v791 = vpack.c.b16 %v655, %v654
      %v792 = vpack.c.b16 %v657, %v656
      %v793 = vpack.c.b16 %v659, %v658
      %v794 = vpack.c.b16 %v661, %v660
      %v795 = vpack.c.b16 %v663, %v662
      %v796 = vpack.c.b16 %v665, %v664
      %v797 = vpack.c.b16 %v667, %v666
      %v798 = vpack.c.b16 %v669, %v668
      %v799 = vpack.c.b16 %v671, %v670
      %v800 = vpack.c.b16 %v673, %v672
      %v801 = vpack.c.b16 %v675, %v674
      %v802 = vpack.c.b16 %v677, %v676
      %v803 = vpack.c.b16 %v679, %v678
      %v804 = vpack.c.b16 %v681, %v680
      %v805 = vpack.c.b16 %v683, %v682
      %v806 = vpack.c.b16 %v685, %v684
      %v807 = vpack.c.b16 %v687, %v686
      %v808 = vpack.c.b16 %v689, %v688
      %v809 = vpack.c.b16 %v691, %v690
      %v810 = vpack.c.b16 %v693, %v692
      %v811 = vpack.c.b16 %v695, %v694
      %v812 = vpack.c.b16 %v697, %v696
      %v813 = vpack.c.b16 %v699, %v698
      %v814 = vpack.c.b16 %v701, %v700
      %v815 = vpack.c.b16 %v703, %v702
      %v816 = vpack.c.b16 %v705, %v704
      %v817 = vpack.c.b16 %v707, %v706
      %v818 = vpack.c.b16 %v709, %v708
      %v819 = vpack.c.b16 %v711, %v710
      %v820 = vpack.c.b16 %v713, %v712
      %v821 = vpack.c.b16 %v715, %v714
      %v822 = vpack.c.b16 %v717, %v716
      %v823 = vpack.c.b16 %v719, %v718
      %v824 = vpack.c.b16 %v721, %v720
      %v825 = vpack.c.b16 %v723, %v722
      %v826 = vpack.c.b16 %v725, %v724
      %v827 = vpack.c.b16 %v727, %v726
      %v828 = vpack.c.b16 %v729, %v728
      %v829 = vpack.c.b16 %v731, %v730
      %v830 = vpack.c.b16 %v733, %v732
      %v831 = vpack.c.b16 %v735, %v734
      %v832 = vpack.c.b16 %v737, %v736
      %v833 = vpack.c.b16 %v739, %v738
      %v834 = vpack.c.b16 %v741, %v740
      %v835 = vpack.c.b16 %v743, %v742
      %v836 = vpack.c.b16 %v745, %v744
      %v837 = vpack.c.b16 %v747, %v746
      %v838 = vpack.c.b16 %v749, %v748
      %v839 = vpack.c.b16 %v751, %v750
      %v840 = vpack.c.b16 %v753, %v752
      %v841 = vpack.c.b16 %v755, %v754
      %v842 = vpack.c.b16 %v757, %v756
      %v843 = vpack.c.b16 %v759, %v758
      %v844 = vpack.c.b16 %v761, %v760
      %v845 = vpack.c.b16 %v763, %v762
      %v846 = vpack.c.b16 %v765, %v764
      %v847 = vpack.c.b16 %v767, %v766
      %v848 = vpack.c.b16 %v769, %v768
      %v849 = vpack.c.b16 %v771, %v770
      %v850 = vpack.c.b16 %v773, %v772
      %v851 = vpack.c.b16 %v775, %v774
      %v852 = vpack.c.b16 %v777, %v776
      %v853 = vpack.c.b16 %v779, %v778
      %v854 = vpack.c.b16 %v781, %v780
      %v855 = vpack.c.b16 %v783, %v782
      %928 = vmatprep.subr.bf16.mxu0 0
      %929 = vmatpush1.bf16.msra.mxu0 %v784
      %930 = vmatprep.subr.bf16.mxu0 0
      %931 = vmatpush1.bf16.msra.mxu0 %v785
      %932 = vmatprep.subr.bf16.mxu0 0
      %933 = vmatpush1.bf16.msra.mxu0 %v786
      %934 = vmatprep.subr.bf16.mxu0 0
      %935 = vmatpush1.bf16.msra.mxu0 %v787
      %936 = vmatprep.subr.bf16.mxu0 0
      %937 = vmatpush1.bf16.msra.mxu0 %v788
      %938 = vmatprep.subr.bf16.mxu0 0
      %939 = vmatpush1.bf16.msra.mxu0 %v789
      %940 = vmatprep.subr.bf16.mxu0 0
      %941 = vmatpush1.bf16.msra.mxu0 %v790
      %942 = vmatprep.subr.bf16.mxu0 0
      %943 = vmatpush1.bf16.msra.mxu0 %v791
      %944 = vmatprep.subr.bf16.mxu0 0
      %945 = vmatpush1.bf16.msra.mxu0 %v792
      %946 = vmatprep.subr.bf16.mxu0 0
      %947 = vmatpush1.bf16.msra.mxu0 %v793
      %948 = vmatprep.subr.bf16.mxu0 0
      %949 = vmatpush1.bf16.msra.mxu0 %v794
      %950 = vmatprep.subr.bf16.mxu0 0
      %951 = vmatpush1.bf16.msra.mxu0 %v795
      %952 = vmatprep.subr.bf16.mxu0 0
      %953 = vmatpush1.bf16.msra.mxu0 %v796
      %954 = vmatprep.subr.bf16.mxu0 0
      %955 = vmatpush1.bf16.msra.mxu0 %v797
      %956 = vmatprep.subr.bf16.mxu0 0
      %957 = vmatpush1.bf16.msra.mxu0 %v798
      %958 = vmatprep.subr.bf16.mxu0 0
      %959 = vmatpush1.bf16.msra.mxu0 %v799
      %960 = vmatprep.mubr.bf16.mxu0 %v479
      %961 = vmatmul.mubr.bf16.gmra.mrb[0].mxu0 %v478
      %v962 = vpop.f32.mrb[0].mxu0
      %v963 = vadd.f32 %v448, %v962
      %v964 = vpop.f32.mrb[0].mxu0
      %v965 = vpop.f32.mrb[0].mxu0
      %v966 = vadd.f32 %v448, %v965
      %v967 = vpop.f32.mrb[0].mxu0
      %968 = vdwg.mxu0
      %969 = vmatprep.subr.bf16.mxu0 0
      %970 = vmatpush1.bf16.msra.mxu0 %v800
      %971 = vmatprep.subr.bf16.mxu0 0
      %972 = vmatpush1.bf16.msra.mxu0 %v801
      %973 = vmatprep.subr.bf16.mxu0 0
      %974 = vmatpush1.bf16.msra.mxu0 %v802
      %975 = vmatprep.subr.bf16.mxu0 0
      %976 = vmatpush1.bf16.msra.mxu0 %v803
      %977 = vmatprep.subr.bf16.mxu0 0
      %978 = vmatpush1.bf16.msra.mxu0 %v804
      %979 = vmatprep.subr.bf16.mxu0 0
      %980 = vmatpush1.bf16.msra.mxu0 %v805
      %981 = vmatprep.subr.bf16.mxu0 0
      %982 = vmatpush1.bf16.msra.mxu0 %v806
      %983 = vmatprep.subr.bf16.mxu0 0
      %984 = vmatpush1.bf16.msra.mxu0 %v807
      %985 = vmatprep.subr.bf16.mxu0 0
      %986 = vmatpush1.bf16.msra.mxu0 %v808
      %987 = vmatprep.subr.bf16.mxu0 0
      %988 = vmatpush1.bf16.msra.mxu0 %v809
      %989 = vmatprep.subr.bf16.mxu0 0
      %990 = vmatpush1.bf16.msra.mxu0 %v810
      %991 = vmatprep.subr.bf16.mxu0 0
      %992 = vmatpush1.bf16.msra.mxu0 %v811
      %993 = vmatprep.subr.bf16.mxu0 0
      %994 = vmatpush1.bf16.msra.mxu0 %v812
      %995 = vmatprep.subr.bf16.mxu0 0
      %996 = vmatpush1.bf16.msra.mxu0 %v813
      %997 = vmatprep.subr.bf16.mxu0 0
      %998 = vmatpush1.bf16.msra.mxu0 %v814
      %999 = vmatprep.subr.bf16.mxu0 0
      %1000 = vmatpush1.bf16.msra.mxu0 %v815
      %1001 = vmatprep.mubr.bf16.mxu0 %v481
      %1002 = vmatmul.mubr.bf16.gmra.mrb[0].mxu0 %v480
      %v1003 = vpop.f32.mrb[0].mxu0
      %v1004 = vadd.f32 %v963, %v1003
      %v1005 = vpop.f32.mrb[0].mxu0
      %v1006 = vpop.f32.mrb[0].mxu0
      %v1007 = vadd.f32 %v966, %v1006
      %v1008 = vpop.f32.mrb[0].mxu0
      %1009 = vdwg.mxu0
      %1010 = vmatprep.subr.bf16.mxu0 0
      %1011 = vmatpush1.bf16.msra.mxu0 %v816
      %1012 = vmatprep.subr.bf16.mxu0 0
      %1013 = vmatpush1.bf16.msra.mxu0 %v817
      %1014 = vmatprep.subr.bf16.mxu0 0
      %1015 = vmatpush1.bf16.msra.mxu0 %v818
      %1016 = vmatprep.subr.bf16.mxu0 0
      %1017 = vmatpush1.bf16.msra.mxu0 %v819
      %1018 = vmatprep.subr.bf16.mxu0 0
      %1019 = vmatpush1.bf16.msra.mxu0 %v820
      %1020 = vmatprep.subr.bf16.mxu0 0
      %1021 = vmatpush1.bf16.msra.mxu0 %v821
      %1022 = vmatprep.subr.bf16.mxu0 0
      %1023 = vmatpush1.bf16.msra.mxu0 %v822
      %1024 = vmatprep.subr.bf16.mxu0 0
      %1025 = vmatpush1.bf16.msra.mxu0 %v823
      %1026 = vmatprep.subr.bf16.mxu0 0
      %1027 = vmatpush1.bf16.msra.mxu0 %v824
      %1028 = vmatprep.subr.bf16.mxu0 0
      %1029 = vmatpush1.bf16.msra.mxu0 %v825
      %1030 = vmatprep.subr.bf16.mxu0 0
      %1031 = vmatpush1.bf16.msra.mxu0 %v826
      %1032 = vmatprep.subr.bf16.mxu0 0
      %1033 = vmatpush1.bf16.msra.mxu0 %v827
      %1034 = vmatprep.subr.bf16.mxu0 0
      %1035 = vmatpush1.bf16.msra.mxu0 %v828
      %1036 = vmatprep.subr.bf16.mxu0 0
      %1037 = vmatpush1.bf16.msra.mxu0 %v829
      %1038 = vmatprep.subr.bf16.mxu0 0
      %1039 = vmatpush1.bf16.msra.mxu0 %v830
      %1040 = vmatprep.subr.bf16.mxu0 0
      %1041 = vmatpush1.bf16.msra.mxu0 %v831
      %1042 = vmatprep.mubr.bf16.mxu0 %v483
      %1043 = vmatmul.mubr.bf16.gmra.mrb[0].mxu0 %v482
      %v1044 = vpop.f32.mrb[0].mxu0
      %v1045 = vadd.f32 %v1004, %v1044
      %v1046 = vpop.f32.mrb[0].mxu0
      %v1047 = vpop.f32.mrb[0].mxu0
      %v1048 = vadd.f32 %v1007, %v1047
      %v1049 = vpop.f32.mrb[0].mxu0
      %1050 = vdwg.mxu0
      %1051 = vmatprep.subr.bf16.mxu0 0
      %1052 = vmatpush1.bf16.msra.mxu0 %v832
      %1053 = vmatprep.subr.bf16.mxu0 0
      %1054 = vmatpush1.bf16.msra.mxu0 %v833
      %1055 = vmatprep.subr.bf16.mxu0 0
      %1056 = vmatpush1.bf16.msra.mxu0 %v834
      %1057 = vmatprep.subr.bf16.mxu0 0
      %1058 = vmatpush1.bf16.msra.mxu0 %v835
      %1059 = vmatprep.subr.bf16.mxu0 0
      %1060 = vmatpush1.bf16.msra.mxu0 %v836
      %1061 = vmatprep.subr.bf16.mxu0 0
      %1062 = vmatpush1.bf16.msra.mxu0 %v837
      %1063 = vmatprep.subr.bf16.mxu0 0
      %1064 = vmatpush1.bf16.msra.mxu0 %v838
      %1065 = vmatprep.subr.bf16.mxu0 0
      %1066 = vmatpush1.bf16.msra.mxu0 %v839
      %1067 = vmatprep.subr.bf16.mxu0 0
      %1068 = vmatpush1.bf16.msra.mxu0 %v840
      %1069 = vmatprep.subr.bf16.mxu0 0
      %1070 = vmatpush1.bf16.msra.mxu0 %v841
      %1071 = vmatprep.subr.bf16.mxu0 0
      %1072 = vmatpush1.bf16.msra.mxu0 %v842
      %1073 = vmatprep.subr.bf16.mxu0 0
      %1074 = vmatpush1.bf16.msra.mxu0 %v843
      %1075 = vmatprep.subr.bf16.mxu0 0
      %1076 = vmatpush1.bf16.msra.mxu0 %v844
      %1077 = vmatprep.subr.bf16.mxu0 0
      %1078 = vmatpush1.bf16.msra.mxu0 %v845
      %1079 = vmatprep.subr.bf16.mxu0 0
      %1080 = vmatpush1.bf16.msra.mxu0 %v846
      %1081 = vmatprep.subr.bf16.mxu0 0
      %1082 = vmatpush1.bf16.msra.mxu0 %v847
      %1083 = vmatprep.mubr.bf16.mxu0 %v485
      %1084 = vmatmul.mubr.bf16.gmra.mrb[0].mxu0 %v484
      %v1085 = vpop.f32.mrb[0].mxu0
      %v1086 = vadd.f32 %v1045, %v1085
      %v1087 = vpop.f32.mrb[0].mxu0
      %v1088 = vpop.f32.mrb[0].mxu0
      %v1089 = vadd.f32 %v1048, %v1088
      %v1090 = vpop.f32.mrb[0].mxu0
      %1091 = vdwg.mxu0
      %1092 = vmatprep.subr.bf16.mxu0 0
      %1093 = vmatpush1.bf16.msra.mxu0 %v848
      %1094 = vmatprep.subr.bf16.mxu0 0
      %1095 = vmatpush1.bf16.msra.mxu0 %v849
      %1096 = vmatprep.subr.bf16.mxu0 0
      %1097 = vmatpush1.bf16.msra.mxu0 %v850
      %1098 = vmatprep.subr.bf16.mxu0 0
      %1099 = vmatpush1.bf16.msra.mxu0 %v851
      %1100 = vmatprep.subr.bf16.mxu0 0
      %1101 = vmatpush1.bf16.msra.mxu0 %v852
      %1102 = vmatprep.subr.bf16.mxu0 0
      %1103 = vmatpush1.bf16.msra.mxu0 %v853
      %1104 = vmatprep.subr.bf16.mxu0 0
      %1105 = vmatpush1.bf16.msra.mxu0 %v854
      %1106 = vmatprep.subr.bf16.mxu0 0
      %1107 = vmatpush1.bf16.msra.mxu0 %v855
      %1108 = vmatprep.subr.bf16.mxu0 0
      %1109 = vmatpush1.bf16.msra.mxu0 0
      %1110 = vmatprep.subr.bf16.mxu0 0
      %1111 = vmatpush1.bf16.msra.mxu0 0
      %1112 = vmatprep.subr.bf16.mxu0 0
      %1113 = vmatpush1.bf16.msra.mxu0 0
      %1114 = vmatprep.subr.bf16.mxu0 0
      %1115 = vmatpush1.bf16.msra.mxu0 0
      %1116 = vmatprep.subr.bf16.mxu0 0
      %1117 = vmatpush1.bf16.msra.mxu0 0
      %1118 = vmatprep.subr.bf16.mxu0 0
      %1119 = vmatpush1.bf16.msra.mxu0 0
      %1120 = vmatprep.subr.bf16.mxu0 0
      %1121 = vmatpush1.bf16.msra.mxu0 0
      %1122 = vmatprep.subr.bf16.mxu0 0
      %1123 = vmatpush1.bf16.msra.mxu0 0
      %1124 = vmatprep.mubr.bf16.mxu0 0
      %1125 = vmatmul.mubr.bf16.gmra.mrb[0].mxu0 %v486
      %v1126 = vpop.f32.mrb[0].mxu0
      %v1127 = vadd.f32 %v1086, %v1126
      %v1128 = vpop.f32.mrb[0].mxu0
      %v1129 = vpop.f32.mrb[0].mxu0
      %v1130 = vadd.f32 %v1089, %v1129
      %v1131 = vpop.f32.mrb[0].mxu0
      %1132 = vdwg.mxu0
      %v1133 = vld [vmem:[%s277] sm:$0xf]
      %v1134 = vld [vmem:[%s277 + $0x4] sm:$0xf]
      %v1135 = vunpack.c.l.bf16 %v1133
      %v1136 = vunpack.c.l.bf16 %v1134
      %v1137 = vadd.f32 %v1127, %v1135
      %v1138 = vadd.f32 %v1130, %v1136
      %v1139 = vmax.f32 %v1137, 0.0
      %v1140 = vmax.f32 %v1138, 0.0
      %v1141 = vpack.c.bf16 %v1140, %v1139
      %v1143 = vunpack.c.l.b16 %v1141
      %v1144 = vunpack.c.h.b16 %v1141
      %v1145 = vpack.c.b16 %v1143, %v1143
      %v1146 = vpack.c.b16 %v1144, %v1144
      %1149 = vst [vmem:[%s286] sm:$0xf] %v1145
      %1150 = vst [vmem:[%s286 + $0x4] sm:$0xf] %v1146
      %s1151 = smul.u32 2, %s19
      %p1152 = scmp.lt.s32.totalorder %s1151, 3
      %s1153 = scalar_select %p1152, %s1151, 3
      %p1154 = scmp.lt.s32.totalorder %s20, 0
      %s1155 = scalar_select %p1154, %s20, 0
      %s1156 = sadd.s32 %s1155, %s1153
      %s1157 = smul.addr %s1156, 4
      %s1158 = scalar_lea.vmem %s4, %s1157
      // Predicated region
      $region37: #{resnet_forward.11} parent=35 // pred_check
        %p1159 = pneg %p153
      $region38: #{resnet_forward.11} parent=35 // pred_check_branch
        %1161 = sbr.rel (%p1159) target = $region40
      $region39: #{resnet_forward.11} parent=35 // pred_region
        %s1162 = smul.u32 2, %s19
      $region40: #{resnet_forward.11} parent=35 // pred_fallthru
        _
    $region36: #{resnet_forward.11} parent=5 // pred_fallthru
      _
    %p1163 = scmp.le.s32.totalorder 2, %s10
    // Predicated region
    $region41: #{resnet_forward.11} parent=5 // pred_check
      %p1164 = pneg %p1163
    $region42: #{resnet_forward.11} parent=5 // pred_check_branch
      %1166 = sbr.rel (%p1164) target = $region44
    $region43: #{resnet_forward.11} parent=5 // pred_region
      %s1167 = ssub.s32 %s10, 2
      // Predicated region
      $region45: #{resnet_forward.11} parent=43 // pred_check
        %p1168 = pneg %p159
      $region46: #{resnet_forward.11} parent=43 // pred_check_branch
        %1170 = sbr.rel (%p1168) target = $region48
      $region47: #{resnet_forward.11} parent=43 // pred_region
        %s1171 = smul.u32 2, %s21
        %p1172 = scmp.lt.s32.totalorder %s1171, 3
        %s1173 = scalar_select %p1172, %s1171, 3
        %p1174 = scmp.lt.s32.totalorder %s22, 0
        %s1175 = scalar_select %p1174, %s22, 0
        %s1176 = sadd.s32 %s1175, %s1173
        %s1177 = smul.addr %s1176, 4
        %s1178 = scalar_lea.vmem %s4, %s1177
      $region48: #{resnet_forward.11} parent=43 // pred_fallthru
        _
    $region44: #{resnet_forward.11} parent=5 // pred_fallthru
      _
  $region6: #{resnet_forward.11} parent=0 // loop_footer
    %s14 = sadd.s32 1, %s10
  $region7: #{resnet_forward.11} parent=0 // loop_footer_branch
    %9 = sbr.rel target = $region3
  $region8: #{resnet_forward.11} parent=0 // loop_exit
    _

</llo_original>
